<compile_context>
chip_gen: v6e
topology: v6e:2x2x1
jax: 0.10.0
libtpu: 0.0.40
codegen_flags: <defaults>
</compile_context>

<pallas_src>
import functools

import jax
import jax.numpy as jnp
from jax.experimental import pallas as pl
from jax.experimental.pallas import tpu as pltpu


def _para_att_kernel(x_kv_ref, x_q1_ref,
                     lnw_ref, lnb_ref,
                     wkv_ca_ref, wq_ca_ref, pcw_ref, pcb_ref,
                     wkv_sa_ref, wq_sa_ref, psw_ref, psb_ref,
                     ca_ref, sa_ref,
                     kca_ref, vca_ref, ksa_ref, vsa_ref, osc_ref,
                     *, num_heads, eps):
    bf16 = jnp.bfloat16
    f32 = jnp.float32
    qi = pl.program_id(1)
    c = x_kv_ref.shape[2]
    tq = x_q1_ref.shape[1]
    dh = c // num_heads

    def layernorm(xv):                       # f32 in / f32 out
        mu = jnp.mean(xv, axis=-1, keepdims=True)
        var = jnp.mean((xv - mu) ** 2, axis=-1, keepdims=True)
        return (xv - mu) * jax.lax.rsqrt(var + eps) * lnw_ref[...] + lnb_ref[...]

    def fill_kv(rows_b16, wkv_ref, kT_ref, v_ref):
        # Fused lane-dense K|V projection: (N2, C) @ (C, 2C), f32 accumulate.
        kv = jnp.dot(rows_b16, wkv_ref[...], preferred_element_type=f32)
        # One (N2, C) -> (C, N2) transpose per fill; heads then split along the
        # (sublane-aligned) leading dim, so the per-step score matmul needs no
        # relayout and the K cache's lane dim is N2 (no Dh<128 lane padding).
        kT = jnp.transpose(kv[:, :c])                      # (C, N2) f32
        v2d = kv[:, c:]                                    # (N2, C) f32
        for h in range(num_heads):
            hs = slice(h * dh, (h + 1) * dh)
            kT_ref[h] = kT[hs, :].astype(bf16)             # (Dh, N2)
            v_ref[h] = v2d[:, hs].astype(bf16)             # (N2, Dh)

    def softmax_rows(s):                     # last-dim softmax, f32 statistics
        e = jnp.exp(s - jnp.max(s, axis=-1, keepdims=True))
        return e * pl.reciprocal(jnp.sum(e, axis=-1, keepdims=True), approx=True)

    def attend(q2d, kT_ref, v_ref, pw_ref, pb_ref):
        # Per-head attention core; scores are lane-dense over N2.  Per-head
        # outputs are assembled into the lane-dense (tq, C) osc_ref tile, then
        # one full-width (tq, C) @ (C, C) output projection runs on the MXU.
        for h in range(num_heads):
            hs = slice(h * dh, (h + 1) * dh)
            s = jnp.dot(q2d[:, hs], kT_ref[h],
                        preferred_element_type=f32)        # (tq, N2) f32
            p = softmax_rows(s).astype(bf16)
            osc_ref[:, hs] = jnp.dot(p, v_ref[h],
                                     preferred_element_type=f32).astype(bf16)
        return jnp.dot(osc_ref[...], pw_ref[...],
                       preferred_element_type=f32) + pb_ref[...]   # (tq, C) f32

    # ---- once per batch element: build K^T / V bf16 caches ------------------
    @pl.when(qi == 0)
    def _fill_caches():
        x2 = x_kv_ref[0]                                   # raw second half (N2, C)
        fill_kv(layernorm(x2).astype(bf16), wkv_ca_ref, kca_ref, vca_ref)
        fill_kv(x2.astype(bf16), wkv_sa_ref, ksa_ref, vsa_ref)

    # ---- cross-attention: queries = LayerNorm(first-half tile) --------------
    xn1 = layernorm(x_q1_ref[0]).astype(bf16)              # (tq, C)
    q_ca = jnp.dot(xn1, wq_ca_ref[...],                    # scale folded in weight
                   preferred_element_type=f32).astype(bf16)
    ca_ref[0] = attend(q_ca, kca_ref, vca_ref, pcw_ref, pcb_ref)

    # ---- self-attention: query rows sliced from the resident x_kv block -----
    row0 = pl.multiple_of(qi * tq, tq)
    x2t = x_kv_ref[0, pl.ds(row0, tq), :].astype(bf16)     # (tq, C)
    q_sa = jnp.dot(x2t, wq_sa_ref[...],
                   preferred_element_type=f32).astype(bf16)
    sa_ref[0] = attend(q_sa, ksa_ref, vsa_ref, psw_ref, psb_ref)


def _pick_tq(n2, cap=256):
    """Largest query tile <= cap that divides N2 and keeps the (8,128) rule."""
    if n2 <= cap:
        return n2
    t = (cap // 8) * 8
    while t >= 8:
        if n2 % t == 0:
            return t
        t -= 8
    return n2


def _vmem_limit_bytes(n2, c, h, dh, tq):
    """Rough padded footprint of all resident buffers, with headroom."""
    def up(a, m):
        return -(-a // m) * m
    lane = 128
    k_cache = h * up(dh, 16) * up(n2, lane) * 2            # bf16 K^T caches
    v_cache = h * up(n2, 16) * up(dh, lane) * 2            # bf16 V caches
    caches = 2 * (k_cache + v_cache)                       # cross + self
    x_kv = 2 * up(n2, 8) * up(c, lane) * 4                 # double-buffered block
    q_tile = 2 * up(tq, 8) * up(c, lane) * 4
    outs = 2 * 2 * up(tq, 8) * up(c, lane) * 4
    weights = 2 * (2 * c * 2 * c + 4 * c * c) * 2          # double-buffered bf16
    vecs = 2 * 4 * 8 * up(c, lane) * 4                     # LN params + proj biases
    o_scr = up(tq, 16) * up(c, lane) * 2
    live = (2 * up(n2, 8) * up(2 * c, lane) * 4            # fill-time K|V product
            + 4 * up(tq, 8) * up(n2, lane) * 4             # score / exp slabs
            + 4 * up(tq, 8) * up(c, lane) * 4)             # q / proj accumulators
    est = caches + x_kv + q_tile + outs + weights + vecs + o_scr + live
    return int(min(max(2 * est, 32 * 2 ** 20), 100 * 2 ** 20))


def para_att_forward(x, params, num_heads, tq=None):
    """params = (ln_w, ln_b, wq, wk, wv, proj_ca_w, proj_ca_b, qkv_w, proj_sa_w, proj_sa_b).

    ln_w/ln_b and the proj biases are (1, C); wq/wk/wv/proj_* are (C, C);
    qkv_w is (C, 3C).  Returns (x_CA, x_SA), each (B, N//2, C) float32.
    """
    ln_w, ln_b, wq, wk, wv, pcw, pcb, qkvw, psw, psb = params
    B, N, C = x.shape
    if N % 2 != 0:
        raise ValueError("Para_Att kernel requires an even sequence length N.")
    if C % num_heads != 0:
        raise ValueError("dim must be divisible by num_heads.")
    N2 = N // 2
    H = num_heads
    Dh = C // H
    if tq is None:
        tq = _pick_tq(N2)
    assert N2 % tq == 0, "query tile must divide N//2"
    assert tq == N2 or tq % 8 == 0, "query tile must be a multiple of 8"
    nq = N2 // tq
    bf16 = jnp.bfloat16
    scale = Dh ** -0.5

    # Fused, lane-dense bf16 weights; 1/sqrt(Dh) folded into the Q projections.
    w_kv_ca = jnp.concatenate([wk, wv], axis=1).astype(bf16)    # (C, 2C)
    w_q_ca = (wq * scale).astype(bf16)                          # (C, C)
    w_kv_sa = qkvw[:, C:3 * C].astype(bf16)                     # (C, 2C)
    w_q_sa = (qkvw[:, 0:C] * scale).astype(bf16)                # (C, C)
    pcw_b = pcw.astype(bf16)                                    # (C, C)
    psw_b = psw.astype(bf16)                                    # (C, C)

    kernel = functools.partial(_para_att_kernel, num_heads=H, eps=1e-5)
    const2 = lambda b, qi: (0, 0)

    grid_spec = pltpu.PrefetchScalarGridSpec(
        num_scalar_prefetch=0,
        grid=(B, nq),
        in_specs=[
            # raw second half: K/V source AND self-attn query rows; constant
            # over qi so it is DMA'd once per batch element.
            pl.BlockSpec((1, N2, C), lambda b, qi: (b, 1, 0)),
            # query tile from the first half (cross-attention queries)
            pl.BlockSpec((1, tq, C), lambda b, qi: (b, qi, 0)),
            pl.BlockSpec((1, C), const2),            # layernorm weight
            pl.BlockSpec((1, C), const2),            # layernorm bias
            pl.BlockSpec((C, 2 * C), const2),        # cross fused K|V weight
            pl.BlockSpec((C, C), const2),            # cross Q weight (pre-scaled)
            pl.BlockSpec((C, C), const2),            # cross proj weight
            pl.BlockSpec((1, C), const2),            # cross proj bias
            pl.BlockSpec((C, 2 * C), const2),        # self fused K|V weight
            pl.BlockSpec((C, C), const2),            # self Q weight (pre-scaled)
            pl.BlockSpec((C, C), const2),            # self proj weight
            pl.BlockSpec((1, C), const2),            # self proj bias
        ],
        out_specs=(pl.BlockSpec((1, tq, C), lambda b, qi: (b, qi, 0)),
                   pl.BlockSpec((1, tq, C), lambda b, qi: (b, qi, 0))),
        scratch_shapes=[
            pltpu.VMEM((H, Dh, N2), bf16),   # cross-attn K^T cache (lane dim = N2)
            pltpu.VMEM((H, N2, Dh), bf16),   # cross-attn V cache
            pltpu.VMEM((H, Dh, N2), bf16),   # self-attn K^T cache
            pltpu.VMEM((H, N2, Dh), bf16),   # self-attn V cache
            pltpu.VMEM((tq, C), bf16),       # lane-dense per-head output assembly
        ],
    )

    return pl.pallas_call(
        kernel,
        out_shape=(jax.ShapeDtypeStruct((B, N2, C), jnp.float32),
                   jax.ShapeDtypeStruct((B, N2, C), jnp.float32)),
        grid_spec=grid_spec,
        compiler_params=pltpu.CompilerParams(
            # qi must stay 'arbitrary': caches are filled at qi == 0 and reused
            # for the remaining query tiles of the same batch element.
            dimension_semantics=("parallel", "arbitrary"),
            vmem_limit_bytes=_vmem_limit_bytes(N2, C, H, Dh, tq)),
    )(x, x, ln_w, ln_b, w_kv_ca, w_q_ca, pcw_b, pcb,
      w_kv_sa, w_q_sa, psw_b, psb)


def para_att_reference(x, params, num_heads):
    """Pure-JAX f32 reference matching the PyTorch module."""
    ln_w, ln_b, wq, wk, wv, pcw, pcb, qkvw, psw, psb = params
    B, N, C = x.shape
    N2 = N // 2
    Dh = C // num_heads
    scale = Dh ** -0.5

    mu = x.mean(-1, keepdims=True)
    var = ((x - mu) ** 2).mean(-1, keepdims=True)
    xn = (x - mu) / jnp.sqrt(var + 1e-5) * ln_w + ln_b

    def heads(t):
        return t.reshape(B, N2, num_heads, Dh).transpose(0, 2, 1, 3)

    q = heads(xn[:, :N2] @ wq)
    k = heads(xn[:, N2:] @ wk)
    v = heads(xn[:, N2:] @ wv)
    attn = jax.nn.softmax(jnp.einsum('bhqd,bhkd->bhqk', q, k) * scale, axis=-1)
    o = jnp.einsum('bhqk,bhkd->bhqd', attn, v).transpose(0, 2, 1, 3).reshape(B, N2, C)
    ca = o @ pcw + pcb

    x2 = x[:, N2:]
    qkv = x2 @ qkvw
    qs = heads(qkv[..., :C] * scale)
    ks = heads(qkv[..., C:2 * C])
    vs = heads(qkv[..., 2 * C:])
    attn = jax.nn.softmax(jnp.einsum('bhqd,bhkd->bhqk', qs, ks), axis=-1)
    o = jnp.einsum('bhqk,bhkd->bhqd', attn, vs).transpose(0, 2, 1, 3).reshape(B, N2, C)
    sa = o @ psw + psb
    return ca, sa


if __name__ == "__main__":
    # dim=128, num_heads=4 -> head_dim=32; N=32 tokens -> N2=16, query tile tq=8
    B, N, C, H = 2, 32, 128, 4
    key = jax.random.PRNGKey(0)
    ks = jax.random.split(key, 11)

    x = jax.random.normal(ks[0], (B, N, C), jnp.float32)

    # Deterministic synthetic parameters (no checkpoint loading).
    ln_w = 1.0 + 0.1 * jax.random.normal(ks[1], (1, C), jnp.float32)
    ln_b = 0.1 * jax.random.normal(ks[2], (1, C), jnp.float32)
    wq = 0.1 * jax.random.normal(ks[3], (C, C), jnp.float32)
    wk = 0.1 * jax.random.normal(ks[4], (C, C), jnp.float32)
    wv = 0.1 * jax.random.normal(ks[5], (C, C), jnp.float32)
    proj_ca_w = 0.1 * jax.random.normal(ks[6], (C, C), jnp.float32)
    proj_ca_b = 0.1 * jax.random.normal(ks[7], (1, C), jnp.float32)
    qkv_w = 0.1 * jax.random.normal(ks[8], (C, 3 * C), jnp.float32)
    proj_sa_w = 0.1 * jax.random.normal(ks[9], (C, C), jnp.float32)
    proj_sa_b = 0.1 * jax.random.normal(ks[10], (1, C), jnp.float32)

    params = (ln_w, ln_b, wq, wk, wv, proj_ca_w, proj_ca_b,
              qkv_w, proj_sa_w, proj_sa_b)

    x_ca, x_sa = para_att_forward(x, params, num_heads=H, tq=8)
    jax.block_until_ready((x_ca, x_sa))

    ref_ca, ref_sa = para_att_reference(x, params, num_heads=H)
    assert x_ca.shape == (B, N // 2, C) and x_sa.shape == (B, N // 2, C)
    # bf16 matmul operands (f32 accumulation) vs. f32 reference -> loose tol.
    assert jnp.allclose(x_ca, ref_ca, atol=5e-2, rtol=5e-2)
    assert jnp.allclose(x_sa, ref_sa, atol=5e-2, rtol=5e-2)

    print("KERNEL_OK")
</pallas_src>

<mosaic_0001>
module attributes {stable_mosaic.version = 11 : i64} {
  func.func @_para_att_kernel(%arg0: i32, %arg1: i32, %arg2: memref<1x16x128xf32, #tpu.memory_space<vmem>>, %arg3: memref<1x8x128xf32, #tpu.memory_space<vmem>>, %arg4: memref<1x128xf32, #tpu.memory_space<vmem>>, %arg5: memref<1x128xf32, #tpu.memory_space<vmem>>, %arg6: memref<128x256xbf16, #tpu.memory_space<vmem>>, %arg7: memref<128x128xbf16, #tpu.memory_space<vmem>>, %arg8: memref<128x128xbf16, #tpu.memory_space<vmem>>, %arg9: memref<1x128xf32, #tpu.memory_space<vmem>>, %arg10: memref<128x256xbf16, #tpu.memory_space<vmem>>, %arg11: memref<128x128xbf16, #tpu.memory_space<vmem>>, %arg12: memref<128x128xbf16, #tpu.memory_space<vmem>>, %arg13: memref<1x128xf32, #tpu.memory_space<vmem>>, %arg14: memref<1x8x128xf32, #tpu.memory_space<vmem>>, %arg15: memref<1x8x128xf32, #tpu.memory_space<vmem>>, %arg16: memref<4x32x16xbf16, #tpu.memory_space<vmem>>, %arg17: memref<4x16x32xbf16, #tpu.memory_space<vmem>>, %arg18: memref<4x32x16xbf16, #tpu.memory_space<vmem>>, %arg19: memref<4x16x32xbf16, #tpu.memory_space<vmem>>, %arg20: memref<8x128xbf16, #tpu.memory_space<vmem>>) attributes {dimension_semantics = [#tpu.dimension_semantics<parallel>, #tpu.dimension_semantics<arbitrary>], iteration_bounds = array<i64: 2, 2>, scalar_prefetch = 0 : i64, scratch_operands = 5 : i64, tpu.core_type = #tpu.core_type<tc>, window_params = [{transform_indices = @transform_0, window_bounds = array<i64: 1, 16, 128>}, {transform_indices = @transform_1, window_bounds = array<i64: 1, 8, 128>}, {pipeline_mode = #tpu.pipeline_mode<synchronous>, transform_indices = @transform_2, window_bounds = array<i64: 1, 128>}, {pipeline_mode = #tpu.pipeline_mode<synchronous>, transform_indices = @transform_3, window_bounds = array<i64: 1, 128>}, {pipeline_mode = #tpu.pipeline_mode<synchronous>, transform_indices = @transform_4, window_bounds = array<i64: 128, 256>}, {pipeline_mode = #tpu.pipeline_mode<synchronous>, transform_indices = @transform_5, window_bounds = array<i64: 128, 128>}, {pipeline_mode = #tpu.pipeline_mode<synchronous>, transform_indices = @transform_6, window_bounds = array<i64: 128, 128>}, {pipeline_mode = #tpu.pipeline_mode<synchronous>, transform_indices = @transform_7, window_bounds = array<i64: 1, 128>}, {pipeline_mode = #tpu.pipeline_mode<synchronous>, transform_indices = @transform_8, window_bounds = array<i64: 128, 256>}, {pipeline_mode = #tpu.pipeline_mode<synchronous>, transform_indices = @transform_9, window_bounds = array<i64: 128, 128>}, {pipeline_mode = #tpu.pipeline_mode<synchronous>, transform_indices = @transform_10, window_bounds = array<i64: 128, 128>}, {pipeline_mode = #tpu.pipeline_mode<synchronous>, transform_indices = @transform_11, window_bounds = array<i64: 1, 128>}, {transform_indices = @transform_12, window_bounds = array<i64: 1, 8, 128>}, {transform_indices = @transform_13, window_bounds = array<i64: 1, 8, 128>}]} {
    %c0_i32 = arith.constant 0 : i32
    %0 = arith.cmpi eq, %arg1, %c0_i32 : i32
    %1 = arith.extui %0 : i1 to i32
    %c0_i32_0 = arith.constant 0 : i32
    %2 = arith.cmpi ne, %1, %c0_i32_0 : i32
    scf.if %2 {
      %c0_129 = arith.constant 0 : index
      %c0_130 = arith.constant 0 : index
      %c0_131 = arith.constant 0 : index
      %220 = vector.load %arg2[%c0_129, %c0_130, %c0_131] : memref<1x16x128xf32, #tpu.memory_space<vmem>>, vector<1x16x128xf32>
      %221 = vector.shape_cast %220 : vector<1x16x128xf32> to vector<16x128xf32>
      %cst_132 = arith.constant dense<0.000000e+00> : vector<16xf32>
      %222 = vector.multi_reduction <add>, %221, %cst_132 [1] : vector<16x128xf32> to vector<16xf32>
      %223 = vector.shape_cast %222 : vector<16xf32> to vector<16x1xf32>
      %cst_133 = arith.constant 1.280000e+02 : f32
      %224 = vector.broadcast %cst_133 : f32 to vector<16x1xf32>
      %225 = arith.divf %223, %224 : vector<16x1xf32>
      %226 = vector.broadcast %225 : vector<16x1xf32> to vector<16x128xf32>
      %227 = arith.subf %221, %226 : vector<16x128xf32>
      %228 = arith.mulf %227, %227 : vector<16x128xf32>
      %cst_134 = arith.constant dense<0.000000e+00> : vector<16xf32>
      %229 = vector.multi_reduction <add>, %228, %cst_134 [1] : vector<16x128xf32> to vector<16xf32>
      %230 = vector.shape_cast %229 : vector<16xf32> to vector<16x1xf32>
      %cst_135 = arith.constant 1.280000e+02 : f32
      %231 = vector.broadcast %cst_135 : f32 to vector<16x1xf32>
      %232 = arith.divf %230, %231 : vector<16x1xf32>
      %233 = vector.broadcast %225 : vector<16x1xf32> to vector<16x128xf32>
      %234 = arith.subf %221, %233 : vector<16x128xf32>
      %cst_136 = arith.constant 9.99999974E-6 : f32
      %235 = vector.broadcast %cst_136 : f32 to vector<16x1xf32>
      %236 = arith.addf %232, %235 : vector<16x1xf32>
      %237 = math.rsqrt %236 : vector<16x1xf32>
      %238 = vector.broadcast %237 : vector<16x1xf32> to vector<16x128xf32>
      %239 = arith.mulf %234, %238 : vector<16x128xf32>
      %c0_137 = arith.constant 0 : index
      %c0_138 = arith.constant 0 : index
      %240 = vector.load %arg4[%c0_137, %c0_138] : memref<1x128xf32, #tpu.memory_space<vmem>>, vector<1x128xf32>
      %241 = vector.broadcast %240 : vector<1x128xf32> to vector<16x128xf32>
      %242 = arith.mulf %239, %241 : vector<16x128xf32>
      %c0_139 = arith.constant 0 : index
      %c0_140 = arith.constant 0 : index
      %243 = vector.load %arg5[%c0_139, %c0_140] : memref<1x128xf32, #tpu.memory_space<vmem>>, vector<1x128xf32>
      %244 = vector.broadcast %243 : vector<1x128xf32> to vector<16x128xf32>
      %245 = arith.addf %242, %244 : vector<16x128xf32>
      %246 = arith.truncf %245 : vector<16x128xf32> to vector<16x128xbf16>
      %c0_141 = arith.constant 0 : index
      %c0_142 = arith.constant 0 : index
      %247 = vector.load %arg6[%c0_141, %c0_142] : memref<128x256xbf16, #tpu.memory_space<vmem>>, vector<128x256xbf16>
      %cst_143 = arith.constant dense<0.000000e+00> : vector<16x256xf32>
      %248 = tpu.matmul %246, %247, %cst_143 {dimension_numbers = #tpu.dot_dimension_numbers<[1], [0], [0], [1], [0, 0, 1, 1], [], []>} : vector<16x128xbf16>, vector<128x256xbf16>, vector<16x256xf32> -> vector<16x256xf32>
      %249 = vector.extract_strided_slice %248 {offsets = [0, 0], sizes = [16, 128], strides = [1, 1]} : vector<16x256xf32> to vector<16x128xf32>
      %250 = tpu.transpose %249, [1, 0] : vector<16x128xf32> -> vector<128x16xf32>
      %251 = vector.extract_strided_slice %248 {offsets = [0, 128], sizes = [16, 128], strides = [1, 1]} : vector<16x256xf32> to vector<16x128xf32>
      %252 = vector.extract_strided_slice %250 {offsets = [0, 0], sizes = [32, 16], strides = [1, 1]} : vector<128x16xf32> to vector<32x16xf32>
      %253 = arith.truncf %252 : vector<32x16xf32> to vector<32x16xbf16>
      %c0_144 = arith.constant 0 : index
      %c0_145 = arith.constant 0 : index
      %c0_146 = arith.constant 0 : index
      %254 = vector.load %arg16[%c0_144, %c0_145, %c0_146] : memref<4x32x16xbf16, #tpu.memory_space<vmem>>, vector<1x32x16xbf16>
      %255 = vector.shape_cast %254 : vector<1x32x16xbf16> to vector<32x16xbf16>
      %256 = vector.shape_cast %253 : vector<32x16xbf16> to vector<1x32x16xbf16>
      tpu.vector_store %arg16[%c0_144, %c0_145, %c0_146], %256 {strides = array<i32>} : memref<4x32x16xbf16, #tpu.memory_space<vmem>>, vector<1x32x16xbf16>,
      %257 = vector.extract_strided_slice %251 {offsets = [0, 0], sizes = [16, 32], strides = [1, 1]} : vector<16x128xf32> to vector<16x32xf32>
      %258 = arith.truncf %257 : vector<16x32xf32> to vector<16x32xbf16>
      %c0_147 = arith.constant 0 : index
      %c0_148 = arith.constant 0 : index
      %c0_149 = arith.constant 0 : index
      %259 = vector.load %arg17[%c0_147, %c0_148, %c0_149] : memref<4x16x32xbf16, #tpu.memory_space<vmem>>, vector<1x16x32xbf16>
      %260 = vector.shape_cast %259 : vector<1x16x32xbf16> to vector<16x32xbf16>
      %261 = vector.shape_cast %258 : vector<16x32xbf16> to vector<1x16x32xbf16>
      tpu.vector_store %arg17[%c0_147, %c0_148, %c0_149], %261 {strides = array<i32>} : memref<4x16x32xbf16, #tpu.memory_space<vmem>>, vector<1x16x32xbf16>,
      %262 = vector.extract_strided_slice %250 {offsets = [32, 0], sizes = [32, 16], strides = [1, 1]} : vector<128x16xf32> to vector<32x16xf32>
      %263 = arith.truncf %262 : vector<32x16xf32> to vector<32x16xbf16>
      %c1_150 = arith.constant 1 : index
      %c0_151 = arith.constant 0 : index
      %c0_152 = arith.constant 0 : index
      %264 = vector.load %arg16[%c1_150, %c0_151, %c0_152] : memref<4x32x16xbf16, #tpu.memory_space<vmem>>, vector<1x32x16xbf16>
      %265 = vector.shape_cast %264 : vector<1x32x16xbf16> to vector<32x16xbf16>
      %266 = vector.shape_cast %263 : vector<32x16xbf16> to vector<1x32x16xbf16>
      tpu.vector_store %arg16[%c1_150, %c0_151, %c0_152], %266 {strides = array<i32>} : memref<4x32x16xbf16, #tpu.memory_space<vmem>>, vector<1x32x16xbf16>,
      %267 = vector.extract_strided_slice %251 {offsets = [0, 32], sizes = [16, 32], strides = [1, 1]} : vector<16x128xf32> to vector<16x32xf32>
      %268 = arith.truncf %267 : vector<16x32xf32> to vector<16x32xbf16>
      %c1_153 = arith.constant 1 : index
      %c0_154 = arith.constant 0 : index
      %c0_155 = arith.constant 0 : index
      %269 = vector.load %arg17[%c1_153, %c0_154, %c0_155] : memref<4x16x32xbf16, #tpu.memory_space<vmem>>, vector<1x16x32xbf16>
      %270 = vector.shape_cast %269 : vector<1x16x32xbf16> to vector<16x32xbf16>
      %271 = vector.shape_cast %268 : vector<16x32xbf16> to vector<1x16x32xbf16>
      tpu.vector_store %arg17[%c1_153, %c0_154, %c0_155], %271 {strides = array<i32>} : memref<4x16x32xbf16, #tpu.memory_space<vmem>>, vector<1x16x32xbf16>,
      %272 = vector.extract_strided_slice %250 {offsets = [64, 0], sizes = [32, 16], strides = [1, 1]} : vector<128x16xf32> to vector<32x16xf32>
      %273 = arith.truncf %272 : vector<32x16xf32> to vector<32x16xbf16>
      %c2_156 = arith.constant 2 : index
      %c0_157 = arith.constant 0 : index
      %c0_158 = arith.constant 0 : index
      %274 = vector.load %arg16[%c2_156, %c0_157, %c0_158] : memref<4x32x16xbf16, #tpu.memory_space<vmem>>, vector<1x32x16xbf16>
      %275 = vector.shape_cast %274 : vector<1x32x16xbf16> to vector<32x16xbf16>
      %276 = vector.shape_cast %273 : vector<32x16xbf16> to vector<1x32x16xbf16>
      tpu.vector_store %arg16[%c2_156, %c0_157, %c0_158], %276 {strides = array<i32>} : memref<4x32x16xbf16, #tpu.memory_space<vmem>>, vector<1x32x16xbf16>,
      %277 = vector.extract_strided_slice %251 {offsets = [0, 64], sizes = [16, 32], strides = [1, 1]} : vector<16x128xf32> to vector<16x32xf32>
      %278 = arith.truncf %277 : vector<16x32xf32> to vector<16x32xbf16>
      %c2_159 = arith.constant 2 : index
      %c0_160 = arith.constant 0 : index
      %c0_161 = arith.constant 0 : index
      %279 = vector.load %arg17[%c2_159, %c0_160, %c0_161] : memref<4x16x32xbf16, #tpu.memory_space<vmem>>, vector<1x16x32xbf16>
      %280 = vector.shape_cast %279 : vector<1x16x32xbf16> to vector<16x32xbf16>
      %281 = vector.shape_cast %278 : vector<16x32xbf16> to vector<1x16x32xbf16>
      tpu.vector_store %arg17[%c2_159, %c0_160, %c0_161], %281 {strides = array<i32>} : memref<4x16x32xbf16, #tpu.memory_space<vmem>>, vector<1x16x32xbf16>,
      %282 = vector.extract_strided_slice %250 {offsets = [96, 0], sizes = [32, 16], strides = [1, 1]} : vector<128x16xf32> to vector<32x16xf32>
      %283 = arith.truncf %282 : vector<32x16xf32> to vector<32x16xbf16>
      %c3_162 = arith.constant 3 : index
      %c0_163 = arith.constant 0 : index
      %c0_164 = arith.constant 0 : index
      %284 = vector.load %arg16[%c3_162, %c0_163, %c0_164] : memref<4x32x16xbf16, #tpu.memory_space<vmem>>, vector<1x32x16xbf16>
      %285 = vector.shape_cast %284 : vector<1x32x16xbf16> to vector<32x16xbf16>
      %286 = vector.shape_cast %283 : vector<32x16xbf16> to vector<1x32x16xbf16>
      tpu.vector_store %arg16[%c3_162, %c0_163, %c0_164], %286 {strides = array<i32>} : memref<4x32x16xbf16, #tpu.memory_space<vmem>>, vector<1x32x16xbf16>,
      %287 = vector.extract_strided_slice %251 {offsets = [0, 96], sizes = [16, 32], strides = [1, 1]} : vector<16x128xf32> to vector<16x32xf32>
      %288 = arith.truncf %287 : vector<16x32xf32> to vector<16x32xbf16>
      %c3_165 = arith.constant 3 : index
      %c0_166 = arith.constant 0 : index
      %c0_167 = arith.constant 0 : index
      %289 = vector.load %arg17[%c3_165, %c0_166, %c0_167] : memref<4x16x32xbf16, #tpu.memory_space<vmem>>, vector<1x16x32xbf16>
      %290 = vector.shape_cast %289 : vector<1x16x32xbf16> to vector<16x32xbf16>
      %291 = vector.shape_cast %288 : vector<16x32xbf16> to vector<1x16x32xbf16>
      tpu.vector_store %arg17[%c3_165, %c0_166, %c0_167], %291 {strides = array<i32>} : memref<4x16x32xbf16, #tpu.memory_space<vmem>>, vector<1x16x32xbf16>,
      %292 = arith.truncf %221 : vector<16x128xf32> to vector<16x128xbf16>
      %c0_168 = arith.constant 0 : index
      %c0_169 = arith.constant 0 : index
      %293 = vector.load %arg10[%c0_168, %c0_169] : memref<128x256xbf16, #tpu.memory_space<vmem>>, vector<128x256xbf16>
      %cst_170 = arith.constant dense<0.000000e+00> : vector<16x256xf32>
      %294 = tpu.matmul %292, %293, %cst_170 {dimension_numbers = #tpu.dot_dimension_numbers<[1], [0], [0], [1], [0, 0, 1, 1], [], []>} : vector<16x128xbf16>, vector<128x256xbf16>, vector<16x256xf32> -> vector<16x256xf32>
      %295 = vector.extract_strided_slice %294 {offsets = [0, 0], sizes = [16, 128], strides = [1, 1]} : vector<16x256xf32> to vector<16x128xf32>
      %296 = tpu.transpose %295, [1, 0] : vector<16x128xf32> -> vector<128x16xf32>
      %297 = vector.extract_strided_slice %294 {offsets = [0, 128], sizes = [16, 128], strides = [1, 1]} : vector<16x256xf32> to vector<16x128xf32>
      %298 = vector.extract_strided_slice %296 {offsets = [0, 0], sizes = [32, 16], strides = [1, 1]} : vector<128x16xf32> to vector<32x16xf32>
      %299 = arith.truncf %298 : vector<32x16xf32> to vector<32x16xbf16>
      %c0_171 = arith.constant 0 : index
      %c0_172 = arith.constant 0 : index
      %c0_173 = arith.constant 0 : index
      %300 = vector.load %arg18[%c0_171, %c0_172, %c0_173] : memref<4x32x16xbf16, #tpu.memory_space<vmem>>, vector<1x32x16xbf16>
      %301 = vector.shape_cast %300 : vector<1x32x16xbf16> to vector<32x16xbf16>
      %302 = vector.shape_cast %299 : vector<32x16xbf16> to vector<1x32x16xbf16>
      tpu.vector_store %arg18[%c0_171, %c0_172, %c0_173], %302 {strides = array<i32>} : memref<4x32x16xbf16, #tpu.memory_space<vmem>>, vector<1x32x16xbf16>,
      %303 = vector.extract_strided_slice %297 {offsets = [0, 0], sizes = [16, 32], strides = [1, 1]} : vector<16x128xf32> to vector<16x32xf32>
      %304 = arith.truncf %303 : vector<16x32xf32> to vector<16x32xbf16>
      %c0_174 = arith.constant 0 : index
      %c0_175 = arith.constant 0 : index
      %c0_176 = arith.constant 0 : index
      %305 = vector.load %arg19[%c0_174, %c0_175, %c0_176] : memref<4x16x32xbf16, #tpu.memory_space<vmem>>, vector<1x16x32xbf16>
      %306 = vector.shape_cast %305 : vector<1x16x32xbf16> to vector<16x32xbf16>
      %307 = vector.shape_cast %304 : vector<16x32xbf16> to vector<1x16x32xbf16>
      tpu.vector_store %arg19[%c0_174, %c0_175, %c0_176], %307 {strides = array<i32>} : memref<4x16x32xbf16, #tpu.memory_space<vmem>>, vector<1x16x32xbf16>,
      %308 = vector.extract_strided_slice %296 {offsets = [32, 0], sizes = [32, 16], strides = [1, 1]} : vector<128x16xf32> to vector<32x16xf32>
      %309 = arith.truncf %308 : vector<32x16xf32> to vector<32x16xbf16>
      %c1_177 = arith.constant 1 : index
      %c0_178 = arith.constant 0 : index
      %c0_179 = arith.constant 0 : index
      %310 = vector.load %arg18[%c1_177, %c0_178, %c0_179] : memref<4x32x16xbf16, #tpu.memory_space<vmem>>, vector<1x32x16xbf16>
      %311 = vector.shape_cast %310 : vector<1x32x16xbf16> to vector<32x16xbf16>
      %312 = vector.shape_cast %309 : vector<32x16xbf16> to vector<1x32x16xbf16>
      tpu.vector_store %arg18[%c1_177, %c0_178, %c0_179], %312 {strides = array<i32>} : memref<4x32x16xbf16, #tpu.memory_space<vmem>>, vector<1x32x16xbf16>,
      %313 = vector.extract_strided_slice %297 {offsets = [0, 32], sizes = [16, 32], strides = [1, 1]} : vector<16x128xf32> to vector<16x32xf32>
      %314 = arith.truncf %313 : vector<16x32xf32> to vector<16x32xbf16>
      %c1_180 = arith.constant 1 : index
      %c0_181 = arith.constant 0 : index
      %c0_182 = arith.constant 0 : index
      %315 = vector.load %arg19[%c1_180, %c0_181, %c0_182] : memref<4x16x32xbf16, #tpu.memory_space<vmem>>, vector<1x16x32xbf16>
      %316 = vector.shape_cast %315 : vector<1x16x32xbf16> to vector<16x32xbf16>
      %317 = vector.shape_cast %314 : vector<16x32xbf16> to vector<1x16x32xbf16>
      tpu.vector_store %arg19[%c1_180, %c0_181, %c0_182], %317 {strides = array<i32>} : memref<4x16x32xbf16, #tpu.memory_space<vmem>>, vector<1x16x32xbf16>,
      %318 = vector.extract_strided_slice %296 {offsets = [64, 0], sizes = [32, 16], strides = [1, 1]} : vector<128x16xf32> to vector<32x16xf32>
      %319 = arith.truncf %318 : vector<32x16xf32> to vector<32x16xbf16>
      %c2_183 = arith.constant 2 : index
      %c0_184 = arith.constant 0 : index
      %c0_185 = arith.constant 0 : index
      %320 = vector.load %arg18[%c2_183, %c0_184, %c0_185] : memref<4x32x16xbf16, #tpu.memory_space<vmem>>, vector<1x32x16xbf16>
      %321 = vector.shape_cast %320 : vector<1x32x16xbf16> to vector<32x16xbf16>
      %322 = vector.shape_cast %319 : vector<32x16xbf16> to vector<1x32x16xbf16>
      tpu.vector_store %arg18[%c2_183, %c0_184, %c0_185], %322 {strides = array<i32>} : memref<4x32x16xbf16, #tpu.memory_space<vmem>>, vector<1x32x16xbf16>,
      %323 = vector.extract_strided_slice %297 {offsets = [0, 64], sizes = [16, 32], strides = [1, 1]} : vector<16x128xf32> to vector<16x32xf32>
      %324 = arith.truncf %323 : vector<16x32xf32> to vector<16x32xbf16>
      %c2_186 = arith.constant 2 : index
      %c0_187 = arith.constant 0 : index
      %c0_188 = arith.constant 0 : index
      %325 = vector.load %arg19[%c2_186, %c0_187, %c0_188] : memref<4x16x32xbf16, #tpu.memory_space<vmem>>, vector<1x16x32xbf16>
      %326 = vector.shape_cast %325 : vector<1x16x32xbf16> to vector<16x32xbf16>
      %327 = vector.shape_cast %324 : vector<16x32xbf16> to vector<1x16x32xbf16>
      tpu.vector_store %arg19[%c2_186, %c0_187, %c0_188], %327 {strides = array<i32>} : memref<4x16x32xbf16, #tpu.memory_space<vmem>>, vector<1x16x32xbf16>,
      %328 = vector.extract_strided_slice %296 {offsets = [96, 0], sizes = [32, 16], strides = [1, 1]} : vector<128x16xf32> to vector<32x16xf32>
      %329 = arith.truncf %328 : vector<32x16xf32> to vector<32x16xbf16>
      %c3_189 = arith.constant 3 : index
      %c0_190 = arith.constant 0 : index
      %c0_191 = arith.constant 0 : index
      %330 = vector.load %arg18[%c3_189, %c0_190, %c0_191] : memref<4x32x16xbf16, #tpu.memory_space<vmem>>, vector<1x32x16xbf16>
      %331 = vector.shape_cast %330 : vector<1x32x16xbf16> to vector<32x16xbf16>
      %332 = vector.shape_cast %329 : vector<32x16xbf16> to vector<1x32x16xbf16>
      tpu.vector_store %arg18[%c3_189, %c0_190, %c0_191], %332 {strides = array<i32>} : memref<4x32x16xbf16, #tpu.memory_space<vmem>>, vector<1x32x16xbf16>,
      %333 = vector.extract_strided_slice %297 {offsets = [0, 96], sizes = [16, 32], strides = [1, 1]} : vector<16x128xf32> to vector<16x32xf32>
      %334 = arith.truncf %333 : vector<16x32xf32> to vector<16x32xbf16>
      %c3_192 = arith.constant 3 : index
      %c0_193 = arith.constant 0 : index
      %c0_194 = arith.constant 0 : index
      %335 = vector.load %arg19[%c3_192, %c0_193, %c0_194] : memref<4x16x32xbf16, #tpu.memory_space<vmem>>, vector<1x16x32xbf16>
      %336 = vector.shape_cast %335 : vector<1x16x32xbf16> to vector<16x32xbf16>
      %337 = vector.shape_cast %334 : vector<16x32xbf16> to vector<1x16x32xbf16>
      tpu.vector_store %arg19[%c3_192, %c0_193, %c0_194], %337 {strides = array<i32>} : memref<4x16x32xbf16, #tpu.memory_space<vmem>>, vector<1x16x32xbf16>,
    } else {
    }
    %c0 = arith.constant 0 : index
    %c0_1 = arith.constant 0 : index
    %c0_2 = arith.constant 0 : index
    %3 = vector.load %arg3[%c0, %c0_1, %c0_2] : memref<1x8x128xf32, #tpu.memory_space<vmem>>, vector<1x8x128xf32>
    %4 = vector.shape_cast %3 : vector<1x8x128xf32> to vector<8x128xf32>
    %cst = arith.constant dense<0.000000e+00> : vector<8xf32>
    %5 = vector.multi_reduction <add>, %4, %cst [1] : vector<8x128xf32> to vector<8xf32>
    %6 = vector.shape_cast %5 : vector<8xf32> to vector<8x1xf32>
    %cst_3 = arith.constant 1.280000e+02 : f32
    %7 = vector.broadcast %cst_3 : f32 to vector<8x1xf32>
    %8 = arith.divf %6, %7 : vector<8x1xf32>
    %9 = vector.broadcast %8 : vector<8x1xf32> to vector<8x128xf32>
    %10 = arith.subf %4, %9 : vector<8x128xf32>
    %11 = arith.mulf %10, %10 : vector<8x128xf32>
    %cst_4 = arith.constant dense<0.000000e+00> : vector<8xf32>
    %12 = vector.multi_reduction <add>, %11, %cst_4 [1] : vector<8x128xf32> to vector<8xf32>
    %13 = vector.shape_cast %12 : vector<8xf32> to vector<8x1xf32>
    %cst_5 = arith.constant 1.280000e+02 : f32
    %14 = vector.broadcast %cst_5 : f32 to vector<8x1xf32>
    %15 = arith.divf %13, %14 : vector<8x1xf32>
    %16 = vector.broadcast %8 : vector<8x1xf32> to vector<8x128xf32>
    %17 = arith.subf %4, %16 : vector<8x128xf32>
    %cst_6 = arith.constant 9.99999974E-6 : f32
    %18 = vector.broadcast %cst_6 : f32 to vector<8x1xf32>
    %19 = arith.addf %15, %18 : vector<8x1xf32>
    %20 = math.rsqrt %19 : vector<8x1xf32>
    %21 = vector.broadcast %20 : vector<8x1xf32> to vector<8x128xf32>
    %22 = arith.mulf %17, %21 : vector<8x128xf32>
    %c0_7 = arith.constant 0 : index
    %c0_8 = arith.constant 0 : index
    %23 = vector.load %arg4[%c0_7, %c0_8] : memref<1x128xf32, #tpu.memory_space<vmem>>, vector<1x128xf32>
    %24 = vector.broadcast %23 : vector<1x128xf32> to vector<8x128xf32>
    %25 = arith.mulf %22, %24 : vector<8x128xf32>
    %c0_9 = arith.constant 0 : index
    %c0_10 = arith.constant 0 : index
    %26 = vector.load %arg5[%c0_9, %c0_10] : memref<1x128xf32, #tpu.memory_space<vmem>>, vector<1x128xf32>
    %27 = vector.broadcast %26 : vector<1x128xf32> to vector<8x128xf32>
    %28 = arith.addf %25, %27 : vector<8x128xf32>
    %29 = arith.truncf %28 : vector<8x128xf32> to vector<8x128xbf16>
    %c0_11 = arith.constant 0 : index
    %c0_12 = arith.constant 0 : index
    %30 = vector.load %arg7[%c0_11, %c0_12] : memref<128x128xbf16, #tpu.memory_space<vmem>>, vector<128x128xbf16>
    %cst_13 = arith.constant dense<0.000000e+00> : vector<8x128xf32>
    %31 = tpu.matmul %29, %30, %cst_13 {dimension_numbers = #tpu.dot_dimension_numbers<[1], [0], [0], [1], [0, 0, 1, 1], [], []>} : vector<8x128xbf16>, vector<128x128xbf16>, vector<8x128xf32> -> vector<8x128xf32>
    %32 = arith.truncf %31 : vector<8x128xf32> to vector<8x128xbf16>
    %33 = vector.extract_strided_slice %32 {offsets = [0, 0], sizes = [8, 32], strides = [1, 1]} : vector<8x128xbf16> to vector<8x32xbf16>
    %c0_14 = arith.constant 0 : index
    %c0_15 = arith.constant 0 : index
    %c0_16 = arith.constant 0 : index
    %34 = vector.load %arg16[%c0_14, %c0_15, %c0_16] : memref<4x32x16xbf16, #tpu.memory_space<vmem>>, vector<1x32x16xbf16>
    %35 = vector.shape_cast %34 : vector<1x32x16xbf16> to vector<32x16xbf16>
    %cst_17 = arith.constant dense<0.000000e+00> : vector<8x16xf32>
    %36 = tpu.matmul %33, %35, %cst_17 {dimension_numbers = #tpu.dot_dimension_numbers<[1], [0], [0], [1], [0, 0, 1, 1], [], []>} : vector<8x32xbf16>, vector<32x16xbf16>, vector<8x16xf32> -> vector<8x16xf32>
    %cst_18 = arith.constant dense<0xFF800000> : vector<8xf32>
    %37 = vector.multi_reduction <maximumf>, %36, %cst_18 [1] : vector<8x16xf32> to vector<8xf32>
    %38 = vector.shape_cast %37 : vector<8xf32> to vector<8x1xf32>
    %39 = vector.broadcast %38 : vector<8x1xf32> to vector<8x16xf32>
    %40 = arith.subf %36, %39 : vector<8x16xf32>
    %41 = math.exp %40 : vector<8x16xf32>
    %cst_19 = arith.constant dense<0.000000e+00> : vector<8xf32>
    %42 = vector.multi_reduction <add>, %41, %cst_19 [1] : vector<8x16xf32> to vector<8xf32>
    %43 = vector.shape_cast %42 : vector<8xf32> to vector<8x1xf32>
    %44 = tpu.reciprocal %43 {approx = true} : vector<8x1xf32> -> vector<8x1xf32>
    %45 = vector.broadcast %44 : vector<8x1xf32> to vector<8x16xf32>
    %46 = arith.mulf %41, %45 : vector<8x16xf32>
    %47 = arith.truncf %46 : vector<8x16xf32> to vector<8x16xbf16>
    %c0_20 = arith.constant 0 : index
    %c0_21 = arith.constant 0 : index
    %c0_22 = arith.constant 0 : index
    %48 = vector.load %arg17[%c0_20, %c0_21, %c0_22] : memref<4x16x32xbf16, #tpu.memory_space<vmem>>, vector<1x16x32xbf16>
    %49 = vector.shape_cast %48 : vector<1x16x32xbf16> to vector<16x32xbf16>
    %cst_23 = arith.constant dense<0.000000e+00> : vector<8x32xf32>
    %50 = tpu.matmul %47, %49, %cst_23 {dimension_numbers = #tpu.dot_dimension_numbers<[1], [0], [0], [1], [0, 0, 1, 1], [], []>} : vector<8x16xbf16>, vector<16x32xbf16>, vector<8x32xf32> -> vector<8x32xf32>
    %51 = arith.truncf %50 : vector<8x32xf32> to vector<8x32xbf16>
    %c0_24 = arith.constant 0 : index
    %c0_25 = arith.constant 0 : index
    %52 = vector.load %arg20[%c0_24, %c0_25] : memref<8x128xbf16, #tpu.memory_space<vmem>>, vector<8x32xbf16>
    tpu.vector_store %arg20[%c0_24, %c0_25], %51 {strides = array<i32>} : memref<8x128xbf16, #tpu.memory_space<vmem>>, vector<8x32xbf16>,
    %53 = vector.extract_strided_slice %32 {offsets = [0, 32], sizes = [8, 32], strides = [1, 1]} : vector<8x128xbf16> to vector<8x32xbf16>
    %c1 = arith.constant 1 : index
    %c0_26 = arith.constant 0 : index
    %c0_27 = arith.constant 0 : index
    %54 = vector.load %arg16[%c1, %c0_26, %c0_27] : memref<4x32x16xbf16, #tpu.memory_space<vmem>>, vector<1x32x16xbf16>
    %55 = vector.shape_cast %54 : vector<1x32x16xbf16> to vector<32x16xbf16>
    %cst_28 = arith.constant dense<0.000000e+00> : vector<8x16xf32>
    %56 = tpu.matmul %53, %55, %cst_28 {dimension_numbers = #tpu.dot_dimension_numbers<[1], [0], [0], [1], [0, 0, 1, 1], [], []>} : vector<8x32xbf16>, vector<32x16xbf16>, vector<8x16xf32> -> vector<8x16xf32>
    %cst_29 = arith.constant dense<0xFF800000> : vector<8xf32>
    %57 = vector.multi_reduction <maximumf>, %56, %cst_29 [1] : vector<8x16xf32> to vector<8xf32>
    %58 = vector.shape_cast %57 : vector<8xf32> to vector<8x1xf32>
    %59 = vector.broadcast %58 : vector<8x1xf32> to vector<8x16xf32>
    %60 = arith.subf %56, %59 : vector<8x16xf32>
    %61 = math.exp %60 : vector<8x16xf32>
    %cst_30 = arith.constant dense<0.000000e+00> : vector<8xf32>
    %62 = vector.multi_reduction <add>, %61, %cst_30 [1] : vector<8x16xf32> to vector<8xf32>
    %63 = vector.shape_cast %62 : vector<8xf32> to vector<8x1xf32>
    %64 = tpu.reciprocal %63 {approx = true} : vector<8x1xf32> -> vector<8x1xf32>
    %65 = vector.broadcast %64 : vector<8x1xf32> to vector<8x16xf32>
    %66 = arith.mulf %61, %65 : vector<8x16xf32>
    %67 = arith.truncf %66 : vector<8x16xf32> to vector<8x16xbf16>
    %c1_31 = arith.constant 1 : index
    %c0_32 = arith.constant 0 : index
    %c0_33 = arith.constant 0 : index
    %68 = vector.load %arg17[%c1_31, %c0_32, %c0_33] : memref<4x16x32xbf16, #tpu.memory_space<vmem>>, vector<1x16x32xbf16>
    %69 = vector.shape_cast %68 : vector<1x16x32xbf16> to vector<16x32xbf16>
    %cst_34 = arith.constant dense<0.000000e+00> : vector<8x32xf32>
    %70 = tpu.matmul %67, %69, %cst_34 {dimension_numbers = #tpu.dot_dimension_numbers<[1], [0], [0], [1], [0, 0, 1, 1], [], []>} : vector<8x16xbf16>, vector<16x32xbf16>, vector<8x32xf32> -> vector<8x32xf32>
    %71 = arith.truncf %70 : vector<8x32xf32> to vector<8x32xbf16>
    %c0_35 = arith.constant 0 : index
    %c32 = arith.constant 32 : index
    %72 = vector.load %arg20[%c0_35, %c32] : memref<8x128xbf16, #tpu.memory_space<vmem>>, vector<8x32xbf16>
    tpu.vector_store %arg20[%c0_35, %c32], %71 {strides = array<i32>} : memref<8x128xbf16, #tpu.memory_space<vmem>>, vector<8x32xbf16>,
    %73 = vector.extract_strided_slice %32 {offsets = [0, 64], sizes = [8, 32], strides = [1, 1]} : vector<8x128xbf16> to vector<8x32xbf16>
    %c2 = arith.constant 2 : index
    %c0_36 = arith.constant 0 : index
    %c0_37 = arith.constant 0 : index
    %74 = vector.load %arg16[%c2, %c0_36, %c0_37] : memref<4x32x16xbf16, #tpu.memory_space<vmem>>, vector<1x32x16xbf16>
    %75 = vector.shape_cast %74 : vector<1x32x16xbf16> to vector<32x16xbf16>
    %cst_38 = arith.constant dense<0.000000e+00> : vector<8x16xf32>
    %76 = tpu.matmul %73, %75, %cst_38 {dimension_numbers = #tpu.dot_dimension_numbers<[1], [0], [0], [1], [0, 0, 1, 1], [], []>} : vector<8x32xbf16>, vector<32x16xbf16>, vector<8x16xf32> -> vector<8x16xf32>
    %cst_39 = arith.constant dense<0xFF800000> : vector<8xf32>
    %77 = vector.multi_reduction <maximumf>, %76, %cst_39 [1] : vector<8x16xf32> to vector<8xf32>
    %78 = vector.shape_cast %77 : vector<8xf32> to vector<8x1xf32>
    %79 = vector.broadcast %78 : vector<8x1xf32> to vector<8x16xf32>
    %80 = arith.subf %76, %79 : vector<8x16xf32>
    %81 = math.exp %80 : vector<8x16xf32>
    %cst_40 = arith.constant dense<0.000000e+00> : vector<8xf32>
    %82 = vector.multi_reduction <add>, %81, %cst_40 [1] : vector<8x16xf32> to vector<8xf32>
    %83 = vector.shape_cast %82 : vector<8xf32> to vector<8x1xf32>
    %84 = tpu.reciprocal %83 {approx = true} : vector<8x1xf32> -> vector<8x1xf32>
    %85 = vector.broadcast %84 : vector<8x1xf32> to vector<8x16xf32>
    %86 = arith.mulf %81, %85 : vector<8x16xf32>
    %87 = arith.truncf %86 : vector<8x16xf32> to vector<8x16xbf16>
    %c2_41 = arith.constant 2 : index
    %c0_42 = arith.constant 0 : index
    %c0_43 = arith.constant 0 : index
    %88 = vector.load %arg17[%c2_41, %c0_42, %c0_43] : memref<4x16x32xbf16, #tpu.memory_space<vmem>>, vector<1x16x32xbf16>
    %89 = vector.shape_cast %88 : vector<1x16x32xbf16> to vector<16x32xbf16>
    %cst_44 = arith.constant dense<0.000000e+00> : vector<8x32xf32>
    %90 = tpu.matmul %87, %89, %cst_44 {dimension_numbers = #tpu.dot_dimension_numbers<[1], [0], [0], [1], [0, 0, 1, 1], [], []>} : vector<8x16xbf16>, vector<16x32xbf16>, vector<8x32xf32> -> vector<8x32xf32>
    %91 = arith.truncf %90 : vector<8x32xf32> to vector<8x32xbf16>
    %c0_45 = arith.constant 0 : index
    %c64 = arith.constant 64 : index
    %92 = vector.load %arg20[%c0_45, %c64] : memref<8x128xbf16, #tpu.memory_space<vmem>>, vector<8x32xbf16>
    tpu.vector_store %arg20[%c0_45, %c64], %91 {strides = array<i32>} : memref<8x128xbf16, #tpu.memory_space<vmem>>, vector<8x32xbf16>,
    %93 = vector.extract_strided_slice %32 {offsets = [0, 96], sizes = [8, 32], strides = [1, 1]} : vector<8x128xbf16> to vector<8x32xbf16>
    %c3 = arith.constant 3 : index
    %c0_46 = arith.constant 0 : index
    %c0_47 = arith.constant 0 : index
    %94 = vector.load %arg16[%c3, %c0_46, %c0_47] : memref<4x32x16xbf16, #tpu.memory_space<vmem>>, vector<1x32x16xbf16>
    %95 = vector.shape_cast %94 : vector<1x32x16xbf16> to vector<32x16xbf16>
    %cst_48 = arith.constant dense<0.000000e+00> : vector<8x16xf32>
    %96 = tpu.matmul %93, %95, %cst_48 {dimension_numbers = #tpu.dot_dimension_numbers<[1], [0], [0], [1], [0, 0, 1, 1], [], []>} : vector<8x32xbf16>, vector<32x16xbf16>, vector<8x16xf32> -> vector<8x16xf32>
    %cst_49 = arith.constant dense<0xFF800000> : vector<8xf32>
    %97 = vector.multi_reduction <maximumf>, %96, %cst_49 [1] : vector<8x16xf32> to vector<8xf32>
    %98 = vector.shape_cast %97 : vector<8xf32> to vector<8x1xf32>
    %99 = vector.broadcast %98 : vector<8x1xf32> to vector<8x16xf32>
    %100 = arith.subf %96, %99 : vector<8x16xf32>
    %101 = math.exp %100 : vector<8x16xf32>
    %cst_50 = arith.constant dense<0.000000e+00> : vector<8xf32>
    %102 = vector.multi_reduction <add>, %101, %cst_50 [1] : vector<8x16xf32> to vector<8xf32>
    %103 = vector.shape_cast %102 : vector<8xf32> to vector<8x1xf32>
    %104 = tpu.reciprocal %103 {approx = true} : vector<8x1xf32> -> vector<8x1xf32>
    %105 = vector.broadcast %104 : vector<8x1xf32> to vector<8x16xf32>
    %106 = arith.mulf %101, %105 : vector<8x16xf32>
    %107 = arith.truncf %106 : vector<8x16xf32> to vector<8x16xbf16>
    %c3_51 = arith.constant 3 : index
    %c0_52 = arith.constant 0 : index
    %c0_53 = arith.constant 0 : index
    %108 = vector.load %arg17[%c3_51, %c0_52, %c0_53] : memref<4x16x32xbf16, #tpu.memory_space<vmem>>, vector<1x16x32xbf16>
    %109 = vector.shape_cast %108 : vector<1x16x32xbf16> to vector<16x32xbf16>
    %cst_54 = arith.constant dense<0.000000e+00> : vector<8x32xf32>
    %110 = tpu.matmul %107, %109, %cst_54 {dimension_numbers = #tpu.dot_dimension_numbers<[1], [0], [0], [1], [0, 0, 1, 1], [], []>} : vector<8x16xbf16>, vector<16x32xbf16>, vector<8x32xf32> -> vector<8x32xf32>
    %111 = arith.truncf %110 : vector<8x32xf32> to vector<8x32xbf16>
    %c0_55 = arith.constant 0 : index
    %c96 = arith.constant 96 : index
    %112 = vector.load %arg20[%c0_55, %c96] : memref<8x128xbf16, #tpu.memory_space<vmem>>, vector<8x32xbf16>
    tpu.vector_store %arg20[%c0_55, %c96], %111 {strides = array<i32>} : memref<8x128xbf16, #tpu.memory_space<vmem>>, vector<8x32xbf16>,
    %c0_56 = arith.constant 0 : index
    %c0_57 = arith.constant 0 : index
    %113 = vector.load %arg20[%c0_56, %c0_57] : memref<8x128xbf16, #tpu.memory_space<vmem>>, vector<8x128xbf16>
    %c0_58 = arith.constant 0 : index
    %c0_59 = arith.constant 0 : index
    %114 = vector.load %arg8[%c0_58, %c0_59] : memref<128x128xbf16, #tpu.memory_space<vmem>>, vector<128x128xbf16>
    %cst_60 = arith.constant dense<0.000000e+00> : vector<8x128xf32>
    %115 = tpu.matmul %113, %114, %cst_60 {dimension_numbers = #tpu.dot_dimension_numbers<[1], [0], [0], [1], [0, 0, 1, 1], [], []>} : vector<8x128xbf16>, vector<128x128xbf16>, vector<8x128xf32> -> vector<8x128xf32>
    %c0_61 = arith.constant 0 : index
    %c0_62 = arith.constant 0 : index
    %116 = vector.load %arg9[%c0_61, %c0_62] : memref<1x128xf32, #tpu.memory_space<vmem>>, vector<1x128xf32>
    %117 = vector.broadcast %116 : vector<1x128xf32> to vector<8x128xf32>
    %118 = arith.addf %115, %117 : vector<8x128xf32>
    %c0_63 = arith.constant 0 : index
    %c0_64 = arith.constant 0 : index
    %c0_65 = arith.constant 0 : index
    %119 = vector.load %arg14[%c0_63, %c0_64, %c0_65] : memref<1x8x128xf32, #tpu.memory_space<vmem>>, vector<1x8x128xf32>
    %120 = vector.shape_cast %119 : vector<1x8x128xf32> to vector<8x128xf32>
    %121 = vector.shape_cast %118 : vector<8x128xf32> to vector<1x8x128xf32>
    tpu.vector_store %arg14[%c0_63, %c0_64, %c0_65], %121 {strides = array<i32>} : memref<1x8x128xf32, #tpu.memory_space<vmem>>, vector<1x8x128xf32>,
    %c8_i32 = arith.constant 8 : i32
    %122 = arith.muli %arg1, %c8_i32 : i32
    %123 = tpu.assume_multiple %122, 8 : i32
    %c0_66 = arith.constant 0 : index
    %124 = arith.index_cast %123 : i32 to index
    %c0_67 = arith.constant 0 : index
    %125 = vector.load %arg2[%c0_66, %124, %c0_67] : memref<1x16x128xf32, #tpu.memory_space<vmem>>, vector<1x8x128xf32>
    %126 = vector.shape_cast %125 : vector<1x8x128xf32> to vector<8x128xf32>
    %127 = arith.truncf %126 : vector<8x128xf32> to vector<8x128xbf16>
    %c0_68 = arith.constant 0 : index
    %c0_69 = arith.constant 0 : index
    %128 = vector.load %arg11[%c0_68, %c0_69] : memref<128x128xbf16, #tpu.memory_space<vmem>>, vector<128x128xbf16>
    %cst_70 = arith.constant dense<0.000000e+00> : vector<8x128xf32>
    %129 = tpu.matmul %127, %128, %cst_70 {dimension_numbers = #tpu.dot_dimension_numbers<[1], [0], [0], [1], [0, 0, 1, 1], [], []>} : vector<8x128xbf16>, vector<128x128xbf16>, vector<8x128xf32> -> vector<8x128xf32>
    %130 = arith.truncf %129 : vector<8x128xf32> to vector<8x128xbf16>
    %131 = vector.extract_strided_slice %130 {offsets = [0, 0], sizes = [8, 32], strides = [1, 1]} : vector<8x128xbf16> to vector<8x32xbf16>
    %c0_71 = arith.constant 0 : index
    %c0_72 = arith.constant 0 : index
    %c0_73 = arith.constant 0 : index
    %132 = vector.load %arg18[%c0_71, %c0_72, %c0_73] : memref<4x32x16xbf16, #tpu.memory_space<vmem>>, vector<1x32x16xbf16>
    %133 = vector.shape_cast %132 : vector<1x32x16xbf16> to vector<32x16xbf16>
    %cst_74 = arith.constant dense<0.000000e+00> : vector<8x16xf32>
    %134 = tpu.matmul %131, %133, %cst_74 {dimension_numbers = #tpu.dot_dimension_numbers<[1], [0], [0], [1], [0, 0, 1, 1], [], []>} : vector<8x32xbf16>, vector<32x16xbf16>, vector<8x16xf32> -> vector<8x16xf32>
    %cst_75 = arith.constant dense<0xFF800000> : vector<8xf32>
    %135 = vector.multi_reduction <maximumf>, %134, %cst_75 [1] : vector<8x16xf32> to vector<8xf32>
    %136 = vector.shape_cast %135 : vector<8xf32> to vector<8x1xf32>
    %137 = vector.broadcast %136 : vector<8x1xf32> to vector<8x16xf32>
    %138 = arith.subf %134, %137 : vector<8x16xf32>
    %139 = math.exp %138 : vector<8x16xf32>
    %cst_76 = arith.constant dense<0.000000e+00> : vector<8xf32>
    %140 = vector.multi_reduction <add>, %139, %cst_76 [1] : vector<8x16xf32> to vector<8xf32>
    %141 = vector.shape_cast %140 : vector<8xf32> to vector<8x1xf32>
    %142 = tpu.reciprocal %141 {approx = true} : vector<8x1xf32> -> vector<8x1xf32>
    %143 = vector.broadcast %142 : vector<8x1xf32> to vector<8x16xf32>
    %144 = arith.mulf %139, %143 : vector<8x16xf32>
    %145 = arith.truncf %144 : vector<8x16xf32> to vector<8x16xbf16>
    %c0_77 = arith.constant 0 : index
    %c0_78 = arith.constant 0 : index
    %c0_79 = arith.constant 0 : index
    %146 = vector.load %arg19[%c0_77, %c0_78, %c0_79] : memref<4x16x32xbf16, #tpu.memory_space<vmem>>, vector<1x16x32xbf16>
    %147 = vector.shape_cast %146 : vector<1x16x32xbf16> to vector<16x32xbf16>
    %cst_80 = arith.constant dense<0.000000e+00> : vector<8x32xf32>
    %148 = tpu.matmul %145, %147, %cst_80 {dimension_numbers = #tpu.dot_dimension_numbers<[1], [0], [0], [1], [0, 0, 1, 1], [], []>} : vector<8x16xbf16>, vector<16x32xbf16>, vector<8x32xf32> -> vector<8x32xf32>
    %149 = arith.truncf %148 : vector<8x32xf32> to vector<8x32xbf16>
    %c0_81 = arith.constant 0 : index
    %c0_82 = arith.constant 0 : index
    %150 = vector.load %arg20[%c0_81, %c0_82] : memref<8x128xbf16, #tpu.memory_space<vmem>>, vector<8x32xbf16>
    tpu.vector_store %arg20[%c0_81, %c0_82], %149 {strides = array<i32>} : memref<8x128xbf16, #tpu.memory_space<vmem>>, vector<8x32xbf16>,
    %151 = vector.extract_strided_slice %130 {offsets = [0, 32], sizes = [8, 32], strides = [1, 1]} : vector<8x128xbf16> to vector<8x32xbf16>
    %c1_83 = arith.constant 1 : index
    %c0_84 = arith.constant 0 : index
    %c0_85 = arith.constant 0 : index
    %152 = vector.load %arg18[%c1_83, %c0_84, %c0_85] : memref<4x32x16xbf16, #tpu.memory_space<vmem>>, vector<1x32x16xbf16>
    %153 = vector.shape_cast %152 : vector<1x32x16xbf16> to vector<32x16xbf16>
    %cst_86 = arith.constant dense<0.000000e+00> : vector<8x16xf32>
    %154 = tpu.matmul %151, %153, %cst_86 {dimension_numbers = #tpu.dot_dimension_numbers<[1], [0], [0], [1], [0, 0, 1, 1], [], []>} : vector<8x32xbf16>, vector<32x16xbf16>, vector<8x16xf32> -> vector<8x16xf32>
    %cst_87 = arith.constant dense<0xFF800000> : vector<8xf32>
    %155 = vector.multi_reduction <maximumf>, %154, %cst_87 [1] : vector<8x16xf32> to vector<8xf32>
    %156 = vector.shape_cast %155 : vector<8xf32> to vector<8x1xf32>
    %157 = vector.broadcast %156 : vector<8x1xf32> to vector<8x16xf32>
    %158 = arith.subf %154, %157 : vector<8x16xf32>
    %159 = math.exp %158 : vector<8x16xf32>
    %cst_88 = arith.constant dense<0.000000e+00> : vector<8xf32>
    %160 = vector.multi_reduction <add>, %159, %cst_88 [1] : vector<8x16xf32> to vector<8xf32>
    %161 = vector.shape_cast %160 : vector<8xf32> to vector<8x1xf32>
    %162 = tpu.reciprocal %161 {approx = true} : vector<8x1xf32> -> vector<8x1xf32>
    %163 = vector.broadcast %162 : vector<8x1xf32> to vector<8x16xf32>
    %164 = arith.mulf %159, %163 : vector<8x16xf32>
    %165 = arith.truncf %164 : vector<8x16xf32> to vector<8x16xbf16>
    %c1_89 = arith.constant 1 : index
    %c0_90 = arith.constant 0 : index
    %c0_91 = arith.constant 0 : index
    %166 = vector.load %arg19[%c1_89, %c0_90, %c0_91] : memref<4x16x32xbf16, #tpu.memory_space<vmem>>, vector<1x16x32xbf16>
    %167 = vector.shape_cast %166 : vector<1x16x32xbf16> to vector<16x32xbf16>
    %cst_92 = arith.constant dense<0.000000e+00> : vector<8x32xf32>
    %168 = tpu.matmul %165, %167, %cst_92 {dimension_numbers = #tpu.dot_dimension_numbers<[1], [0], [0], [1], [0, 0, 1, 1], [], []>} : vector<8x16xbf16>, vector<16x32xbf16>, vector<8x32xf32> -> vector<8x32xf32>
    %169 = arith.truncf %168 : vector<8x32xf32> to vector<8x32xbf16>
    %c0_93 = arith.constant 0 : index
    %c32_94 = arith.constant 32 : index
    %170 = vector.load %arg20[%c0_93, %c32_94] : memref<8x128xbf16, #tpu.memory_space<vmem>>, vector<8x32xbf16>
    tpu.vector_store %arg20[%c0_93, %c32_94], %169 {strides = array<i32>} : memref<8x128xbf16, #tpu.memory_space<vmem>>, vector<8x32xbf16>,
    %171 = vector.extract_strided_slice %130 {offsets = [0, 64], sizes = [8, 32], strides = [1, 1]} : vector<8x128xbf16> to vector<8x32xbf16>
    %c2_95 = arith.constant 2 : index
    %c0_96 = arith.constant 0 : index
    %c0_97 = arith.constant 0 : index
    %172 = vector.load %arg18[%c2_95, %c0_96, %c0_97] : memref<4x32x16xbf16, #tpu.memory_space<vmem>>, vector<1x32x16xbf16>
    %173 = vector.shape_cast %172 : vector<1x32x16xbf16> to vector<32x16xbf16>
    %cst_98 = arith.constant dense<0.000000e+00> : vector<8x16xf32>
    %174 = tpu.matmul %171, %173, %cst_98 {dimension_numbers = #tpu.dot_dimension_numbers<[1], [0], [0], [1], [0, 0, 1, 1], [], []>} : vector<8x32xbf16>, vector<32x16xbf16>, vector<8x16xf32> -> vector<8x16xf32>
    %cst_99 = arith.constant dense<0xFF800000> : vector<8xf32>
    %175 = vector.multi_reduction <maximumf>, %174, %cst_99 [1] : vector<8x16xf32> to vector<8xf32>
    %176 = vector.shape_cast %175 : vector<8xf32> to vector<8x1xf32>
    %177 = vector.broadcast %176 : vector<8x1xf32> to vector<8x16xf32>
    %178 = arith.subf %174, %177 : vector<8x16xf32>
    %179 = math.exp %178 : vector<8x16xf32>
    %cst_100 = arith.constant dense<0.000000e+00> : vector<8xf32>
    %180 = vector.multi_reduction <add>, %179, %cst_100 [1] : vector<8x16xf32> to vector<8xf32>
    %181 = vector.shape_cast %180 : vector<8xf32> to vector<8x1xf32>
    %182 = tpu.reciprocal %181 {approx = true} : vector<8x1xf32> -> vector<8x1xf32>
    %183 = vector.broadcast %182 : vector<8x1xf32> to vector<8x16xf32>
    %184 = arith.mulf %179, %183 : vector<8x16xf32>
    %185 = arith.truncf %184 : vector<8x16xf32> to vector<8x16xbf16>
    %c2_101 = arith.constant 2 : index
    %c0_102 = arith.constant 0 : index
    %c0_103 = arith.constant 0 : index
    %186 = vector.load %arg19[%c2_101, %c0_102, %c0_103] : memref<4x16x32xbf16, #tpu.memory_space<vmem>>, vector<1x16x32xbf16>
    %187 = vector.shape_cast %186 : vector<1x16x32xbf16> to vector<16x32xbf16>
    %cst_104 = arith.constant dense<0.000000e+00> : vector<8x32xf32>
    %188 = tpu.matmul %185, %187, %cst_104 {dimension_numbers = #tpu.dot_dimension_numbers<[1], [0], [0], [1], [0, 0, 1, 1], [], []>} : vector<8x16xbf16>, vector<16x32xbf16>, vector<8x32xf32> -> vector<8x32xf32>
    %189 = arith.truncf %188 : vector<8x32xf32> to vector<8x32xbf16>
    %c0_105 = arith.constant 0 : index
    %c64_106 = arith.constant 64 : index
    %190 = vector.load %arg20[%c0_105, %c64_106] : memref<8x128xbf16, #tpu.memory_space<vmem>>, vector<8x32xbf16>
    tpu.vector_store %arg20[%c0_105, %c64_106], %189 {strides = array<i32>} : memref<8x128xbf16, #tpu.memory_space<vmem>>, vector<8x32xbf16>,
    %191 = vector.extract_strided_slice %130 {offsets = [0, 96], sizes = [8, 32], strides = [1, 1]} : vector<8x128xbf16> to vector<8x32xbf16>
    %c3_107 = arith.constant 3 : index
    %c0_108 = arith.constant 0 : index
    %c0_109 = arith.constant 0 : index
    %192 = vector.load %arg18[%c3_107, %c0_108, %c0_109] : memref<4x32x16xbf16, #tpu.memory_space<vmem>>, vector<1x32x16xbf16>
    %193 = vector.shape_cast %192 : vector<1x32x16xbf16> to vector<32x16xbf16>
    %cst_110 = arith.constant dense<0.000000e+00> : vector<8x16xf32>
    %194 = tpu.matmul %191, %193, %cst_110 {dimension_numbers = #tpu.dot_dimension_numbers<[1], [0], [0], [1], [0, 0, 1, 1], [], []>} : vector<8x32xbf16>, vector<32x16xbf16>, vector<8x16xf32> -> vector<8x16xf32>
    %cst_111 = arith.constant dense<0xFF800000> : vector<8xf32>
    %195 = vector.multi_reduction <maximumf>, %194, %cst_111 [1] : vector<8x16xf32> to vector<8xf32>
    %196 = vector.shape_cast %195 : vector<8xf32> to vector<8x1xf32>
    %197 = vector.broadcast %196 : vector<8x1xf32> to vector<8x16xf32>
    %198 = arith.subf %194, %197 : vector<8x16xf32>
    %199 = math.exp %198 : vector<8x16xf32>
    %cst_112 = arith.constant dense<0.000000e+00> : vector<8xf32>
    %200 = vector.multi_reduction <add>, %199, %cst_112 [1] : vector<8x16xf32> to vector<8xf32>
    %201 = vector.shape_cast %200 : vector<8xf32> to vector<8x1xf32>
    %202 = tpu.reciprocal %201 {approx = true} : vector<8x1xf32> -> vector<8x1xf32>
    %203 = vector.broadcast %202 : vector<8x1xf32> to vector<8x16xf32>
    %204 = arith.mulf %199, %203 : vector<8x16xf32>
    %205 = arith.truncf %204 : vector<8x16xf32> to vector<8x16xbf16>
    %c3_113 = arith.constant 3 : index
    %c0_114 = arith.constant 0 : index
    %c0_115 = arith.constant 0 : index
    %206 = vector.load %arg19[%c3_113, %c0_114, %c0_115] : memref<4x16x32xbf16, #tpu.memory_space<vmem>>, vector<1x16x32xbf16>
    %207 = vector.shape_cast %206 : vector<1x16x32xbf16> to vector<16x32xbf16>
    %cst_116 = arith.constant dense<0.000000e+00> : vector<8x32xf32>
    %208 = tpu.matmul %205, %207, %cst_116 {dimension_numbers = #tpu.dot_dimension_numbers<[1], [0], [0], [1], [0, 0, 1, 1], [], []>} : vector<8x16xbf16>, vector<16x32xbf16>, vector<8x32xf32> -> vector<8x32xf32>
    %209 = arith.truncf %208 : vector<8x32xf32> to vector<8x32xbf16>
    %c0_117 = arith.constant 0 : index
    %c96_118 = arith.constant 96 : index
    %210 = vector.load %arg20[%c0_117, %c96_118] : memref<8x128xbf16, #tpu.memory_space<vmem>>, vector<8x32xbf16>
    tpu.vector_store %arg20[%c0_117, %c96_118], %209 {strides = array<i32>} : memref<8x128xbf16, #tpu.memory_space<vmem>>, vector<8x32xbf16>,
    %c0_119 = arith.constant 0 : index
    %c0_120 = arith.constant 0 : index
    %211 = vector.load %arg20[%c0_119, %c0_120] : memref<8x128xbf16, #tpu.memory_space<vmem>>, vector<8x128xbf16>
    %c0_121 = arith.constant 0 : index
    %c0_122 = arith.constant 0 : index
    %212 = vector.load %arg12[%c0_121, %c0_122] : memref<128x128xbf16, #tpu.memory_space<vmem>>, vector<128x128xbf16>
    %cst_123 = arith.constant dense<0.000000e+00> : vector<8x128xf32>
    %213 = tpu.matmul %211, %212, %cst_123 {dimension_numbers = #tpu.dot_dimension_numbers<[1], [0], [0], [1], [0, 0, 1, 1], [], []>} : vector<8x128xbf16>, vector<128x128xbf16>, vector<8x128xf32> -> vector<8x128xf32>
    %c0_124 = arith.constant 0 : index
    %c0_125 = arith.constant 0 : index
    %214 = vector.load %arg13[%c0_124, %c0_125] : memref<1x128xf32, #tpu.memory_space<vmem>>, vector<1x128xf32>
    %215 = vector.broadcast %214 : vector<1x128xf32> to vector<8x128xf32>
    %216 = arith.addf %213, %215 : vector<8x128xf32>
    %c0_126 = arith.constant 0 : index
    %c0_127 = arith.constant 0 : index
    %c0_128 = arith.constant 0 : index
    %217 = vector.load %arg15[%c0_126, %c0_127, %c0_128] : memref<1x8x128xf32, #tpu.memory_space<vmem>>, vector<1x8x128xf32>
    %218 = vector.shape_cast %217 : vector<1x8x128xf32> to vector<8x128xf32>
    %219 = vector.shape_cast %216 : vector<8x128xf32> to vector<1x8x128xf32>
    tpu.vector_store %arg15[%c0_126, %c0_127, %c0_128], %219 {strides = array<i32>} : memref<1x8x128xf32, #tpu.memory_space<vmem>>, vector<1x8x128xf32>,
    return
  }
  func.func @transform_0(%arg0: i32, %arg1: i32) -> (i32, i32, i32) {
    %c1_i32 = arith.constant 1 : i32
    %c0_i32 = arith.constant 0 : i32
    %c0_i32_0 = arith.constant 0 : i32
    return %arg0, %c1_i32, %c0_i32 : i32, i32, i32
  }
  func.func @transform_1(%arg0: i32, %arg1: i32) -> (i32, i32, i32) {
    %c0_i32 = arith.constant 0 : i32
    %c0_i32_0 = arith.constant 0 : i32
    return %arg0, %arg1, %c0_i32 : i32, i32, i32
  }
  func.func @transform_2(%arg0: i32, %arg1: i32) -> (i32, i32) {
    %c0_i32 = arith.constant 0 : i32
    %c0_i32_0 = arith.constant 0 : i32
    %c0_i32_1 = arith.constant 0 : i32
    return %c0_i32, %c0_i32_0 : i32, i32
  }
  func.func @transform_3(%arg0: i32, %arg1: i32) -> (i32, i32) {
    %c0_i32 = arith.constant 0 : i32
    %c0_i32_0 = arith.constant 0 : i32
    %c0_i32_1 = arith.constant 0 : i32
    return %c0_i32, %c0_i32_0 : i32, i32
  }
  func.func @transform_4(%arg0: i32, %arg1: i32) -> (i32, i32) {
    %c0_i32 = arith.constant 0 : i32
    %c0_i32_0 = arith.constant 0 : i32
    %c0_i32_1 = arith.constant 0 : i32
    return %c0_i32, %c0_i32_0 : i32, i32
  }
  func.func @transform_5(%arg0: i32, %arg1: i32) -> (i32, i32) {
    %c0_i32 = arith.constant 0 : i32
    %c0_i32_0 = arith.constant 0 : i32
    %c0_i32_1 = arith.constant 0 : i32
    return %c0_i32, %c0_i32_0 : i32, i32
  }
  func.func @transform_6(%arg0: i32, %arg1: i32) -> (i32, i32) {
    %c0_i32 = arith.constant 0 : i32
    %c0_i32_0 = arith.constant 0 : i32
    %c0_i32_1 = arith.constant 0 : i32
    return %c0_i32, %c0_i32_0 : i32, i32
  }
  func.func @transform_7(%arg0: i32, %arg1: i32) -> (i32, i32) {
    %c0_i32 = arith.constant 0 : i32
    %c0_i32_0 = arith.constant 0 : i32
    %c0_i32_1 = arith.constant 0 : i32
    return %c0_i32, %c0_i32_0 : i32, i32
  }
  func.func @transform_8(%arg0: i32, %arg1: i32) -> (i32, i32) {
    %c0_i32 = arith.constant 0 : i32
    %c0_i32_0 = arith.constant 0 : i32
    %c0_i32_1 = arith.constant 0 : i32
    return %c0_i32, %c0_i32_0 : i32, i32
  }
  func.func @transform_9(%arg0: i32, %arg1: i32) -> (i32, i32) {
    %c0_i32 = arith.constant 0 : i32
    %c0_i32_0 = arith.constant 0 : i32
    %c0_i32_1 = arith.constant 0 : i32
    return %c0_i32, %c0_i32_0 : i32, i32
  }
  func.func @transform_10(%arg0: i32, %arg1: i32) -> (i32, i32) {
    %c0_i32 = arith.constant 0 : i32
    %c0_i32_0 = arith.constant 0 : i32
    %c0_i32_1 = arith.constant 0 : i32
    return %c0_i32, %c0_i32_0 : i32, i32
  }
  func.func @transform_11(%arg0: i32, %arg1: i32) -> (i32, i32) {
    %c0_i32 = arith.constant 0 : i32
    %c0_i32_0 = arith.constant 0 : i32
    %c0_i32_1 = arith.constant 0 : i32
    return %c0_i32, %c0_i32_0 : i32, i32
  }
  func.func @transform_12(%arg0: i32, %arg1: i32) -> (i32, i32, i32) {
    %c0_i32 = arith.constant 0 : i32
    %c0_i32_0 = arith.constant 0 : i32
    return %arg0, %arg1, %c0_i32 : i32, i32, i32
  }
  func.func @transform_13(%arg0: i32, %arg1: i32) -> (i32, i32, i32) {
    %c0_i32 = arith.constant 0 : i32
    %c0_i32_0 = arith.constant 0 : i32
    return %arg0, %arg1, %c0_i32 : i32, i32, i32
  }
}

</mosaic_0001>

<llo_original>
// kernel: tpu_custom_call.1
$region0: #{tpu_custom_call.1}
  #allocation0 [shape = 'u32[]', space=smem, size = 0x4, offset = 0x4, fixed_abs, tag = 'smem constant byte address 0x4 - core index']
  #allocation1 [shape = 'u32[144,128]{1,0:T(1,128)}', space=vmem, size = 0x12000, scoped, tag = 'internal scratch']
  #allocation2 [shape = 'bf16[4,32,16]{2,1,0:T(8,128)(2,1)}', space=vmem, size = 0x8000, scoped, tag = 'scratch operand']
  #allocation3 [shape = 'bf16[4,16,32]{2,1,0:T(8,128)(2,1)}', space=vmem, size = 0x4000, scoped, tag = 'scratch operand']
  #allocation4 [shape = 'bf16[4,32,16]{2,1,0:T(8,128)(2,1)}', space=vmem, size = 0x8000, scoped, tag = 'scratch operand']
  #allocation5 [shape = 'bf16[4,16,32]{2,1,0:T(8,128)(2,1)}', space=vmem, size = 0x4000, scoped, tag = 'scratch operand']
  #allocation6 [shape = 'bf16[8,128]{1,0:T(8,128)(2,1)}', space=vmem, size = 0x800, scoped, tag = 'scratch operand']
  %s0 = inlined_call_operand.hbm [shape: f32[2,32,128], index: 0, kind: input, shape index: {}]
  %s1 = inlined_call_operand.hbm [shape: f32[2,32,128], index: 1, kind: input, shape index: {}]
  %s2 = inlined_call_operand.vmem [shape: f32[1,128], index: 2, kind: input, shape index: {}]
  %s3 = inlined_call_operand.vmem [shape: f32[1,128], index: 3, kind: input, shape index: {}]
  %s4 = inlined_call_operand.hbm [shape: bf16[128,256], index: 4, kind: input, shape index: {}]
  %s5 = inlined_call_operand.hbm [shape: bf16[128,128], index: 5, kind: input, shape index: {}]
  %s6 = inlined_call_operand.hbm [shape: bf16[128,128], index: 6, kind: input, shape index: {}]
  %s7 = inlined_call_operand.vmem [shape: f32[1,128], index: 7, kind: input, shape index: {}]
  %s8 = inlined_call_operand.hbm [shape: bf16[128,256], index: 8, kind: input, shape index: {}]
  %s9 = inlined_call_operand.hbm [shape: bf16[128,128], index: 9, kind: input, shape index: {}]
  %s10 = inlined_call_operand.hbm [shape: bf16[128,128], index: 10, kind: input, shape index: {}]
  %s11 = inlined_call_operand.vmem [shape: f32[1,128], index: 11, kind: input, shape index: {}]
  %s12 = inlined_call_operand.hbm [shape: f32[2,16,128], index: 12, kind: output, shape index: {0}]
  %s13 = inlined_call_operand.hbm [shape: f32[2,16,128], index: 13, kind: output, shape index: {1}]
  %14 = xla_tuple %s12, %s13
  %s15 = sld [smem:[#allocation0]]
  $region125: #{tpu_custom_call.1} parent=0
    _
  %s17 = ssub.s32 1, %s15
  %s18 = scalar_select 0, %s17, %s15
  $region1: #{tpu_custom_call.1} parent=0
    #allocation7 [shape = 'u8[16384]{0}', space=vmem, size = 0x4000, scoped, tag = 'input window, operand 0']
    #allocation8 [shape = 's32[2]{0}', space=sflag, size = 0x8, scoped, tag = 'scoped memory for tpu_custom_call.1']
    #allocation9 [shape = 's32[2]{0}', space=sflag, size = 0x8, scoped, tag = 'scoped memory for tpu_custom_call.1']
    #allocation10 [shape = 'u8[8192]{0}', space=vmem, size = 0x2000, scoped, tag = 'input window, operand 1']
    #allocation11 [shape = 's32[2]{0}', space=sflag, size = 0x8, scoped, tag = 'scoped memory for tpu_custom_call.1']
    #allocation12 [shape = 'u8[65536]{0}', space=vmem, size = 0x10000, scoped, tag = 'input window, operand 4, single buffered']
    #allocation13 [shape = 'u8[32768]{0}', space=vmem, size = 0x8000, scoped, tag = 'input window, operand 5, single buffered']
    #allocation14 [shape = 's32[1]{0}', space=sflag, size = 0x4, scoped, tag = 'scoped memory for tpu_custom_call.1']
    #allocation15 [shape = 'u8[32768]{0}', space=vmem, size = 0x8000, scoped, tag = 'input window, operand 6, single buffered']
    #allocation16 [shape = 'u8[65536]{0}', space=vmem, size = 0x10000, scoped, tag = 'input window, operand 8, single buffered']
    #allocation17 [shape = 's32[1]{0}', space=sflag, size = 0x4, scoped, tag = 'scoped memory for tpu_custom_call.1']
    #allocation18 [shape = 'u8[32768]{0}', space=vmem, size = 0x8000, scoped, tag = 'input window, operand 9, single buffered']
    #allocation19 [shape = 'u8[32768]{0}', space=vmem, size = 0x8000, scoped, tag = 'input window, operand 10, single buffered']
    #allocation20 [shape = 's32[1]{0}', space=sflag, size = 0x4, scoped, tag = 'scoped memory for tpu_custom_call.1']
    #allocation21 [shape = 'u8[8192]{0}', space=vmem, size = 0x2000, scoped, tag = 'output window, operand 0']
    #allocation22 [shape = 'u8[8192]{0}', space=vmem, size = 0x2000, scoped, tag = 'output window, operand 1']
    #allocation23 [shape = 's32[2]{0}', space=sflag, size = 0x8, scoped, tag = 'scoped memory for tpu_custom_call.1']
    %19 = vsyncpa [#allocation8], 0
    %s20 = scalar_lea.sflag [#allocation8], 1
    %21 = vsyncpa %s20, 0
    %22 = vsyncpa [#allocation11], 0
    %s23 = scalar_lea.sflag [#allocation11], 1
    %24 = vsyncpa %s23, 0
    %25 = vsyncpa [#allocation14], 0
    %26 = vsyncpa [#allocation17], 0
    %27 = vsyncpa [#allocation20], 0
    %28 = vsyncpa [#allocation9], 0
    %s29 = scalar_lea.sflag [#allocation9], 1
    %30 = vsyncpa %s29, 0
    %31 = vsyncpa [#allocation23], 0
    %s32 = scalar_lea.sflag [#allocation23], 1
    %33 = vsyncpa %s32, 0
    loop: start=0, step=1, limit=6
    $region2: #{tpu_custom_call.1} parent=1 // loop_pre_header
      _
    $region3: #{tpu_custom_call.1} parent=1 // loop_header
      %s35 = sphi 0, %s39
      %p36 = scmp.ge.s32.totalorder %s35, 6
      %s42 = sphi 0, %s54
      %s43 = sphi 0, %s50
      %s44 = sphi 0, %s42
      %s45 = sphi 0, %s43
      %s46 = sphi 0, %s44
      %s47 = sphi 0, %s45
      %s57 = sphi 0, %s59
      %s60 = sphi 0, %s57
      %s61 = sphi 0, %s60
      %s77 = sphi 0, %s61
      %s85 = sphi 0, %s87
      %s88 = sphi 0, %s85
      %s89 = sphi 0, %s88
      %s105 = sphi 0, %s89
      %s109 = sphi 0, %s109
      %s111 = sphi 0, %s109
      %s112 = sphi 0, %s111
      %s126 = sphi 0, %s112
      %s130 = sphi 0, %s130
      %s132 = sphi 0, %s130
      %s133 = sphi 0, %s132
      %s147 = sphi 0, %s133
      %s151 = sphi 0, %s151
      %s153 = sphi 0, %s151
      %s154 = sphi 0, %s153
      %s168 = sphi 0, %s154
      %s172 = sphi 0, %s172
      %s174 = sphi 0, %s172
      %s175 = sphi 0, %s174
      %s189 = sphi 0, %s175
      %s193 = sphi 0, %s193
      %s195 = sphi 0, %s193
      %s196 = sphi 0, %s195
      %s210 = sphi 0, %s196
      %s214 = sphi 0, %s214
      %s216 = sphi 0, %s214
      %s217 = sphi 0, %s216
      %s231 = sphi 0, %s217
      %s235 = sphi 0, %s235
      %s237 = sphi 0, %s235
      %s238 = sphi 0, %s237
      %s252 = sphi 0, %s238
      %s256 = sphi 0, %s256
      %s258 = sphi 0, %s256
      %s259 = sphi 0, %s258
      %s273 = sphi 0, %s259
      %s277 = sphi 0, %s277
      %s279 = sphi 0, %s277
      %s280 = sphi 0, %s279
      %s294 = sphi 0, %s280
      %s298 = sphi 0, %s298
      %s300 = sphi 0, %s298
      %s301 = sphi 0, %s300
      %s315 = sphi 0, %s301
      %s323 = sphi 0, %s325
      %s326 = sphi 0, %s323
      %s327 = sphi 0, %s326
      %s343 = sphi 0, %s327
      %s351 = sphi 0, %s353
      %s354 = sphi 0, %s351
      %s355 = sphi 0, %s354
      %s371 = sphi 0, %s355
    $region4: #{tpu_custom_call.1} parent=1 // loop_header_branch
      %38 = sbr.rel (%p36) target = $region8
    $region5: #{tpu_custom_call.1} parent=1 // loop_body
      %s40 = ssub.s32 %s35, 1
      %s41 = ssub.s32 %s35, 2
      %s48 = sadd.s32 1, %s43
      %p49 = scmp.ge.s32.totalorder %s48, 2
      %s50 = scalar_select %p49, 0, %s48
      %s51 = sadd.s32 1, %s42
      %s52 = scalar_select %p49, %s51, %s42
      %p53 = scmp.ge.s32.totalorder %s52, 2
      %s54 = scalar_select %p53, 0, %s52
      %s55 = ssub.s32 %s42, %s54
      %p56 = scmp.eq.s32.totalorder %s55, 0
      %s58 = sadd.s32 %s57, 1
      %s59 = scalar_select %p56, %s57, %s58
      %p62 = pneg %p56
      %p63 = scmp.eq.s32.totalorder %s35, 3
      %p64 = por %p62, %p63
      %p65 = scmp.ne.s32.totalorder %s57, %s60
      %p66 = scmp.eq.s32.totalorder %s35, 0
      %p67 = por %p65, %p66
      %p68 = scmp.ne.s32.totalorder %s57, %s60
      %p69 = scmp.eq.s32.totalorder %s40, 3
      %p70 = por %p68, %p69
      %p71 = scmp.ne.s32.totalorder %s60, %s61
      %p72 = scmp.eq.s32.totalorder %s40, 0
      %p73 = por %p71, %p72
      %p74 = scmp.ne.s32.totalorder %s60, %s61
      %p75 = scmp.eq.s32.totalorder %s41, 3
      %p76 = por %p74, %p75
      %p78 = scmp.ne.s32.totalorder %s61, %s77
      %p79 = scmp.eq.s32.totalorder %s41, 0
      %p80 = por %p78, %p79
      %s81 = ssub.s32 %s42, %s54
      %s82 = ssub.s32 %s43, %s50
      %s83 = sor.u32 %s81, %s82
      %p84 = scmp.eq.s32.totalorder %s83, 0
      %s86 = sadd.s32 %s85, 1
      %s87 = scalar_select %p84, %s85, %s86
      %p90 = pneg %p84
      %p91 = scmp.eq.s32.totalorder %s35, 3
      %p92 = por %p90, %p91
      %p93 = scmp.ne.s32.totalorder %s85, %s88
      %p94 = scmp.eq.s32.totalorder %s35, 0
      %p95 = por %p93, %p94
      %p96 = scmp.ne.s32.totalorder %s85, %s88
      %p97 = scmp.eq.s32.totalorder %s40, 3
      %p98 = por %p96, %p97
      %p99 = scmp.ne.s32.totalorder %s88, %s89
      %p100 = scmp.eq.s32.totalorder %s40, 0
      %p101 = por %p99, %p100
      %p102 = scmp.ne.s32.totalorder %s88, %s89
      %p103 = scmp.eq.s32.totalorder %s41, 3
      %p104 = por %p102, %p103
      %p106 = scmp.ne.s32.totalorder %s89, %s105
      %p107 = scmp.eq.s32.totalorder %s41, 0
      %p108 = por %p106, %p107
      %s110 = sadd.s32 %s109, 1
      %p113 = scmp.eq.s32.totalorder %s35, 3
      %p114 = scmp.ne.s32.totalorder %s109, %s111
      %p115 = scmp.eq.s32.totalorder %s35, 0
      %p116 = por %p114, %p115
      %p117 = scmp.ne.s32.totalorder %s109, %s111
      %p118 = scmp.eq.s32.totalorder %s40, 3
      %p119 = por %p117, %p118
      %p120 = scmp.ne.s32.totalorder %s111, %s112
      %p121 = scmp.eq.s32.totalorder %s40, 0
      %p122 = por %p120, %p121
      %p123 = scmp.ne.s32.totalorder %s111, %s112
      %p124 = scmp.eq.s32.totalorder %s41, 3
      %p125 = por %p123, %p124
      %p127 = scmp.ne.s32.totalorder %s112, %s126
      %p128 = scmp.eq.s32.totalorder %s41, 0
      %p129 = por %p127, %p128
      %s131 = sadd.s32 %s130, 1
      %p134 = scmp.eq.s32.totalorder %s35, 3
      %p135 = scmp.ne.s32.totalorder %s130, %s132
      %p136 = scmp.eq.s32.totalorder %s35, 0
      %p137 = por %p135, %p136
      %p138 = scmp.ne.s32.totalorder %s130, %s132
      %p139 = scmp.eq.s32.totalorder %s40, 3
      %p140 = por %p138, %p139
      %p141 = scmp.ne.s32.totalorder %s132, %s133
      %p142 = scmp.eq.s32.totalorder %s40, 0
      %p143 = por %p141, %p142
      %p144 = scmp.ne.s32.totalorder %s132, %s133
      %p145 = scmp.eq.s32.totalorder %s41, 3
      %p146 = por %p144, %p145
      %p148 = scmp.ne.s32.totalorder %s133, %s147
      %p149 = scmp.eq.s32.totalorder %s41, 0
      %p150 = por %p148, %p149
      %s152 = sadd.s32 %s151, 1
      %p155 = scmp.eq.s32.totalorder %s35, 3
      %p156 = scmp.ne.s32.totalorder %s151, %s153
      %p157 = scmp.eq.s32.totalorder %s35, 0
      %p158 = por %p156, %p157
      %p159 = scmp.ne.s32.totalorder %s151, %s153
      %p160 = scmp.eq.s32.totalorder %s40, 3
      %p161 = por %p159, %p160
      %p162 = scmp.ne.s32.totalorder %s153, %s154
      %p163 = scmp.eq.s32.totalorder %s40, 0
      %p164 = por %p162, %p163
      %p165 = scmp.ne.s32.totalorder %s153, %s154
      %p166 = scmp.eq.s32.totalorder %s41, 3
      %p167 = por %p165, %p166
      %p169 = scmp.ne.s32.totalorder %s154, %s168
      %p170 = scmp.eq.s32.totalorder %s41, 0
      %p171 = por %p169, %p170
      %s173 = sadd.s32 %s172, 1
      %p176 = scmp.eq.s32.totalorder %s35, 3
      %p177 = scmp.ne.s32.totalorder %s172, %s174
      %p178 = scmp.eq.s32.totalorder %s35, 0
      %p179 = por %p177, %p178
      %p180 = scmp.ne.s32.totalorder %s172, %s174
      %p181 = scmp.eq.s32.totalorder %s40, 3
      %p182 = por %p180, %p181
      %p183 = scmp.ne.s32.totalorder %s174, %s175
      %p184 = scmp.eq.s32.totalorder %s40, 0
      %p185 = por %p183, %p184
      %p186 = scmp.ne.s32.totalorder %s174, %s175
      %p187 = scmp.eq.s32.totalorder %s41, 3
      %p188 = por %p186, %p187
      %p190 = scmp.ne.s32.totalorder %s175, %s189
      %p191 = scmp.eq.s32.totalorder %s41, 0
      %p192 = por %p190, %p191
      %s194 = sadd.s32 %s193, 1
      %p197 = scmp.eq.s32.totalorder %s35, 3
      %p198 = scmp.ne.s32.totalorder %s193, %s195
      %p199 = scmp.eq.s32.totalorder %s35, 0
      %p200 = por %p198, %p199
      %p201 = scmp.ne.s32.totalorder %s193, %s195
      %p202 = scmp.eq.s32.totalorder %s40, 3
      %p203 = por %p201, %p202
      %p204 = scmp.ne.s32.totalorder %s195, %s196
      %p205 = scmp.eq.s32.totalorder %s40, 0
      %p206 = por %p204, %p205
      %p207 = scmp.ne.s32.totalorder %s195, %s196
      %p208 = scmp.eq.s32.totalorder %s41, 3
      %p209 = por %p207, %p208
      %p211 = scmp.ne.s32.totalorder %s196, %s210
      %p212 = scmp.eq.s32.totalorder %s41, 0
      %p213 = por %p211, %p212
      %s215 = sadd.s32 %s214, 1
      %p218 = scmp.eq.s32.totalorder %s35, 3
      %p219 = scmp.ne.s32.totalorder %s214, %s216
      %p220 = scmp.eq.s32.totalorder %s35, 0
      %p221 = por %p219, %p220
      %p222 = scmp.ne.s32.totalorder %s214, %s216
      %p223 = scmp.eq.s32.totalorder %s40, 3
      %p224 = por %p222, %p223
      %p225 = scmp.ne.s32.totalorder %s216, %s217
      %p226 = scmp.eq.s32.totalorder %s40, 0
      %p227 = por %p225, %p226
      %p228 = scmp.ne.s32.totalorder %s216, %s217
      %p229 = scmp.eq.s32.totalorder %s41, 3
      %p230 = por %p228, %p229
      %p232 = scmp.ne.s32.totalorder %s217, %s231
      %p233 = scmp.eq.s32.totalorder %s41, 0
      %p234 = por %p232, %p233
      %s236 = sadd.s32 %s235, 1
      %p239 = scmp.eq.s32.totalorder %s35, 3
      %p240 = scmp.ne.s32.totalorder %s235, %s237
      %p241 = scmp.eq.s32.totalorder %s35, 0
      %p242 = por %p240, %p241
      %p243 = scmp.ne.s32.totalorder %s235, %s237
      %p244 = scmp.eq.s32.totalorder %s40, 3
      %p245 = por %p243, %p244
      %p246 = scmp.ne.s32.totalorder %s237, %s238
      %p247 = scmp.eq.s32.totalorder %s40, 0
      %p248 = por %p246, %p247
      %p249 = scmp.ne.s32.totalorder %s237, %s238
      %p250 = scmp.eq.s32.totalorder %s41, 3
      %p251 = por %p249, %p250
      %p253 = scmp.ne.s32.totalorder %s238, %s252
      %p254 = scmp.eq.s32.totalorder %s41, 0
      %p255 = por %p253, %p254
      %s257 = sadd.s32 %s256, 1
      %p260 = scmp.eq.s32.totalorder %s35, 3
      %p261 = scmp.ne.s32.totalorder %s256, %s258
      %p262 = scmp.eq.s32.totalorder %s35, 0
      %p263 = por %p261, %p262
      %p264 = scmp.ne.s32.totalorder %s256, %s258
      %p265 = scmp.eq.s32.totalorder %s40, 3
      %p266 = por %p264, %p265
      %p267 = scmp.ne.s32.totalorder %s258, %s259
      %p268 = scmp.eq.s32.totalorder %s40, 0
      %p269 = por %p267, %p268
      %p270 = scmp.ne.s32.totalorder %s258, %s259
      %p271 = scmp.eq.s32.totalorder %s41, 3
      %p272 = por %p270, %p271
      %p274 = scmp.ne.s32.totalorder %s259, %s273
      %p275 = scmp.eq.s32.totalorder %s41, 0
      %p276 = por %p274, %p275
      %s278 = sadd.s32 %s277, 1
      %p281 = scmp.eq.s32.totalorder %s35, 3
      %p282 = scmp.ne.s32.totalorder %s277, %s279
      %p283 = scmp.eq.s32.totalorder %s35, 0
      %p284 = por %p282, %p283
      %p285 = scmp.ne.s32.totalorder %s277, %s279
      %p286 = scmp.eq.s32.totalorder %s40, 3
      %p287 = por %p285, %p286
      %p288 = scmp.ne.s32.totalorder %s279, %s280
      %p289 = scmp.eq.s32.totalorder %s40, 0
      %p290 = por %p288, %p289
      %p291 = scmp.ne.s32.totalorder %s279, %s280
      %p292 = scmp.eq.s32.totalorder %s41, 3
      %p293 = por %p291, %p292
      %p295 = scmp.ne.s32.totalorder %s280, %s294
      %p296 = scmp.eq.s32.totalorder %s41, 0
      %p297 = por %p295, %p296
      %s299 = sadd.s32 %s298, 1
      %p302 = scmp.eq.s32.totalorder %s35, 3
      %p303 = scmp.ne.s32.totalorder %s298, %s300
      %p304 = scmp.eq.s32.totalorder %s35, 0
      %p305 = por %p303, %p304
      %p306 = scmp.ne.s32.totalorder %s298, %s300
      %p307 = scmp.eq.s32.totalorder %s40, 3
      %p308 = por %p306, %p307
      %p309 = scmp.ne.s32.totalorder %s300, %s301
      %p310 = scmp.eq.s32.totalorder %s40, 0
      %p311 = por %p309, %p310
      %p312 = scmp.ne.s32.totalorder %s300, %s301
      %p313 = scmp.eq.s32.totalorder %s41, 3
      %p314 = por %p312, %p313
      %p316 = scmp.ne.s32.totalorder %s301, %s315
      %p317 = scmp.eq.s32.totalorder %s41, 0
      %p318 = por %p316, %p317
      %s319 = ssub.s32 %s42, %s54
      %s320 = ssub.s32 %s43, %s50
      %s321 = sor.u32 %s319, %s320
      %p322 = scmp.eq.s32.totalorder %s321, 0
      %s324 = sadd.s32 %s323, 1
      %s325 = scalar_select %p322, %s323, %s324
      %p328 = pneg %p322
      %p329 = scmp.eq.s32.totalorder %s35, 3
      %p330 = por %p328, %p329
      %p331 = scmp.ne.s32.totalorder %s323, %s326
      %p332 = scmp.eq.s32.totalorder %s35, 0
      %p333 = por %p331, %p332
      %p334 = scmp.ne.s32.totalorder %s323, %s326
      %p335 = scmp.eq.s32.totalorder %s40, 3
      %p336 = por %p334, %p335
      %p337 = scmp.ne.s32.totalorder %s326, %s327
      %p338 = scmp.eq.s32.totalorder %s40, 0
      %p339 = por %p337, %p338
      %p340 = scmp.ne.s32.totalorder %s326, %s327
      %p341 = scmp.eq.s32.totalorder %s41, 3
      %p342 = por %p340, %p341
      %p344 = scmp.ne.s32.totalorder %s327, %s343
      %p345 = scmp.eq.s32.totalorder %s41, 0
      %p346 = por %p344, %p345
      %s347 = ssub.s32 %s42, %s54
      %s348 = ssub.s32 %s43, %s50
      %s349 = sor.u32 %s347, %s348
      %p350 = scmp.eq.s32.totalorder %s349, 0
      %s352 = sadd.s32 %s351, 1
      %s353 = scalar_select %p350, %s351, %s352
      %p356 = pneg %p350
      %p357 = scmp.eq.s32.totalorder %s35, 3
      %p358 = por %p356, %p357
      %p359 = scmp.ne.s32.totalorder %s351, %s354
      %p360 = scmp.eq.s32.totalorder %s35, 0
      %p361 = por %p359, %p360
      %p362 = scmp.ne.s32.totalorder %s351, %s354
      %p363 = scmp.eq.s32.totalorder %s40, 3
      %p364 = por %p362, %p363
      %p365 = scmp.ne.s32.totalorder %s354, %s355
      %p366 = scmp.eq.s32.totalorder %s40, 0
      %p367 = por %p365, %p366
      %p368 = scmp.ne.s32.totalorder %s354, %s355
      %p369 = scmp.eq.s32.totalorder %s41, 3
      %p370 = por %p368, %p369
      %p372 = scmp.ne.s32.totalorder %s355, %s371
      %p373 = scmp.eq.s32.totalorder %s41, 0
      %p374 = por %p372, %p373
      %p375 = scmp.le.s32.totalorder 1, %s35
      %p376 = scmp.lt.s32.totalorder %s35, 5
      %p377 = pnand %p375, %p376
      %p378 = pneg %p377
      // Predicated region
      $region9: #{tpu_custom_call.1} parent=5 // pred_check
        _
      $region10: #{tpu_custom_call.1} parent=5 // pred_check_branch
        %380 = sbr.rel (%p377) target = $region12
      $region11: #{tpu_custom_call.1} parent=5 // pred_region
        %s381 = ssub.s32 %s35, 1
        // Predicated region
        $region13: #{tpu_custom_call.1} parent=11 // pred_check
          %p382 = pneg %p122
        $region14: #{tpu_custom_call.1} parent=11 // pred_check_branch
          %384 = sbr.rel (%p382) target = $region16
        $region15: #{tpu_custom_call.1} parent=11 // pred_region
          _
        $region16: #{tpu_custom_call.1} parent=11 // pred_fallthru
          _
        // Predicated region
        $region17: #{tpu_custom_call.1} parent=11 // pred_check
          %p385 = pneg %p143
        $region18: #{tpu_custom_call.1} parent=11 // pred_check_branch
          %387 = sbr.rel (%p385) target = $region20
        $region19: #{tpu_custom_call.1} parent=11 // pred_region
          _
        $region20: #{tpu_custom_call.1} parent=11 // pred_fallthru
          _
        // Predicated region
        $region21: #{tpu_custom_call.1} parent=11 // pred_check
          %p388 = pneg %p164
        $region22: #{tpu_custom_call.1} parent=11 // pred_check_branch
          %390 = sbr.rel (%p388) target = $region24
        $region23: #{tpu_custom_call.1} parent=11 // pred_region
          %s392 = ssub.s32 2048, 2048
          %393 = vsyncadd [#allocation11], %s392
          %s394 = sshll.u32 [#allocation12], 4
          %s395 = int_to_ptr.vmem [resolvable:$true] %s394
          %400 = dma.hbm_to_vmem [thread:$0]  %s4, 2048, %s395, [#allocation11], 128, 128, 8
        $region24: #{tpu_custom_call.1} parent=11 // pred_fallthru
          _
        // Predicated region
        $region25: #{tpu_custom_call.1} parent=11 // pred_check
          %p401 = pneg %p185
        $region26: #{tpu_custom_call.1} parent=11 // pred_check_branch
          %403 = sbr.rel (%p401) target = $region28
        $region27: #{tpu_custom_call.1} parent=11 // pred_region
          %s405 = ssub.s32 1024, 1024
          %406 = vsyncadd [#allocation14], %s405
          %s407 = sshll.u32 [#allocation13], 4
          %s408 = int_to_ptr.vmem [resolvable:$true] %s407
          %413 = dma.hbm_to_vmem [thread:$0]  %s5, 1024, %s408, [#allocation14], 64, 64, 4
        $region28: #{tpu_custom_call.1} parent=11 // pred_fallthru
          _
        // Predicated region
        $region29: #{tpu_custom_call.1} parent=11 // pred_check
          %p414 = pneg %p206
        $region30: #{tpu_custom_call.1} parent=11 // pred_check_branch
          %416 = sbr.rel (%p414) target = $region32
        $region31: #{tpu_custom_call.1} parent=11 // pred_region
          %s418 = ssub.s32 1024, 1024
          %419 = vsyncadd [#allocation14], %s418
          %s420 = sshll.u32 [#allocation15], 4
          %s421 = int_to_ptr.vmem [resolvable:$true] %s420
          %426 = dma.hbm_to_vmem [thread:$0]  %s6, 1024, %s421, [#allocation14], 64, 64, 4
        $region32: #{tpu_custom_call.1} parent=11 // pred_fallthru
          _
        // Predicated region
        $region33: #{tpu_custom_call.1} parent=11 // pred_check
          %p427 = pneg %p227
        $region34: #{tpu_custom_call.1} parent=11 // pred_check_branch
          %429 = sbr.rel (%p427) target = $region36
        $region35: #{tpu_custom_call.1} parent=11 // pred_region
          _
        $region36: #{tpu_custom_call.1} parent=11 // pred_fallthru
          _
        // Predicated region
        $region37: #{tpu_custom_call.1} parent=11 // pred_check
          %p430 = pneg %p248
        $region38: #{tpu_custom_call.1} parent=11 // pred_check_branch
          %432 = sbr.rel (%p430) target = $region40
        $region39: #{tpu_custom_call.1} parent=11 // pred_region
          %s434 = ssub.s32 2048, 2048
          %435 = vsyncadd [#allocation17], %s434
          %s436 = sshll.u32 [#allocation16], 4
          %s437 = int_to_ptr.vmem [resolvable:$true] %s436
          %442 = dma.hbm_to_vmem [thread:$0]  %s8, 2048, %s437, [#allocation17], 128, 128, 8
        $region40: #{tpu_custom_call.1} parent=11 // pred_fallthru
          _
        // Predicated region
        $region41: #{tpu_custom_call.1} parent=11 // pred_check
          %p443 = pneg %p269
        $region42: #{tpu_custom_call.1} parent=11 // pred_check_branch
          %445 = sbr.rel (%p443) target = $region44
        $region43: #{tpu_custom_call.1} parent=11 // pred_region
          %s447 = ssub.s32 1024, 1024
          %448 = vsyncadd [#allocation17], %s447
          %s449 = sshll.u32 [#allocation18], 4
          %s450 = int_to_ptr.vmem [resolvable:$true] %s449
          %455 = dma.hbm_to_vmem [thread:$0]  %s9, 1024, %s450, [#allocation17], 64, 64, 4
        $region44: #{tpu_custom_call.1} parent=11 // pred_fallthru
          _
        // Predicated region
        $region45: #{tpu_custom_call.1} parent=11 // pred_check
          %p456 = pneg %p290
        $region46: #{tpu_custom_call.1} parent=11 // pred_check_branch
          %458 = sbr.rel (%p456) target = $region48
        $region47: #{tpu_custom_call.1} parent=11 // pred_region
          %s460 = ssub.s32 1024, 1024
          %461 = vsyncadd [#allocation20], %s460
          %s462 = sshll.u32 [#allocation19], 4
          %s463 = int_to_ptr.vmem [resolvable:$true] %s462
          %468 = dma.hbm_to_vmem [thread:$0]  %s10, 1024, %s463, [#allocation20], 64, 64, 4
        $region48: #{tpu_custom_call.1} parent=11 // pred_fallthru
          _
        // Predicated region
        $region49: #{tpu_custom_call.1} parent=11 // pred_check
          %p469 = pneg %p311
        $region50: #{tpu_custom_call.1} parent=11 // pred_check_branch
          %471 = sbr.rel (%p469) target = $region52
        $region51: #{tpu_custom_call.1} parent=11 // pred_region
          _
        $region52: #{tpu_custom_call.1} parent=11 // pred_fallthru
          _
      $region12: #{tpu_custom_call.1} parent=5 // pred_fallthru
        _
      %p472 = scmp.lt.s32.totalorder %s35, 4
      // Predicated region
      $region53: #{tpu_custom_call.1} parent=5 // pred_check
        %p473 = pneg %p472
      $region54: #{tpu_custom_call.1} parent=5 // pred_check_branch
        %475 = sbr.rel (%p473) target = $region56
      $region55: #{tpu_custom_call.1} parent=5 // pred_region
        // Predicated region
        $region57: #{tpu_custom_call.1} parent=55 // pred_check
          %p476 = pneg %p67
        $region58: #{tpu_custom_call.1} parent=55 // pred_check_branch
          %478 = sbr.rel (%p476) target = $region60
        $region59: #{tpu_custom_call.1} parent=55 // pred_region
          %s479 = sand.u32 %s57, 1
          %s480 = scalar_lea.sflag [#allocation8], %s479
          %s481 = sand.u32 %s57, 1
          %s482 = smul.addr %s481, 16
          %s483 = scalar_lea.vmem [#allocation7], %s482
          %s485 = ssub.s32 256, 256
          %486 = vsyncadd %s480, %s485
          %s487 = smul.addr %s42, 4
          %s488 = sadd.s32 2, %s487
          %s489 = smul.addr %s488, 128
          %s490 = scalar_lea.hbm %s0, %s489
          %s491 = sshll.u32 %s483, 4
          %s492 = int_to_ptr.vmem [resolvable:$true] %s491
          %497 = dma.hbm_to_vmem [thread:$0]  %s490, 256, %s492, %s480, 128, 128, 8
        $region60: #{tpu_custom_call.1} parent=55 // pred_fallthru
          _
        // Predicated region
        $region61: #{tpu_custom_call.1} parent=55 // pred_check
          %p498 = pneg %p95
        $region62: #{tpu_custom_call.1} parent=55 // pred_check_branch
          %500 = sbr.rel (%p498) target = $region64
        $region63: #{tpu_custom_call.1} parent=55 // pred_region
          %s501 = sand.u32 %s35, 1
          %s502 = scalar_lea.sflag [#allocation11], %s501
          %s503 = sand.u32 %s85, 1
          %s504 = smul.addr %s503, 8
          %s505 = scalar_lea.vmem [#allocation10], %s504
          %s507 = ssub.s32 128, 128
          %508 = vsyncadd %s502, %s507
          %s509 = smul.addr %s42, 4
          %s510 = sadd.s32 %s43, %s509
          %s511 = smul.addr %s510, 128
          %s512 = scalar_lea.hbm %s1, %s511
          %s514 = sshll.u32 %s505, 4
          %s515 = int_to_ptr.vmem [resolvable:$true] %s514
          %517 = dma.hbm_to_vmem [thread:$0]  %s512, 128, %s515, %s502
        $region64: #{tpu_custom_call.1} parent=55 // pred_fallthru
          _
      $region56: #{tpu_custom_call.1} parent=5 // pred_fallthru
        _
      %p518 = scmp.le.s32.totalorder 1, %s35
      %p519 = scmp.lt.s32.totalorder %s35, 5
      %p520 = pnand %p518, %p519
      %p521 = pneg %p520
      // Predicated region
      $region65: #{tpu_custom_call.1} parent=5 // pred_check
        _
      $region66: #{tpu_custom_call.1} parent=5 // pred_check_branch
        %523 = sbr.rel (%p520) target = $region68
      $region67: #{tpu_custom_call.1} parent=5 // pred_region
        %s524 = ssub.s32 %s35, 1
        %s525 = sand.u32 %s60, 1
        %s526 = scalar_lea.sflag [#allocation8], %s525
        %s527 = sand.u32 %s60, 1
        %s528 = smul.addr %s527, 16
        %s529 = scalar_lea.vmem [#allocation7], %s528
        // Predicated region
        $region69: #{tpu_custom_call.1} parent=67 // pred_check
          %p530 = pneg %p73
        $region70: #{tpu_custom_call.1} parent=67 // pred_check_branch
          %532 = sbr.rel (%p530) target = $region72
        $region71: #{tpu_custom_call.1} parent=67 // pred_region
          %533 = dma.done %s526, 256
        $region72: #{tpu_custom_call.1} parent=67 // pred_fallthru
          _
        %s534 = sand.u32 %s40, 1
        %s535 = scalar_lea.sflag [#allocation11], %s534
        %s536 = sand.u32 %s88, 1
        %s537 = smul.addr %s536, 8
        %s538 = scalar_lea.vmem [#allocation10], %s537
        // Predicated region
        $region73: #{tpu_custom_call.1} parent=67 // pred_check
          %p539 = pneg %p101
        $region74: #{tpu_custom_call.1} parent=67 // pred_check_branch
          %541 = sbr.rel (%p539) target = $region76
        $region75: #{tpu_custom_call.1} parent=67 // pred_region
          %542 = dma.done %s535, 128
        $region76: #{tpu_custom_call.1} parent=67 // pred_fallthru
          _
        // Predicated region
        $region77: #{tpu_custom_call.1} parent=67 // pred_check
          %p543 = pneg %p164
        $region78: #{tpu_custom_call.1} parent=67 // pred_check_branch
          %545 = sbr.rel (%p543) target = $region80
        $region79: #{tpu_custom_call.1} parent=67 // pred_region
          %546 = dma.done [#allocation11], 2048
        $region80: #{tpu_custom_call.1} parent=67 // pred_fallthru
          _
        // Predicated region
        $region81: #{tpu_custom_call.1} parent=67 // pred_check
          %p547 = pneg %p185
        $region82: #{tpu_custom_call.1} parent=67 // pred_check_branch
          %549 = sbr.rel (%p547) target = $region84
        $region83: #{tpu_custom_call.1} parent=67 // pred_region
          %550 = dma.done [#allocation14], 1024
        $region84: #{tpu_custom_call.1} parent=67 // pred_fallthru
          _
        // Predicated region
        $region85: #{tpu_custom_call.1} parent=67 // pred_check
          %p551 = pneg %p206
        $region86: #{tpu_custom_call.1} parent=67 // pred_check_branch
          %553 = sbr.rel (%p551) target = $region88
        $region87: #{tpu_custom_call.1} parent=67 // pred_region
          %554 = dma.done [#allocation14], 1024
        $region88: #{tpu_custom_call.1} parent=67 // pred_fallthru
          _
        // Predicated region
        $region89: #{tpu_custom_call.1} parent=67 // pred_check
          %p555 = pneg %p248
        $region90: #{tpu_custom_call.1} parent=67 // pred_check_branch
          %557 = sbr.rel (%p555) target = $region92
        $region91: #{tpu_custom_call.1} parent=67 // pred_region
          %558 = dma.done [#allocation17], 2048
        $region92: #{tpu_custom_call.1} parent=67 // pred_fallthru
          _
        // Predicated region
        $region93: #{tpu_custom_call.1} parent=67 // pred_check
          %p559 = pneg %p269
        $region94: #{tpu_custom_call.1} parent=67 // pred_check_branch
          %561 = sbr.rel (%p559) target = $region96
        $region95: #{tpu_custom_call.1} parent=67 // pred_region
          %562 = dma.done [#allocation17], 1024
        $region96: #{tpu_custom_call.1} parent=67 // pred_fallthru
          _
        // Predicated region
        $region97: #{tpu_custom_call.1} parent=67 // pred_check
          %p563 = pneg %p290
        $region98: #{tpu_custom_call.1} parent=67 // pred_check_branch
          %565 = sbr.rel (%p563) target = $region100
        $region99: #{tpu_custom_call.1} parent=67 // pred_region
          %566 = dma.done [#allocation20], 1024
        $region100: #{tpu_custom_call.1} parent=67 // pred_fallthru
          _
        %s567 = sand.u32 %s60, 1
        %s568 = scalar_lea.sflag [#allocation8], %s567
        %s569 = sand.u32 %s60, 1
        %s570 = smul.addr %s569, 16
        %s571 = scalar_lea.vmem [#allocation7], %s570
        %p572 = pneg %p73
        %p573 = pneg %p70
        %s574 = sand.u32 %s40, 1
        %s575 = scalar_lea.sflag [#allocation11], %s574
        %s576 = sand.u32 %s88, 1
        %s577 = smul.addr %s576, 8
        %s578 = scalar_lea.vmem [#allocation10], %s577
        %p579 = pneg %p101
        %p580 = pneg %p98
        %p581 = pneg %p122
        %p582 = pneg %p119
        %p583 = pneg %p143
        %p584 = pneg %p140
        %p585 = pneg %p164
        %p586 = pneg %p161
        %p587 = pneg %p185
        %p588 = pneg %p182
        %p589 = pneg %p206
        %p590 = pneg %p203
        %p591 = pneg %p227
        %p592 = pneg %p224
        %p593 = pneg %p248
        %p594 = pneg %p245
        %p595 = pneg %p269
        %p596 = pneg %p266
        %p597 = pneg %p290
        %p598 = pneg %p287
        %p599 = pneg %p311
        %p600 = pneg %p308
        %p601 = pneg %p339
        %p602 = pneg %p336
        %s603 = sand.u32 %s326, 1
        %s604 = scalar_lea.sflag [#allocation9], %s603
        %s605 = sand.u32 %s326, 1
        %s606 = smul.addr %s605, 8
        %s607 = scalar_lea.vmem [#allocation21], %s606
        %p608 = pneg %p367
        %p609 = pneg %p364
        %s610 = sand.u32 %s354, 1
        %s611 = scalar_lea.sflag [#allocation23], %s610
        %s612 = sand.u32 %s354, 1
        %s613 = smul.addr %s612, 8
        %s614 = scalar_lea.vmem [#allocation22], %s613
        %p616 = scmp.eq.s32.totalorder %s45, 0
        // Predicated region
        $region101: #{tpu_custom_call.1} parent=67 // pred_check
          %p617 = pneg %p616
        $region102: #{tpu_custom_call.1} parent=67 // pred_check_branch
          %619 = sbr.rel (%p617) target = $region104
        $region103: #{tpu_custom_call.1} parent=67 // pred_region
          %v620 = vld [vmem:[%s529] sm:$0xff]
          %v621 = vld [vmem:[%s529 + $0x8] sm:$0xff]
          %622 = vadd.xlane.f32.xlu0 %v620
          %v623 = vpop.xlane.xlu0 %622
          %624 = vadd.xlane.f32.xlu0 %v621
          %v625 = vpop.xlane.xlu0 %624
          %v626 = vrcp.pop 128.0
          %v627 = vmul.f32 %v623, %v626
          %v628 = vmul.f32 %v625, %v626
          %v629 = vsub.f32 %v620, %v627
          %v630 = vsub.f32 %v621, %v628
          %v631 = vmul.f32 %v629, %v629
          %v632 = vmul.f32 %v630, %v630
          %633 = vadd.xlane.f32.xlu0 %v631
          %v634 = vpop.xlane.xlu0 %633
          %635 = vadd.xlane.f32.xlu0 %v632
          %v636 = vpop.xlane.xlu0 %635
          %v637 = vmul.f32 %v634, %v626
          %v638 = vmul.f32 %v636, %v626
          %v639 = vadd.f32 %v637, 1e-05
          %v640 = vadd.f32 %v638, 1e-05
          %v641 = vrsqrt.pop %v639
          %v642 = vrsqrt.pop %v640
          %v643 = vmul.f32 %v629, %v641
          %v644 = vmul.f32 %v630, %v642
          %v645 = vld [vmem:[%s2] sm:$0x1]
          %v647 = vlaneseq
          %v648 = vshrl.u32 %v647, 7
          %v649 = vsub.s32 0, %v648
          %v650 = vrot.slane %v645, %v649
          %v652 = vmul.f32 %v643, %v650
          %v653 = vmul.f32 %v644, %v650
          %v654 = vld [vmem:[%s3] sm:$0x1]
          %v656 = vlaneseq
          %v657 = vshrl.u32 %v656, 7
          %v658 = vsub.s32 0, %v657
          %v659 = vrot.slane %v654, %v658
          %v661 = vadd.f32 %v652, %v659
          %v662 = vadd.f32 %v653, %v659
          %v663 = vpack.c.bf16 %v662, %v661
          %v664 = vld [vmem:[#allocation12] sm:$0xff]
          %v665 = vld [vmem:[#allocation12 + $0x8] sm:$0xff]
          %v666 = vld [vmem:[#allocation12 + $0x10] sm:$0xff]
          %v667 = vld [vmem:[#allocation12 + $0x18] sm:$0xff]
          %v668 = vld [vmem:[#allocation12 + $0x20] sm:$0xff]
          %v669 = vld [vmem:[#allocation12 + $0x28] sm:$0xff]
          %v670 = vld [vmem:[#allocation12 + $0x30] sm:$0xff]
          %v671 = vld [vmem:[#allocation12 + $0x38] sm:$0xff]
          %v672 = vld [vmem:[#allocation12 + $0x40] sm:$0xff]
          %v673 = vld [vmem:[#allocation12 + $0x48] sm:$0xff]
          %v674 = vld [vmem:[#allocation12 + $0x50] sm:$0xff]
          %v675 = vld [vmem:[#allocation12 + $0x58] sm:$0xff]
          %v676 = vld [vmem:[#allocation12 + $0x60] sm:$0xff]
          %v677 = vld [vmem:[#allocation12 + $0x68] sm:$0xff]
          %v678 = vld [vmem:[#allocation12 + $0x70] sm:$0xff]
          %v679 = vld [vmem:[#allocation12 + $0x78] sm:$0xff]
          %v696 = vunpack.c.l.b16 %v664
          %v697 = vunpack.c.h.b16 %v664
          %v698 = vunpack.c.l.b16 %v665
          %v699 = vunpack.c.h.b16 %v665
          %v700 = vunpack.c.l.b16 %v666
          %v701 = vunpack.c.h.b16 %v666
          %v702 = vunpack.c.l.b16 %v667
          %v703 = vunpack.c.h.b16 %v667
          %v704 = vunpack.c.l.b16 %v668
          %v705 = vunpack.c.h.b16 %v668
          %v706 = vunpack.c.l.b16 %v669
          %v707 = vunpack.c.h.b16 %v669
          %v708 = vunpack.c.l.b16 %v670
          %v709 = vunpack.c.h.b16 %v670
          %v710 = vunpack.c.l.b16 %v671
          %v711 = vunpack.c.h.b16 %v671
          %v712 = vunpack.c.l.b16 %v672
          %v713 = vunpack.c.h.b16 %v672
          %v714 = vunpack.c.l.b16 %v673
          %v715 = vunpack.c.h.b16 %v673
          %v716 = vunpack.c.l.b16 %v674
          %v717 = vunpack.c.h.b16 %v674
          %v718 = vunpack.c.l.b16 %v675
          %v719 = vunpack.c.h.b16 %v675
          %v720 = vunpack.c.l.b16 %v676
          %v721 = vunpack.c.h.b16 %v676
          %v722 = vunpack.c.l.b16 %v677
          %v723 = vunpack.c.h.b16 %v677
          %v724 = vunpack.c.l.b16 %v678
          %v725 = vunpack.c.h.b16 %v678
          %v726 = vunpack.c.l.b16 %v679
          %v727 = vunpack.c.h.b16 %v679
          %v728 = vpack.c.b16 %v698, %v696
          %v729 = vpack.c.b16 %v699, %v697
          %v730 = vpack.c.b16 %v702, %v700
          %v731 = vpack.c.b16 %v703, %v701
          %v732 = vpack.c.b16 %v706, %v704
          %v733 = vpack.c.b16 %v707, %v705
          %v734 = vpack.c.b16 %v710, %v708
          %v735 = vpack.c.b16 %v711, %v709
          %v736 = vpack.c.b16 %v714, %v712
          %v737 = vpack.c.b16 %v715, %v713
          %v738 = vpack.c.b16 %v718, %v716
          %v739 = vpack.c.b16 %v719, %v717
          %v740 = vpack.c.b16 %v722, %v720
          %v741 = vpack.c.b16 %v723, %v721
          %v742 = vpack.c.b16 %v726, %v724
          %v743 = vpack.c.b16 %v727, %v725
          %760 = vmatprep.subr.bf16.mxu0 %v743
          %761 = vmatpush1.bf16.msra.mxu0 %v742
          %762 = vmatprep.subr.bf16.mxu0 %v741
          %763 = vmatpush1.bf16.msra.mxu0 %v740
          %764 = vmatprep.subr.bf16.mxu0 %v739
          %765 = vmatpush1.bf16.msra.mxu0 %v738
          %766 = vmatprep.subr.bf16.mxu0 %v737
          %767 = vmatpush1.bf16.msra.mxu0 %v736
          %768 = vmatprep.subr.bf16.mxu0 %v735
          %769 = vmatpush1.bf16.msra.mxu0 %v734
          %770 = vmatprep.subr.bf16.mxu0 %v733
          %771 = vmatpush1.bf16.msra.mxu0 %v732
          %772 = vmatprep.subr.bf16.mxu0 %v731
          %773 = vmatpush1.bf16.msra.mxu0 %v730
          %774 = vmatprep.subr.bf16.mxu0 %v729
          %775 = vmatpush1.bf16.msra.mxu0 %v728
          %776 = vmatprep.subr.bf16.mxu0 0
          %777 = vmatpush2.bf16.msra.mxu0 0
          %778 = vmatprep.subr.bf16.mxu0 0
          %779 = vmatpush2.bf16.msra.mxu0 0
          %780 = vmatprep.subr.bf16.mxu0 0
          %781 = vmatpush2.bf16.msra.mxu0 0
          %782 = vmatprep.subr.bf16.mxu0 0
          %783 = vmatpush2.bf16.msra.mxu0 0
          %784 = vmatprep.subr.bf16.mxu0 0
          %785 = vmatpush2.bf16.msra.mxu0 0
          %786 = vmatprep.subr.bf16.mxu0 0
          %787 = vmatpush2.bf16.msra.mxu0 0
          %788 = vmatprep.subr.bf16.mxu0 0
          %789 = vmatpush2.bf16.msra.mxu0 0
          %790 = vmatprep.subr.bf16.mxu0 0
          %791 = vmatpush2.bf16.msra.mxu0 0
          %792 = vmatprep.mubr.bf16.mxu0 0
          %793 = vmatmul.mubr.bf16.gmra.mxu0 %v663
          %v794 = vpop.f32.mrf.mxu0
          %v795 = vadd.f32 0.0, %v794
          %v796 = vpop.f32.mrf.mxu0
          %v797 = vadd.f32 0.0, %v796
          %v798 = vpop.f32.mrf.mxu0
          %v799 = vadd.f32 0.0, %v798
          %v800 = vpop.f32.mrf.mxu0
          %v801 = vadd.f32 0.0, %v800
          %802 = vdwg.mxu0
          %803 = vxpose.xlu0.b32.start [1/16] %v795, 128
          %804 = vxpose.xlu0.b32.cont [2/16] %v799, 128
          %805 = vxpose.xlu0.b32.cont [3/16] 0.0, 128
          %806 = vxpose.xlu0.b32.cont [4/16] 0.0, 128
          %807 = vxpose.xlu0.b32.cont [5/16] 0.0, 128
          %808 = vxpose.xlu0.b32.cont [6/16] 0.0, 128
          %809 = vxpose.xlu0.b32.cont [7/16] 0.0, 128
          %810 = vxpose.xlu0.b32.cont [8/16] 0.0, 128
          %811 = vxpose.xlu0.b32.cont [9/16] 0.0, 128
          %812 = vxpose.xlu0.b32.cont [10/16] 0.0, 128
          %813 = vxpose.xlu0.b32.cont [11/16] 0.0, 128
          %814 = vxpose.xlu0.b32.cont [12/16] 0.0, 128
          %815 = vxpose.xlu0.b32.cont [13/16] 0.0, 128
          %816 = vxpose.xlu0.b32.cont [14/16] 0.0, 128
          %817 = vxpose.xlu0.b32.cont [15/16] 0.0, 128
          %818 = vxpose.xlu0.b32.end [16/16] 0.0, 128
          %v819 = vpop.trf.xlu0
          %v820 = vpop.trf.xlu0
          %v821 = vpop.trf.xlu0
          %v822 = vpop.trf.xlu0
          %v823 = vpop.trf.xlu0
          %v824 = vpop.trf.xlu0
          %v825 = vpop.trf.xlu0
          %v826 = vpop.trf.xlu0
          %v827 = vpop.trf.xlu0
          %v828 = vpop.trf.xlu0
          %v829 = vpop.trf.xlu0
          %v830 = vpop.trf.xlu0
          %v831 = vpop.trf.xlu0
          %v832 = vpop.trf.xlu0
          %v833 = vpop.trf.xlu0
          %v834 = vpop.trf.xlu0
          %v835 = vpack.c.bf16 %v820, %v819
          %v836 = vpack.c.bf16 %v822, %v821
          %v839 = vunpack.c.l.b16 %v835
          %v840 = vunpack.c.h.b16 %v835
          %v841 = vunpack.c.l.b16 %v836
          %v842 = vunpack.c.h.b16 %v836
          %v843 = vpack.c.b16 %v839, %v839
          %v844 = vpack.c.b16 %v840, %v840
          %v845 = vpack.c.b16 %v841, %v841
          %v846 = vpack.c.b16 %v842, %v842
          %vm851 = vcmask 125952
          %852 = vst.msk [vmem:[#allocation2] sm:$0xf] %vm851, %v843
          %853 = vst.msk [vmem:[#allocation2 + $0x4] sm:$0xf] %vm851, %v844
          %854 = vst.msk [vmem:[#allocation2 + $0x8] sm:$0xf] %vm851, %v845
          %855 = vst.msk [vmem:[#allocation2 + $0xc] sm:$0xf] %vm851, %v846
          %v856 = vpack.c.bf16 %v801, %v797
          %v858 = vunpack.c.l.b16 %v856
          %v859 = vunpack.c.h.b16 %v856
          %v860 = vpack.c.b16 %v858, %v858
          %v861 = vpack.c.b16 %v859, %v859
          %vm864 = vcmask 257024
          %865 = vst.msk [vmem:[#allocation3] sm:$0xf] %vm864, %v860
          %866 = vst.msk [vmem:[#allocation3 + $0x4] sm:$0xf] %vm864, %v861
          %v867 = vpack.c.bf16 %v824, %v823
          %v868 = vpack.c.bf16 %v826, %v825
          %v871 = vunpack.c.l.b16 %v867
          %v872 = vunpack.c.h.b16 %v867
          %v873 = vunpack.c.l.b16 %v868
          %v874 = vunpack.c.h.b16 %v868
          %v875 = vpack.c.b16 %v871, %v871
          %v876 = vpack.c.b16 %v872, %v872
          %v877 = vpack.c.b16 %v873, %v873
          %v878 = vpack.c.b16 %v874, %v874
          %s883 = scalar_lea.vmem [#allocation2], 16
          %884 = vst.msk [vmem:[%s883] sm:$0xf] %vm851, %v875
          %885 = vst.msk [vmem:[%s883 + $0x4] sm:$0xf] %vm851, %v876
          %886 = vst.msk [vmem:[%s883 + $0x8] sm:$0xf] %vm851, %v877
          %887 = vst.msk [vmem:[%s883 + $0xc] sm:$0xf] %vm851, %v878
          %888 = vrot.lane.b32.xlu0 %v860, 96
          %v889 = vpop.permute.xlu0 %888
          %890 = vrot.lane.b32.xlu0 %v861, 96
          %v891 = vpop.permute.xlu0 %890
          %s894 = scalar_lea.vmem [#allocation3], 8
          %895 = vst.msk [vmem:[%s894] sm:$0xf] %vm864, %v889
          %896 = vst.msk [vmem:[%s894 + $0x4] sm:$0xf] %vm864, %v891
          %v897 = vpack.c.bf16 %v828, %v827
          %v898 = vpack.c.bf16 %v830, %v829
          %v901 = vunpack.c.l.b16 %v897
          %v902 = vunpack.c.h.b16 %v897
          %v903 = vunpack.c.l.b16 %v898
          %v904 = vunpack.c.h.b16 %v898
          %v905 = vpack.c.b16 %v901, %v901
          %v906 = vpack.c.b16 %v902, %v902
          %v907 = vpack.c.b16 %v903, %v903
          %v908 = vpack.c.b16 %v904, %v904
          %s913 = scalar_lea.vmem [#allocation2], 32
          %914 = vst.msk [vmem:[%s913] sm:$0xf] %vm851, %v905
          %915 = vst.msk [vmem:[%s913 + $0x4] sm:$0xf] %vm851, %v906
          %916 = vst.msk [vmem:[%s913 + $0x8] sm:$0xf] %vm851, %v907
          %917 = vst.msk [vmem:[%s913 + $0xc] sm:$0xf] %vm851, %v908
          %918 = vrot.lane.b32.xlu0 %v860, 64
          %v919 = vpop.permute.xlu0 %918
          %920 = vrot.lane.b32.xlu0 %v861, 64
          %v921 = vpop.permute.xlu0 %920
          %s924 = scalar_lea.vmem [#allocation3], 16
          %925 = vst.msk [vmem:[%s924] sm:$0xf] %vm864, %v919
          %926 = vst.msk [vmem:[%s924 + $0x4] sm:$0xf] %vm864, %v921
          %v927 = vpack.c.bf16 %v832, %v831
          %v928 = vpack.c.bf16 %v834, %v833
          %v931 = vunpack.c.l.b16 %v927
          %v932 = vunpack.c.h.b16 %v927
          %v933 = vunpack.c.l.b16 %v928
          %v934 = vunpack.c.h.b16 %v928
          %v935 = vpack.c.b16 %v931, %v931
          %v936 = vpack.c.b16 %v932, %v932
          %v937 = vpack.c.b16 %v933, %v933
          %v938 = vpack.c.b16 %v934, %v934
          %s943 = scalar_lea.vmem [#allocation2], 48
          %944 = vst.msk [vmem:[%s943] sm:$0xf] %vm851, %v935
          %945 = vst.msk [vmem:[%s943 + $0x4] sm:$0xf] %vm851, %v936
          %946 = vst.msk [vmem:[%s943 + $0x8] sm:$0xf] %vm851, %v937
          %947 = vst.msk [vmem:[%s943 + $0xc] sm:$0xf] %vm851, %v938
          %948 = vrot.lane.b32.xlu0 %v860, 32
          %v949 = vpop.permute.xlu0 %948
          %950 = vrot.lane.b32.xlu0 %v861, 32
          %v951 = vpop.permute.xlu0 %950
          %s954 = scalar_lea.vmem [#allocation3], 24
          %955 = vst.msk [vmem:[%s954] sm:$0xf] %vm864, %v949
          %956 = vst.msk [vmem:[%s954 + $0x4] sm:$0xf] %vm864, %v951
          %v957 = vpack.c.bf16 %v621, %v620
          %v958 = vld [vmem:[#allocation16] sm:$0xff]
          %v959 = vld [vmem:[#allocation16 + $0x8] sm:$0xff]
          %v960 = vld [vmem:[#allocation16 + $0x10] sm:$0xff]
          %v961 = vld [vmem:[#allocation16 + $0x18] sm:$0xff]
          %v962 = vld [vmem:[#allocation16 + $0x20] sm:$0xff]
          %v963 = vld [vmem:[#allocation16 + $0x28] sm:$0xff]
          %v964 = vld [vmem:[#allocation16 + $0x30] sm:$0xff]
          %v965 = vld [vmem:[#allocation16 + $0x38] sm:$0xff]
          %v966 = vld [vmem:[#allocation16 + $0x40] sm:$0xff]
          %v967 = vld [vmem:[#allocation16 + $0x48] sm:$0xff]
          %v968 = vld [vmem:[#allocation16 + $0x50] sm:$0xff]
          %v969 = vld [vmem:[#allocation16 + $0x58] sm:$0xff]
          %v970 = vld [vmem:[#allocation16 + $0x60] sm:$0xff]
          %v971 = vld [vmem:[#allocation16 + $0x68] sm:$0xff]
          %v972 = vld [vmem:[#allocation16 + $0x70] sm:$0xff]
          %v973 = vld [vmem:[#allocation16 + $0x78] sm:$0xff]
          %v990 = vunpack.c.l.b16 %v958
          %v991 = vunpack.c.h.b16 %v958
          %v992 = vunpack.c.l.b16 %v959
          %v993 = vunpack.c.h.b16 %v959
          %v994 = vunpack.c.l.b16 %v960
          %v995 = vunpack.c.h.b16 %v960
          %v996 = vunpack.c.l.b16 %v961
          %v997 = vunpack.c.h.b16 %v961
          %v998 = vunpack.c.l.b16 %v962
          %v999 = vunpack.c.h.b16 %v962
          %v1000 = vunpack.c.l.b16 %v963
          %v1001 = vunpack.c.h.b16 %v963
          %v1002 = vunpack.c.l.b16 %v964
          %v1003 = vunpack.c.h.b16 %v964
          %v1004 = vunpack.c.l.b16 %v965
          %v1005 = vunpack.c.h.b16 %v965
          %v1006 = vunpack.c.l.b16 %v966
          %v1007 = vunpack.c.h.b16 %v966
          %v1008 = vunpack.c.l.b16 %v967
          %v1009 = vunpack.c.h.b16 %v967
          %v1010 = vunpack.c.l.b16 %v968
          %v1011 = vunpack.c.h.b16 %v968
          %v1012 = vunpack.c.l.b16 %v969
          %v1013 = vunpack.c.h.b16 %v969
          %v1014 = vunpack.c.l.b16 %v970
          %v1015 = vunpack.c.h.b16 %v970
          %v1016 = vunpack.c.l.b16 %v971
          %v1017 = vunpack.c.h.b16 %v971
          %v1018 = vunpack.c.l.b16 %v972
          %v1019 = vunpack.c.h.b16 %v972
          %v1020 = vunpack.c.l.b16 %v973
          %v1021 = vunpack.c.h.b16 %v973
          %v1022 = vpack.c.b16 %v992, %v990
          %v1023 = vpack.c.b16 %v993, %v991
          %v1024 = vpack.c.b16 %v996, %v994
          %v1025 = vpack.c.b16 %v997, %v995
          %v1026 = vpack.c.b16 %v1000, %v998
          %v1027 = vpack.c.b16 %v1001, %v999
          %v1028 = vpack.c.b16 %v1004, %v1002
          %v1029 = vpack.c.b16 %v1005, %v1003
          %v1030 = vpack.c.b16 %v1008, %v1006
          %v1031 = vpack.c.b16 %v1009, %v1007
          %v1032 = vpack.c.b16 %v1012, %v1010
          %v1033 = vpack.c.b16 %v1013, %v1011
          %v1034 = vpack.c.b16 %v1016, %v1014
          %v1035 = vpack.c.b16 %v1017, %v1015
          %v1036 = vpack.c.b16 %v1020, %v1018
          %v1037 = vpack.c.b16 %v1021, %v1019
          %1054 = vmatprep.subr.bf16.mxu0 %v1037
          %1055 = vmatpush1.bf16.msra.mxu0 %v1036
          %1056 = vmatprep.subr.bf16.mxu0 %v1035
          %1057 = vmatpush1.bf16.msra.mxu0 %v1034
          %1058 = vmatprep.subr.bf16.mxu0 %v1033
          %1059 = vmatpush1.bf16.msra.mxu0 %v1032
          %1060 = vmatprep.subr.bf16.mxu0 %v1031
          %1061 = vmatpush1.bf16.msra.mxu0 %v1030
          %1062 = vmatprep.subr.bf16.mxu0 %v1029
          %1063 = vmatpush1.bf16.msra.mxu0 %v1028
          %1064 = vmatprep.subr.bf16.mxu0 %v1027
          %1065 = vmatpush1.bf16.msra.mxu0 %v1026
          %1066 = vmatprep.subr.bf16.mxu0 %v1025
          %1067 = vmatpush1.bf16.msra.mxu0 %v1024
          %1068 = vmatprep.subr.bf16.mxu0 %v1023
          %1069 = vmatpush1.bf16.msra.mxu0 %v1022
          %1070 = vmatprep.subr.bf16.mxu0 0
          %1071 = vmatpush2.bf16.msra.mxu0 0
          %1072 = vmatprep.subr.bf16.mxu0 0
          %1073 = vmatpush2.bf16.msra.mxu0 0
          %1074 = vmatprep.subr.bf16.mxu0 0
          %1075 = vmatpush2.bf16.msra.mxu0 0
          %1076 = vmatprep.subr.bf16.mxu0 0
          %1077 = vmatpush2.bf16.msra.mxu0 0
          %1078 = vmatprep.subr.bf16.mxu0 0
          %1079 = vmatpush2.bf16.msra.mxu0 0
          %1080 = vmatprep.subr.bf16.mxu0 0
          %1081 = vmatpush2.bf16.msra.mxu0 0
          %1082 = vmatprep.subr.bf16.mxu0 0
          %1083 = vmatpush2.bf16.msra.mxu0 0
          %1084 = vmatprep.subr.bf16.mxu0 0
          %1085 = vmatpush2.bf16.msra.mxu0 0
          %1086 = vmatprep.mubr.bf16.mxu0 0
          %1087 = vmatmul.mubr.bf16.gmra.mxu0 %v957
          %v1088 = vpop.f32.mrf.mxu0
          %v1089 = vadd.f32 0.0, %v1088
          %v1090 = vpop.f32.mrf.mxu0
          %v1091 = vadd.f32 0.0, %v1090
          %v1092 = vpop.f32.mrf.mxu0
          %v1093 = vadd.f32 0.0, %v1092
          %v1094 = vpop.f32.mrf.mxu0
          %v1095 = vadd.f32 0.0, %v1094
          %1096 = vdwg.mxu0
          %1097 = vxpose.xlu0.b32.start [1/16] %v1089, 128
          %1098 = vxpose.xlu0.b32.cont [2/16] %v1093, 128
          %1099 = vxpose.xlu0.b32.cont [3/16] 0.0, 128
          %1100 = vxpose.xlu0.b32.cont [4/16] 0.0, 128
          %1101 = vxpose.xlu0.b32.cont [5/16] 0.0, 128
          %1102 = vxpose.xlu0.b32.cont [6/16] 0.0, 128
          %1103 = vxpose.xlu0.b32.cont [7/16] 0.0, 128
          %1104 = vxpose.xlu0.b32.cont [8/16] 0.0, 128
          %1105 = vxpose.xlu0.b32.cont [9/16] 0.0, 128
          %1106 = vxpose.xlu0.b32.cont [10/16] 0.0, 128
          %1107 = vxpose.xlu0.b32.cont [11/16] 0.0, 128
          %1108 = vxpose.xlu0.b32.cont [12/16] 0.0, 128
          %1109 = vxpose.xlu0.b32.cont [13/16] 0.0, 128
          %1110 = vxpose.xlu0.b32.cont [14/16] 0.0, 128
          %1111 = vxpose.xlu0.b32.cont [15/16] 0.0, 128
          %1112 = vxpose.xlu0.b32.end [16/16] 0.0, 128
          %v1113 = vpop.trf.xlu0
          %v1114 = vpop.trf.xlu0
          %v1115 = vpop.trf.xlu0
          %v1116 = vpop.trf.xlu0
          %v1117 = vpop.trf.xlu0
          %v1118 = vpop.trf.xlu0
          %v1119 = vpop.trf.xlu0
          %v1120 = vpop.trf.xlu0
          %v1121 = vpop.trf.xlu0
          %v1122 = vpop.trf.xlu0
          %v1123 = vpop.trf.xlu0
          %v1124 = vpop.trf.xlu0
          %v1125 = vpop.trf.xlu0
          %v1126 = vpop.trf.xlu0
          %v1127 = vpop.trf.xlu0
          %v1128 = vpop.trf.xlu0
          %v1129 = vpack.c.bf16 %v1114, %v1113
          %v1130 = vpack.c.bf16 %v1116, %v1115
          %v1133 = vunpack.c.l.b16 %v1129
          %v1134 = vunpack.c.h.b16 %v1129
          %v1135 = vunpack.c.l.b16 %v1130
          %v1136 = vunpack.c.h.b16 %v1130
          %v1137 = vpack.c.b16 %v1133, %v1133
          %v1138 = vpack.c.b16 %v1134, %v1134
          %v1139 = vpack.c.b16 %v1135, %v1135
          %v1140 = vpack.c.b16 %v1136, %v1136
          %1145 = vst.msk [vmem:[#allocation4] sm:$0xf] %vm851, %v1137
          %1146 = vst.msk [vmem:[#allocation4 + $0x4] sm:$0xf] %vm851, %v1138
          %1147 = vst.msk [vmem:[#allocation4 + $0x8] sm:$0xf] %vm851, %v1139
          %1148 = vst.msk [vmem:[#allocation4 + $0xc] sm:$0xf] %vm851, %v1140
          %v1149 = vpack.c.bf16 %v1095, %v1091
          %v1151 = vunpack.c.l.b16 %v1149
          %v1152 = vunpack.c.h.b16 %v1149
          %v1153 = vpack.c.b16 %v1151, %v1151
          %v1154 = vpack.c.b16 %v1152, %v1152
          %1157 = vst.msk [vmem:[#allocation5] sm:$0xf] %vm864, %v1153
          %1158 = vst.msk [vmem:[#allocation5 + $0x4] sm:$0xf] %vm864, %v1154
          %v1159 = vpack.c.bf16 %v1118, %v1117
          %v1160 = vpack.c.bf16 %v1120, %v1119
          %v1163 = vunpack.c.l.b16 %v1159
          %v1164 = vunpack.c.h.b16 %v1159
          %v1165 = vunpack.c.l.b16 %v1160
          %v1166 = vunpack.c.h.b16 %v1160
          %v1167 = vpack.c.b16 %v1163, %v1163
          %v1168 = vpack.c.b16 %v1164, %v1164
          %v1169 = vpack.c.b16 %v1165, %v1165
          %v1170 = vpack.c.b16 %v1166, %v1166
          %s1175 = scalar_lea.vmem [#allocation4], 16
          %1176 = vst.msk [vmem:[%s1175] sm:$0xf] %vm851, %v1167
          %1177 = vst.msk [vmem:[%s1175 + $0x4] sm:$0xf] %vm851, %v1168
          %1178 = vst.msk [vmem:[%s1175 + $0x8] sm:$0xf] %vm851, %v1169
          %1179 = vst.msk [vmem:[%s1175 + $0xc] sm:$0xf] %vm851, %v1170
          %1180 = vrot.lane.b32.xlu0 %v1153, 96
          %v1181 = vpop.permute.xlu0 %1180
          %1182 = vrot.lane.b32.xlu0 %v1154, 96
          %v1183 = vpop.permute.xlu0 %1182
          %s1186 = scalar_lea.vmem [#allocation5], 8
          %1187 = vst.msk [vmem:[%s1186] sm:$0xf] %vm864, %v1181
          %1188 = vst.msk [vmem:[%s1186 + $0x4] sm:$0xf] %vm864, %v1183
          %v1189 = vpack.c.bf16 %v1122, %v1121
          %v1190 = vpack.c.bf16 %v1124, %v1123
          %v1193 = vunpack.c.l.b16 %v1189
          %v1194 = vunpack.c.h.b16 %v1189
          %v1195 = vunpack.c.l.b16 %v1190
          %v1196 = vunpack.c.h.b16 %v1190
          %v1197 = vpack.c.b16 %v1193, %v1193
          %v1198 = vpack.c.b16 %v1194, %v1194
          %v1199 = vpack.c.b16 %v1195, %v1195
          %v1200 = vpack.c.b16 %v1196, %v1196
          %s1205 = scalar_lea.vmem [#allocation4], 32
          %1206 = vst.msk [vmem:[%s1205] sm:$0xf] %vm851, %v1197
          %1207 = vst.msk [vmem:[%s1205 + $0x4] sm:$0xf] %vm851, %v1198
          %1208 = vst.msk [vmem:[%s1205 + $0x8] sm:$0xf] %vm851, %v1199
          %1209 = vst.msk [vmem:[%s1205 + $0xc] sm:$0xf] %vm851, %v1200
          %1210 = vrot.lane.b32.xlu0 %v1153, 64
          %v1211 = vpop.permute.xlu0 %1210
          %1212 = vrot.lane.b32.xlu0 %v1154, 64
          %v1213 = vpop.permute.xlu0 %1212
          %s1216 = scalar_lea.vmem [#allocation5], 16
          %1217 = vst.msk [vmem:[%s1216] sm:$0xf] %vm864, %v1211
          %1218 = vst.msk [vmem:[%s1216 + $0x4] sm:$0xf] %vm864, %v1213
          %v1219 = vpack.c.bf16 %v1126, %v1125
          %v1220 = vpack.c.bf16 %v1128, %v1127
          %v1223 = vunpack.c.l.b16 %v1219
          %v1224 = vunpack.c.h.b16 %v1219
          %v1225 = vunpack.c.l.b16 %v1220
          %v1226 = vunpack.c.h.b16 %v1220
          %v1227 = vpack.c.b16 %v1223, %v1223
          %v1228 = vpack.c.b16 %v1224, %v1224
          %v1229 = vpack.c.b16 %v1225, %v1225
          %v1230 = vpack.c.b16 %v1226, %v1226
          %s1235 = scalar_lea.vmem [#allocation4], 48
          %1236 = vst.msk [vmem:[%s1235] sm:$0xf] %vm851, %v1227
          %1237 = vst.msk [vmem:[%s1235 + $0x4] sm:$0xf] %vm851, %v1228
          %1238 = vst.msk [vmem:[%s1235 + $0x8] sm:$0xf] %vm851, %v1229
          %1239 = vst.msk [vmem:[%s1235 + $0xc] sm:$0xf] %vm851, %v1230
          %1240 = vrot.lane.b32.xlu0 %v1153, 32
          %v1241 = vpop.permute.xlu0 %1240
          %1242 = vrot.lane.b32.xlu0 %v1154, 32
          %v1243 = vpop.permute.xlu0 %1242
          %s1246 = scalar_lea.vmem [#allocation5], 24
          %1247 = vst.msk [vmem:[%s1246] sm:$0xf] %vm864, %v1241
          %1248 = vst.msk [vmem:[%s1246 + $0x4] sm:$0xf] %vm864, %v1243
        $region104: #{tpu_custom_call.1} parent=67 // pred_fallthru
          _
        %v1249 = vld [vmem:[%s538] sm:$0xff]
        %1250 = vadd.xlane.f32.xlu0 %v1249
        %v1251 = vpop.xlane.xlu0 %1250
        %v1252 = vrcp.pop 128.0
        %v1253 = vmul.f32 %v1251, %v1252
        %v1254 = vsub.f32 %v1249, %v1253
        %v1255 = vmul.f32 %v1254, %v1254
        %1256 = vadd.xlane.f32.xlu0 %v1255
        %v1257 = vpop.xlane.xlu0 %1256
        %v1258 = vmul.f32 %v1257, %v1252
        %v1259 = vadd.f32 %v1258, 1e-05
        %v1260 = vrsqrt.pop %v1259
        %v1261 = vmul.f32 %v1254, %v1260
        %v1262 = vld [vmem:[%s2] sm:$0x1]
        %v1264 = vlaneseq
        %v1265 = vshrl.u32 %v1264, 7
        %v1266 = vsub.s32 0, %v1265
        %v1267 = vrot.slane %v1262, %v1266
        %v1269 = vmul.f32 %v1261, %v1267
        %v1270 = vld [vmem:[%s3] sm:$0x1]
        %v1272 = vlaneseq
        %v1273 = vshrl.u32 %v1272, 7
        %v1274 = vsub.s32 0, %v1273
        %v1275 = vrot.slane %v1270, %v1274
        %v1277 = vadd.f32 %v1269, %v1275
        %v1278 = vpack.c.bf16 %v1277, %v1277
        %v1279 = vld [vmem:[#allocation13] sm:$0xf]
        %v1280 = vld [vmem:[#allocation13 + $0x4] sm:$0xf]
        %v1281 = vld [vmem:[#allocation13 + $0x8] sm:$0xf]
        %v1282 = vld [vmem:[#allocation13 + $0xc] sm:$0xf]
        %v1283 = vld [vmem:[#allocation13 + $0x10] sm:$0xf]
        %v1284 = vld [vmem:[#allocation13 + $0x14] sm:$0xf]
        %v1285 = vld [vmem:[#allocation13 + $0x18] sm:$0xf]
        %v1286 = vld [vmem:[#allocation13 + $0x1c] sm:$0xf]
        %v1287 = vld [vmem:[#allocation13 + $0x20] sm:$0xf]
        %v1288 = vld [vmem:[#allocation13 + $0x24] sm:$0xf]
        %v1289 = vld [vmem:[#allocation13 + $0x28] sm:$0xf]
        %v1290 = vld [vmem:[#allocation13 + $0x2c] sm:$0xf]
        %v1291 = vld [vmem:[#allocation13 + $0x30] sm:$0xf]
        %v1292 = vld [vmem:[#allocation13 + $0x34] sm:$0xf]
        %v1293 = vld [vmem:[#allocation13 + $0x38] sm:$0xf]
        %v1294 = vld [vmem:[#allocation13 + $0x3c] sm:$0xf]
        %v1311 = vunpack.c.l.b16 %v1279
        %v1312 = vunpack.c.l.b16 %v1280
        %v1313 = vunpack.c.l.b16 %v1281
        %v1314 = vunpack.c.l.b16 %v1282
        %v1315 = vunpack.c.l.b16 %v1283
        %v1316 = vunpack.c.l.b16 %v1284
        %v1317 = vunpack.c.l.b16 %v1285
        %v1318 = vunpack.c.l.b16 %v1286
        %v1319 = vunpack.c.l.b16 %v1287
        %v1320 = vunpack.c.l.b16 %v1288
        %v1321 = vunpack.c.l.b16 %v1289
        %v1322 = vunpack.c.l.b16 %v1290
        %v1323 = vunpack.c.l.b16 %v1291
        %v1324 = vunpack.c.l.b16 %v1292
        %v1325 = vunpack.c.l.b16 %v1293
        %v1326 = vunpack.c.l.b16 %v1294
        %v1327 = vpack.c.b16 %v1312, %v1311
        %v1328 = vpack.c.b16 %v1314, %v1313
        %v1329 = vpack.c.b16 %v1316, %v1315
        %v1330 = vpack.c.b16 %v1318, %v1317
        %v1331 = vpack.c.b16 %v1320, %v1319
        %v1332 = vpack.c.b16 %v1322, %v1321
        %v1333 = vpack.c.b16 %v1324, %v1323
        %v1334 = vpack.c.b16 %v1326, %v1325
        %1343 = vmatprep.subr.bf16.mxu0 0
        %1344 = vmatpush1.bf16.msra.mxu0 %v1334
        %1345 = vmatprep.subr.bf16.mxu0 0
        %1346 = vmatpush1.bf16.msra.mxu0 %v1333
        %1347 = vmatprep.subr.bf16.mxu0 0
        %1348 = vmatpush1.bf16.msra.mxu0 %v1332
        %1349 = vmatprep.subr.bf16.mxu0 0
        %1350 = vmatpush1.bf16.msra.mxu0 %v1331
        %1351 = vmatprep.subr.bf16.mxu0 0
        %1352 = vmatpush1.bf16.msra.mxu0 %v1330
        %1353 = vmatprep.subr.bf16.mxu0 0
        %1354 = vmatpush1.bf16.msra.mxu0 %v1329
        %1355 = vmatprep.subr.bf16.mxu0 0
        %1356 = vmatpush1.bf16.msra.mxu0 %v1328
        %1357 = vmatprep.subr.bf16.mxu0 0
        %1358 = vmatpush1.bf16.msra.mxu0 %v1327
        %1359 = vmatprep.subr.bf16.mxu0 0
        %1360 = vmatpush2.bf16.msra.mxu0 0
        %1361 = vmatprep.subr.bf16.mxu0 0
        %1362 = vmatpush2.bf16.msra.mxu0 0
        %1363 = vmatprep.subr.bf16.mxu0 0
        %1364 = vmatpush2.bf16.msra.mxu0 0
        %1365 = vmatprep.subr.bf16.mxu0 0
        %1366 = vmatpush2.bf16.msra.mxu0 0
        %1367 = vmatprep.subr.bf16.mxu0 0
        %1368 = vmatpush2.bf16.msra.mxu0 0
        %1369 = vmatprep.subr.bf16.mxu0 0
        %1370 = vmatpush2.bf16.msra.mxu0 0
        %1371 = vmatprep.subr.bf16.mxu0 0
        %1372 = vmatpush2.bf16.msra.mxu0 0
        %1373 = vmatprep.subr.bf16.mxu0 0
        %1374 = vmatpush2.bf16.msra.mxu0 0
        %1375 = vmatprep.mubr.bf16.mxu0 0
        %1376 = vmatmul.mubr.bf16.gmra.mxu0 %v1278
        %v1377 = vpop.f32.mrf.mxu0
        %v1378 = vadd.f32 0.0, %v1377
        %v1379 = vpop.f32.mrf.mxu0
        %v1380 = vpop.f32.mrf.mxu0
        %v1381 = vpop.f32.mrf.mxu0
        %1382 = vdwg.mxu0
        %v1383 = vpack.c.bf16 %v1378, %v1378
        %v1384 = vld [vmem:[#allocation2] sm:$0xf]
        %v1385 = vld [vmem:[#allocation2 + $0x4] sm:$0xf]
        %v1386 = vld [vmem:[#allocation2 + $0x8] sm:$0xf]
        %v1387 = vld [vmem:[#allocation2 + $0xc] sm:$0xf]
        %v1392 = vunpack.c.l.b16 %v1384
        %v1393 = vunpack.c.l.b16 %v1385
        %v1394 = vunpack.c.l.b16 %v1386
        %v1395 = vunpack.c.l.b16 %v1387
        %v1396 = vpack.c.b16 %v1393, %v1392
        %v1397 = vpack.c.b16 %v1395, %v1394
        %vm1400 = vcmask 261120
        %v1402 = vsel %vm1400, %v1383, 0
        %1404 = vmatprep.subr.bf16.mxu0 0
        %1405 = vmatpush1.bf16.msra.mxu0 0
        %1406 = vmatprep.subr.bf16.mxu0 0
        %1407 = vmatpush1.bf16.msra.mxu0 0
        %1408 = vmatprep.subr.bf16.mxu0 0
        %1409 = vmatpush1.bf16.msra.mxu0 0
        %1410 = vmatprep.subr.bf16.mxu0 0
        %1411 = vmatpush1.bf16.msra.mxu0 0
        %1412 = vmatprep.subr.bf16.mxu0 0
        %1413 = vmatpush1.bf16.msra.mxu0 0
        %1414 = vmatprep.subr.bf16.mxu0 0
        %1415 = vmatpush1.bf16.msra.mxu0 0
        %1416 = vmatprep.subr.bf16.mxu0 0
        %1417 = vmatpush1.bf16.msra.mxu0 %v1397
        %1418 = vmatprep.subr.bf16.mxu0 0
        %1419 = vmatpush1.bf16.msra.mxu0 %v1396
        %1420 = vmatprep.subr.bf16.mxu0 0
        %1421 = vmatpush2.bf16.msra.mxu0 0
        %1422 = vmatprep.subr.bf16.mxu0 0
        %1423 = vmatpush2.bf16.msra.mxu0 0
        %1424 = vmatprep.subr.bf16.mxu0 0
        %1425 = vmatpush2.bf16.msra.mxu0 0
        %1426 = vmatprep.subr.bf16.mxu0 0
        %1427 = vmatpush2.bf16.msra.mxu0 0
        %1428 = vmatprep.subr.bf16.mxu0 0
        %1429 = vmatpush2.bf16.msra.mxu0 0
        %1430 = vmatprep.subr.bf16.mxu0 0
        %1431 = vmatpush2.bf16.msra.mxu0 0
        %1432 = vmatprep.subr.bf16.mxu0 0
        %1433 = vmatpush2.bf16.msra.mxu0 0
        %1434 = vmatprep.subr.bf16.mxu0 0
        %1435 = vmatpush2.bf16.msra.mxu0 0
        %1436 = vmatprep.mubr.bf16.mxu0 0
        %1437 = vmatmul.mubr.bf16.gmra.mxu0 %v1402
        %v1438 = vpop.f32.mrf.mxu0
        %v1439 = vadd.f32 0.0, %v1438
        %v1440 = vpop.f32.mrf.mxu0
        %v1441 = vpop.f32.mrf.mxu0
        %v1442 = vpop.f32.mrf.mxu0
        %1443 = vdwg.mxu0
        %vm1444 = vcmask 130048
        %v1445 = vsel %vm1444, %v1439, -inf
        %1446 = vmax.xlane.f32.xlu0 %v1445
        %v1447 = vpop.xlane.xlu0 %1446
        %v1448 = vsub.f32 %v1439, %v1447
        %v1449 = vmul.f32 %v1448, 1.442695
        %v1450 = vpow.pop %v1449
        %v1451 = vsel %vm1444, %v1450, 0.0
        %1452 = vadd.xlane.f32.xlu0 %v1451
        %v1453 = vpop.xlane.xlu0 %1452
        %v1454 = vrcp.pop %v1453
        %v1455 = vmul.f32 %v1450, %v1454
        %v1456 = vpack.c.bf16 %v1455, %v1455
        %v1457 = vld [vmem:[#allocation3] sm:$0xf]
        %v1458 = vld [vmem:[#allocation3 + $0x4] sm:$0xf]
        %v1461 = vunpack.c.l.b16 %v1457
        %v1462 = vunpack.c.l.b16 %v1458
        %v1463 = vpack.c.b16 %v1462, %v1461
        %v1466 = vsel %vm1444, %v1456, 0
        %1468 = vmatprep.subr.bf16.mxu0 0
        %1469 = vmatpush1.bf16.msra.mxu0 0
        %1470 = vmatprep.subr.bf16.mxu0 0
        %1471 = vmatpush1.bf16.msra.mxu0 0
        %1472 = vmatprep.subr.bf16.mxu0 0
        %1473 = vmatpush1.bf16.msra.mxu0 0
        %1474 = vmatprep.subr.bf16.mxu0 0
        %1475 = vmatpush1.bf16.msra.mxu0 0
        %1476 = vmatprep.subr.bf16.mxu0 0
        %1477 = vmatpush1.bf16.msra.mxu0 0
        %1478 = vmatprep.subr.bf16.mxu0 0
        %1479 = vmatpush1.bf16.msra.mxu0 0
        %1480 = vmatprep.subr.bf16.mxu0 0
        %1481 = vmatpush1.bf16.msra.mxu0 0
        %1482 = vmatprep.subr.bf16.mxu0 0
        %1483 = vmatpush1.bf16.msra.mxu0 %v1463
        %1484 = vmatprep.subr.bf16.mxu0 0
        %1485 = vmatpush2.bf16.msra.mxu0 0
        %1486 = vmatprep.subr.bf16.mxu0 0
        %1487 = vmatpush2.bf16.msra.mxu0 0
        %1488 = vmatprep.subr.bf16.mxu0 0
        %1489 = vmatpush2.bf16.msra.mxu0 0
        %1490 = vmatprep.subr.bf16.mxu0 0
        %1491 = vmatpush2.bf16.msra.mxu0 0
        %1492 = vmatprep.subr.bf16.mxu0 0
        %1493 = vmatpush2.bf16.msra.mxu0 0
        %1494 = vmatprep.subr.bf16.mxu0 0
        %1495 = vmatpush2.bf16.msra.mxu0 0
        %1496 = vmatprep.subr.bf16.mxu0 0
        %1497 = vmatpush2.bf16.msra.mxu0 0
        %1498 = vmatprep.subr.bf16.mxu0 0
        %1499 = vmatpush2.bf16.msra.mxu0 0
        %1500 = vmatprep.mubr.bf16.mxu0 0
        %1501 = vmatmul.mubr.bf16.gmra.mxu0 %v1466
        %v1502 = vpop.f32.mrf.mxu0
        %v1503 = vadd.f32 0.0, %v1502
        %v1504 = vpop.f32.mrf.mxu0
        %v1505 = vpop.f32.mrf.mxu0
        %v1506 = vpop.f32.mrf.mxu0
        %1507 = vdwg.mxu0
        %v1508 = vpack.c.bf16 %v1503, %v1503
        %vm1509 = vcmask 257024
        %1510 = vst.msk [vmem:[#allocation6] sm:$0xf] %vm1509, %v1508
        %s1511 = scalar_lea.vmem [#allocation2], 16
        %v1512 = vld [vmem:[%s1511] sm:$0xf]
        %v1513 = vld [vmem:[%s1511 + $0x4] sm:$0xf]
        %v1514 = vld [vmem:[%s1511 + $0x8] sm:$0xf]
        %v1515 = vld [vmem:[%s1511 + $0xc] sm:$0xf]
        %1517 = vrot.lane.b32.xlu0 %v1383, 96
        %v1518 = vpop.permute.xlu0 %1517
        %v1523 = vunpack.c.l.b16 %v1512
        %v1524 = vunpack.c.l.b16 %v1513
        %v1525 = vunpack.c.l.b16 %v1514
        %v1526 = vunpack.c.l.b16 %v1515
        %v1527 = vpack.c.b16 %v1524, %v1523
        %v1528 = vpack.c.b16 %v1526, %v1525
        %v1532 = vsel %vm1400, %v1518, 0
        %1534 = vmatprep.subr.bf16.mxu0 0
        %1535 = vmatpush1.bf16.msra.mxu0 0
        %1536 = vmatprep.subr.bf16.mxu0 0
        %1537 = vmatpush1.bf16.msra.mxu0 0
        %1538 = vmatprep.subr.bf16.mxu0 0
        %1539 = vmatpush1.bf16.msra.mxu0 0
        %1540 = vmatprep.subr.bf16.mxu0 0
        %1541 = vmatpush1.bf16.msra.mxu0 0
        %1542 = vmatprep.subr.bf16.mxu0 0
        %1543 = vmatpush1.bf16.msra.mxu0 0
        %1544 = vmatprep.subr.bf16.mxu0 0
        %1545 = vmatpush1.bf16.msra.mxu0 0
        %1546 = vmatprep.subr.bf16.mxu0 0
        %1547 = vmatpush1.bf16.msra.mxu0 %v1528
        %1548 = vmatprep.subr.bf16.mxu0 0
        %1549 = vmatpush1.bf16.msra.mxu0 %v1527
        %1550 = vmatprep.subr.bf16.mxu0 0
        %1551 = vmatpush2.bf16.msra.mxu0 0
        %1552 = vmatprep.subr.bf16.mxu0 0
        %1553 = vmatpush2.bf16.msra.mxu0 0
        %1554 = vmatprep.subr.bf16.mxu0 0
        %1555 = vmatpush2.bf16.msra.mxu0 0
        %1556 = vmatprep.subr.bf16.mxu0 0
        %1557 = vmatpush2.bf16.msra.mxu0 0
        %1558 = vmatprep.subr.bf16.mxu0 0
        %1559 = vmatpush2.bf16.msra.mxu0 0
        %1560 = vmatprep.subr.bf16.mxu0 0
        %1561 = vmatpush2.bf16.msra.mxu0 0
        %1562 = vmatprep.subr.bf16.mxu0 0
        %1563 = vmatpush2.bf16.msra.mxu0 0
        %1564 = vmatprep.subr.bf16.mxu0 0
        %1565 = vmatpush2.bf16.msra.mxu0 0
        %1566 = vmatprep.mubr.bf16.mxu0 0
        %1567 = vmatmul.mubr.bf16.gmra.mxu0 %v1532
        %v1568 = vpop.f32.mrf.mxu0
        %v1569 = vadd.f32 0.0, %v1568
        %v1570 = vpop.f32.mrf.mxu0
        %v1571 = vpop.f32.mrf.mxu0
        %v1572 = vpop.f32.mrf.mxu0
        %1573 = vdwg.mxu0
        %v1574 = vsel %vm1444, %v1569, -inf
        %1575 = vmax.xlane.f32.xlu0 %v1574
        %v1576 = vpop.xlane.xlu0 %1575
        %v1577 = vsub.f32 %v1569, %v1576
        %v1578 = vmul.f32 %v1577, 1.442695
        %v1579 = vpow.pop %v1578
        %v1580 = vsel %vm1444, %v1579, 0.0
        %1581 = vadd.xlane.f32.xlu0 %v1580
        %v1582 = vpop.xlane.xlu0 %1581
        %v1583 = vrcp.pop %v1582
        %v1584 = vmul.f32 %v1579, %v1583
        %v1585 = vpack.c.bf16 %v1584, %v1584
        %s1586 = scalar_lea.vmem [#allocation3], 8
        %v1587 = vld [vmem:[%s1586] sm:$0xf]
        %v1588 = vld [vmem:[%s1586 + $0x4] sm:$0xf]
        %v1591 = vunpack.c.l.b16 %v1587
        %v1592 = vunpack.c.l.b16 %v1588
        %v1593 = vpack.c.b16 %v1592, %v1591
        %v1596 = vsel %vm1444, %v1585, 0
        %1598 = vmatprep.subr.bf16.mxu0 0
        %1599 = vmatpush1.bf16.msra.mxu0 0
        %1600 = vmatprep.subr.bf16.mxu0 0
        %1601 = vmatpush1.bf16.msra.mxu0 0
        %1602 = vmatprep.subr.bf16.mxu0 0
        %1603 = vmatpush1.bf16.msra.mxu0 0
        %1604 = vmatprep.subr.bf16.mxu0 0
        %1605 = vmatpush1.bf16.msra.mxu0 0
        %1606 = vmatprep.subr.bf16.mxu0 0
        %1607 = vmatpush1.bf16.msra.mxu0 0
        %1608 = vmatprep.subr.bf16.mxu0 0
        %1609 = vmatpush1.bf16.msra.mxu0 0
        %1610 = vmatprep.subr.bf16.mxu0 0
        %1611 = vmatpush1.bf16.msra.mxu0 0
        %1612 = vmatprep.subr.bf16.mxu0 0
        %1613 = vmatpush1.bf16.msra.mxu0 %v1593
        %1614 = vmatprep.subr.bf16.mxu0 0
        %1615 = vmatpush2.bf16.msra.mxu0 0
        %1616 = vmatprep.subr.bf16.mxu0 0
        %1617 = vmatpush2.bf16.msra.mxu0 0
        %1618 = vmatprep.subr.bf16.mxu0 0
        %1619 = vmatpush2.bf16.msra.mxu0 0
        %1620 = vmatprep.subr.bf16.mxu0 0
        %1621 = vmatpush2.bf16.msra.mxu0 0
        %1622 = vmatprep.subr.bf16.mxu0 0
        %1623 = vmatpush2.bf16.msra.mxu0 0
        %1624 = vmatprep.subr.bf16.mxu0 0
        %1625 = vmatpush2.bf16.msra.mxu0 0
        %1626 = vmatprep.subr.bf16.mxu0 0
        %1627 = vmatpush2.bf16.msra.mxu0 0
        %1628 = vmatprep.subr.bf16.mxu0 0
        %1629 = vmatpush2.bf16.msra.mxu0 0
        %1630 = vmatprep.mubr.bf16.mxu0 0
        %1631 = vmatmul.mubr.bf16.gmra.mxu0 %v1596
        %v1632 = vpop.f32.mrf.mxu0
        %v1633 = vadd.f32 0.0, %v1632
        %v1634 = vpop.f32.mrf.mxu0
        %v1635 = vpop.f32.mrf.mxu0
        %v1636 = vpop.f32.mrf.mxu0
        %1637 = vdwg.mxu0
        %v1638 = vpack.c.bf16 %v1633, %v1633
        %v1640 = vunpack.c.l.b16 %v1638
        %v1641 = vpack.c.b16 %v1640, %v1640
        %1642 = vrot.lane.b32.xlu0 %v1641, 32
        %v1643 = vpop.permute.xlu0 %1642
        %vm1645 = vcmask 519424
        %1646 = vst.msk [vmem:[#allocation6] sm:$0xf] %vm1645, %v1643
        %s1647 = scalar_lea.vmem [#allocation2], 32
        %v1648 = vld [vmem:[%s1647] sm:$0xf]
        %v1649 = vld [vmem:[%s1647 + $0x4] sm:$0xf]
        %v1650 = vld [vmem:[%s1647 + $0x8] sm:$0xf]
        %v1651 = vld [vmem:[%s1647 + $0xc] sm:$0xf]
        %1652 = vrot.lane.b32.xlu0 %v1383, 64
        %v1653 = vpop.permute.xlu0 %1652
        %v1658 = vunpack.c.l.b16 %v1648
        %v1659 = vunpack.c.l.b16 %v1649
        %v1660 = vunpack.c.l.b16 %v1650
        %v1661 = vunpack.c.l.b16 %v1651
        %v1662 = vpack.c.b16 %v1659, %v1658
        %v1663 = vpack.c.b16 %v1661, %v1660
        %v1667 = vsel %vm1400, %v1653, 0
        %1669 = vmatprep.subr.bf16.mxu0 0
        %1670 = vmatpush1.bf16.msra.mxu0 0
        %1671 = vmatprep.subr.bf16.mxu0 0
        %1672 = vmatpush1.bf16.msra.mxu0 0
        %1673 = vmatprep.subr.bf16.mxu0 0
        %1674 = vmatpush1.bf16.msra.mxu0 0
        %1675 = vmatprep.subr.bf16.mxu0 0
        %1676 = vmatpush1.bf16.msra.mxu0 0
        %1677 = vmatprep.subr.bf16.mxu0 0
        %1678 = vmatpush1.bf16.msra.mxu0 0
        %1679 = vmatprep.subr.bf16.mxu0 0
        %1680 = vmatpush1.bf16.msra.mxu0 0
        %1681 = vmatprep.subr.bf16.mxu0 0
        %1682 = vmatpush1.bf16.msra.mxu0 %v1663
        %1683 = vmatprep.subr.bf16.mxu0 0
        %1684 = vmatpush1.bf16.msra.mxu0 %v1662
        %1685 = vmatprep.subr.bf16.mxu0 0
        %1686 = vmatpush2.bf16.msra.mxu0 0
        %1687 = vmatprep.subr.bf16.mxu0 0
        %1688 = vmatpush2.bf16.msra.mxu0 0
        %1689 = vmatprep.subr.bf16.mxu0 0
        %1690 = vmatpush2.bf16.msra.mxu0 0
        %1691 = vmatprep.subr.bf16.mxu0 0
        %1692 = vmatpush2.bf16.msra.mxu0 0
        %1693 = vmatprep.subr.bf16.mxu0 0
        %1694 = vmatpush2.bf16.msra.mxu0 0
        %1695 = vmatprep.subr.bf16.mxu0 0
        %1696 = vmatpush2.bf16.msra.mxu0 0
        %1697 = vmatprep.subr.bf16.mxu0 0
        %1698 = vmatpush2.bf16.msra.mxu0 0
        %1699 = vmatprep.subr.bf16.mxu0 0
        %1700 = vmatpush2.bf16.msra.mxu0 0
        %1701 = vmatprep.mubr.bf16.mxu0 0
        %1702 = vmatmul.mubr.bf16.gmra.mxu0 %v1667
        %v1703 = vpop.f32.mrf.mxu0
        %v1704 = vadd.f32 0.0, %v1703
        %v1705 = vpop.f32.mrf.mxu0
        %v1706 = vpop.f32.mrf.mxu0
        %v1707 = vpop.f32.mrf.mxu0
        %1708 = vdwg.mxu0
        %v1709 = vsel %vm1444, %v1704, -inf
        %1710 = vmax.xlane.f32.xlu0 %v1709
        %v1711 = vpop.xlane.xlu0 %1710
        %v1712 = vsub.f32 %v1704, %v1711
        %v1713 = vmul.f32 %v1712, 1.442695
        %v1714 = vpow.pop %v1713
        %v1715 = vsel %vm1444, %v1714, 0.0
        %1716 = vadd.xlane.f32.xlu0 %v1715
        %v1717 = vpop.xlane.xlu0 %1716
        %v1718 = vrcp.pop %v1717
        %v1719 = vmul.f32 %v1714, %v1718
        %v1720 = vpack.c.bf16 %v1719, %v1719
        %s1721 = scalar_lea.vmem [#allocation3], 16
        %v1722 = vld [vmem:[%s1721] sm:$0xf]
        %v1723 = vld [vmem:[%s1721 + $0x4] sm:$0xf]
        %v1726 = vunpack.c.l.b16 %v1722
        %v1727 = vunpack.c.l.b16 %v1723
        %v1728 = vpack.c.b16 %v1727, %v1726
        %v1731 = vsel %vm1444, %v1720, 0
        %1733 = vmatprep.subr.bf16.mxu0 0
        %1734 = vmatpush1.bf16.msra.mxu0 0
        %1735 = vmatprep.subr.bf16.mxu0 0
        %1736 = vmatpush1.bf16.msra.mxu0 0
        %1737 = vmatprep.subr.bf16.mxu0 0
        %1738 = vmatpush1.bf16.msra.mxu0 0
        %1739 = vmatprep.subr.bf16.mxu0 0
        %1740 = vmatpush1.bf16.msra.mxu0 0
        %1741 = vmatprep.subr.bf16.mxu0 0
        %1742 = vmatpush1.bf16.msra.mxu0 0
        %1743 = vmatprep.subr.bf16.mxu0 0
        %1744 = vmatpush1.bf16.msra.mxu0 0
        %1745 = vmatprep.subr.bf16.mxu0 0
        %1746 = vmatpush1.bf16.msra.mxu0 0
        %1747 = vmatprep.subr.bf16.mxu0 0
        %1748 = vmatpush1.bf16.msra.mxu0 %v1728
        %1749 = vmatprep.subr.bf16.mxu0 0
        %1750 = vmatpush2.bf16.msra.mxu0 0
        %1751 = vmatprep.subr.bf16.mxu0 0
        %1752 = vmatpush2.bf16.msra.mxu0 0
        %1753 = vmatprep.subr.bf16.mxu0 0
        %1754 = vmatpush2.bf16.msra.mxu0 0
        %1755 = vmatprep.subr.bf16.mxu0 0
        %1756 = vmatpush2.bf16.msra.mxu0 0
        %1757 = vmatprep.subr.bf16.mxu0 0
        %1758 = vmatpush2.bf16.msra.mxu0 0
        %1759 = vmatprep.subr.bf16.mxu0 0
        %1760 = vmatpush2.bf16.msra.mxu0 0
        %1761 = vmatprep.subr.bf16.mxu0 0
        %1762 = vmatpush2.bf16.msra.mxu0 0
        %1763 = vmatprep.subr.bf16.mxu0 0
        %1764 = vmatpush2.bf16.msra.mxu0 0
        %1765 = vmatprep.mubr.bf16.mxu0 0
        %1766 = vmatmul.mubr.bf16.gmra.mxu0 %v1731
        %v1767 = vpop.f32.mrf.mxu0
        %v1768 = vadd.f32 0.0, %v1767
        %v1769 = vpop.f32.mrf.mxu0
        %v1770 = vpop.f32.mrf.mxu0
        %v1771 = vpop.f32.mrf.mxu0
        %1772 = vdwg.mxu0
        %v1773 = vpack.c.bf16 %v1768, %v1768
        %v1775 = vunpack.c.l.b16 %v1773
        %v1776 = vpack.c.b16 %v1775, %v1775
        %1777 = vrot.lane.b32.xlu0 %v1776, 64
        %v1778 = vpop.permute.xlu0 %1777
        %vm1780 = vcmask 781824
        %1781 = vst.msk [vmem:[#allocation6] sm:$0xf] %vm1780, %v1778
        %s1782 = scalar_lea.vmem [#allocation2], 48
        %v1783 = vld [vmem:[%s1782] sm:$0xf]
        %v1784 = vld [vmem:[%s1782 + $0x4] sm:$0xf]
        %v1785 = vld [vmem:[%s1782 + $0x8] sm:$0xf]
        %v1786 = vld [vmem:[%s1782 + $0xc] sm:$0xf]
        %1787 = vrot.lane.b32.xlu0 %v1383, 32
        %v1788 = vpop.permute.xlu0 %1787
        %v1793 = vunpack.c.l.b16 %v1783
        %v1794 = vunpack.c.l.b16 %v1784
        %v1795 = vunpack.c.l.b16 %v1785
        %v1796 = vunpack.c.l.b16 %v1786
        %v1797 = vpack.c.b16 %v1794, %v1793
        %v1798 = vpack.c.b16 %v1796, %v1795
        %v1802 = vsel %vm1400, %v1788, 0
        %1804 = vmatprep.subr.bf16.mxu0 0
        %1805 = vmatpush1.bf16.msra.mxu0 0
        %1806 = vmatprep.subr.bf16.mxu0 0
        %1807 = vmatpush1.bf16.msra.mxu0 0
        %1808 = vmatprep.subr.bf16.mxu0 0
        %1809 = vmatpush1.bf16.msra.mxu0 0
        %1810 = vmatprep.subr.bf16.mxu0 0
        %1811 = vmatpush1.bf16.msra.mxu0 0
        %1812 = vmatprep.subr.bf16.mxu0 0
        %1813 = vmatpush1.bf16.msra.mxu0 0
        %1814 = vmatprep.subr.bf16.mxu0 0
        %1815 = vmatpush1.bf16.msra.mxu0 0
        %1816 = vmatprep.subr.bf16.mxu0 0
        %1817 = vmatpush1.bf16.msra.mxu0 %v1798
        %1818 = vmatprep.subr.bf16.mxu0 0
        %1819 = vmatpush1.bf16.msra.mxu0 %v1797
        %1820 = vmatprep.subr.bf16.mxu0 0
        %1821 = vmatpush2.bf16.msra.mxu0 0
        %1822 = vmatprep.subr.bf16.mxu0 0
        %1823 = vmatpush2.bf16.msra.mxu0 0
        %1824 = vmatprep.subr.bf16.mxu0 0
        %1825 = vmatpush2.bf16.msra.mxu0 0
        %1826 = vmatprep.subr.bf16.mxu0 0
        %1827 = vmatpush2.bf16.msra.mxu0 0
        %1828 = vmatprep.subr.bf16.mxu0 0
        %1829 = vmatpush2.bf16.msra.mxu0 0
        %1830 = vmatprep.subr.bf16.mxu0 0
        %1831 = vmatpush2.bf16.msra.mxu0 0
        %1832 = vmatprep.subr.bf16.mxu0 0
        %1833 = vmatpush2.bf16.msra.mxu0 0
        %1834 = vmatprep.subr.bf16.mxu0 0
        %1835 = vmatpush2.bf16.msra.mxu0 0
        %1836 = vmatprep.mubr.bf16.mxu0 0
        %1837 = vmatmul.mubr.bf16.gmra.mxu0 %v1802
        %v1838 = vpop.f32.mrf.mxu0
        %v1839 = vadd.f32 0.0, %v1838
        %v1840 = vpop.f32.mrf.mxu0
        %v1841 = vpop.f32.mrf.mxu0
        %v1842 = vpop.f32.mrf.mxu0
        %1843 = vdwg.mxu0
        %v1844 = vsel %vm1444, %v1839, -inf
        %1845 = vmax.xlane.f32.xlu0 %v1844
        %v1846 = vpop.xlane.xlu0 %1845
        %v1847 = vsub.f32 %v1839, %v1846
        %v1848 = vmul.f32 %v1847, 1.442695
        %v1849 = vpow.pop %v1848
        %v1850 = vsel %vm1444, %v1849, 0.0
        %1851 = vadd.xlane.f32.xlu0 %v1850
        %v1852 = vpop.xlane.xlu0 %1851
        %v1853 = vrcp.pop %v1852
        %v1854 = vmul.f32 %v1849, %v1853
        %v1855 = vpack.c.bf16 %v1854, %v1854
        %s1856 = scalar_lea.vmem [#allocation3], 24
        %v1857 = vld [vmem:[%s1856] sm:$0xf]
        %v1858 = vld [vmem:[%s1856 + $0x4] sm:$0xf]
        %v1861 = vunpack.c.l.b16 %v1857
        %v1862 = vunpack.c.l.b16 %v1858
        %v1863 = vpack.c.b16 %v1862, %v1861
        %v1866 = vsel %vm1444, %v1855, 0
        %1868 = vmatprep.subr.bf16.mxu0 0
        %1869 = vmatpush1.bf16.msra.mxu0 0
        %1870 = vmatprep.subr.bf16.mxu0 0
        %1871 = vmatpush1.bf16.msra.mxu0 0
        %1872 = vmatprep.subr.bf16.mxu0 0
        %1873 = vmatpush1.bf16.msra.mxu0 0
        %1874 = vmatprep.subr.bf16.mxu0 0
        %1875 = vmatpush1.bf16.msra.mxu0 0
        %1876 = vmatprep.subr.bf16.mxu0 0
        %1877 = vmatpush1.bf16.msra.mxu0 0
        %1878 = vmatprep.subr.bf16.mxu0 0
        %1879 = vmatpush1.bf16.msra.mxu0 0
        %1880 = vmatprep.subr.bf16.mxu0 0
        %1881 = vmatpush1.bf16.msra.mxu0 0
        %1882 = vmatprep.subr.bf16.mxu0 0
        %1883 = vmatpush1.bf16.msra.mxu0 %v1863
        %1884 = vmatprep.subr.bf16.mxu0 0
        %1885 = vmatpush2.bf16.msra.mxu0 0
        %1886 = vmatprep.subr.bf16.mxu0 0
        %1887 = vmatpush2.bf16.msra.mxu0 0
        %1888 = vmatprep.subr.bf16.mxu0 0
        %1889 = vmatpush2.bf16.msra.mxu0 0
        %1890 = vmatprep.subr.bf16.mxu0 0
        %1891 = vmatpush2.bf16.msra.mxu0 0
        %1892 = vmatprep.subr.bf16.mxu0 0
        %1893 = vmatpush2.bf16.msra.mxu0 0
        %1894 = vmatprep.subr.bf16.mxu0 0
        %1895 = vmatpush2.bf16.msra.mxu0 0
        %1896 = vmatprep.subr.bf16.mxu0 0
        %1897 = vmatpush2.bf16.msra.mxu0 0
        %1898 = vmatprep.subr.bf16.mxu0 0
        %1899 = vmatpush2.bf16.msra.mxu0 0
        %1900 = vmatprep.mubr.bf16.mxu0 0
        %1901 = vmatmul.mubr.bf16.gmra.mxu0 %v1866
        %v1902 = vpop.f32.mrf.mxu0
        %v1903 = vadd.f32 0.0, %v1902
        %v1904 = vpop.f32.mrf.mxu0
        %v1905 = vpop.f32.mrf.mxu0
        %v1906 = vpop.f32.mrf.mxu0
        %1907 = vdwg.mxu0
        %v1908 = vpack.c.bf16 %v1903, %v1903
        %v1910 = vunpack.c.l.b16 %v1908
        %v1911 = vpack.c.b16 %v1910, %v1910
        %1912 = vrot.lane.b32.xlu0 %v1911, 96
        %v1913 = vpop.permute.xlu0 %1912
        %vm1915 = vcmask 1044224
        %1916 = vst.msk [vmem:[#allocation6] sm:$0xf] %vm1915, %v1913
        %v1917 = vld [vmem:[#allocation6] sm:$0xf]
        %v1918 = vld [vmem:[#allocation15] sm:$0xf]
        %v1919 = vld [vmem:[#allocation15 + $0x4] sm:$0xf]
        %v1920 = vld [vmem:[#allocation15 + $0x8] sm:$0xf]
        %v1921 = vld [vmem:[#allocation15 + $0xc] sm:$0xf]
        %v1922 = vld [vmem:[#allocation15 + $0x10] sm:$0xf]
        %v1923 = vld [vmem:[#allocation15 + $0x14] sm:$0xf]
        %v1924 = vld [vmem:[#allocation15 + $0x18] sm:$0xf]
        %v1925 = vld [vmem:[#allocation15 + $0x1c] sm:$0xf]
        %v1926 = vld [vmem:[#allocation15 + $0x20] sm:$0xf]
        %v1927 = vld [vmem:[#allocation15 + $0x24] sm:$0xf]
        %v1928 = vld [vmem:[#allocation15 + $0x28] sm:$0xf]
        %v1929 = vld [vmem:[#allocation15 + $0x2c] sm:$0xf]
        %v1930 = vld [vmem:[#allocation15 + $0x30] sm:$0xf]
        %v1931 = vld [vmem:[#allocation15 + $0x34] sm:$0xf]
        %v1932 = vld [vmem:[#allocation15 + $0x38] sm:$0xf]
        %v1933 = vld [vmem:[#allocation15 + $0x3c] sm:$0xf]
        %v1934 = vld [vmem:[%s7] sm:$0x1]
        %v1936 = vlaneseq
        %v1937 = vshrl.u32 %v1936, 7
        %v1938 = vsub.s32 0, %v1937
        %v1939 = vrot.slane %v1934, %v1938
        %v1957 = vunpack.c.l.b16 %v1918
        %v1958 = vunpack.c.l.b16 %v1919
        %v1959 = vunpack.c.l.b16 %v1920
        %v1960 = vunpack.c.l.b16 %v1921
        %v1961 = vunpack.c.l.b16 %v1922
        %v1962 = vunpack.c.l.b16 %v1923
        %v1963 = vunpack.c.l.b16 %v1924
        %v1964 = vunpack.c.l.b16 %v1925
        %v1965 = vunpack.c.l.b16 %v1926
        %v1966 = vunpack.c.l.b16 %v1927
        %v1967 = vunpack.c.l.b16 %v1928
        %v1968 = vunpack.c.l.b16 %v1929
        %v1969 = vunpack.c.l.b16 %v1930
        %v1970 = vunpack.c.l.b16 %v1931
        %v1971 = vunpack.c.l.b16 %v1932
        %v1972 = vunpack.c.l.b16 %v1933
        %v1973 = vpack.c.b16 %v1958, %v1957
        %v1974 = vpack.c.b16 %v1960, %v1959
        %v1975 = vpack.c.b16 %v1962, %v1961
        %v1976 = vpack.c.b16 %v1964, %v1963
        %v1977 = vpack.c.b16 %v1966, %v1965
        %v1978 = vpack.c.b16 %v1968, %v1967
        %v1979 = vpack.c.b16 %v1970, %v1969
        %v1980 = vpack.c.b16 %v1972, %v1971
        %1989 = vmatprep.subr.bf16.mxu0 0
        %1990 = vmatpush1.bf16.msra.mxu0 %v1980
        %1991 = vmatprep.subr.bf16.mxu0 0
        %1992 = vmatpush1.bf16.msra.mxu0 %v1979
        %1993 = vmatprep.subr.bf16.mxu0 0
        %1994 = vmatpush1.bf16.msra.mxu0 %v1978
        %1995 = vmatprep.subr.bf16.mxu0 0
        %1996 = vmatpush1.bf16.msra.mxu0 %v1977
        %1997 = vmatprep.subr.bf16.mxu0 0
        %1998 = vmatpush1.bf16.msra.mxu0 %v1976
        %1999 = vmatprep.subr.bf16.mxu0 0
        %2000 = vmatpush1.bf16.msra.mxu0 %v1975
        %2001 = vmatprep.subr.bf16.mxu0 0
        %2002 = vmatpush1.bf16.msra.mxu0 %v1974
        %2003 = vmatprep.subr.bf16.mxu0 0
        %2004 = vmatpush1.bf16.msra.mxu0 %v1973
        %2005 = vmatprep.subr.bf16.mxu0 0
        %2006 = vmatpush2.bf16.msra.mxu0 0
        %2007 = vmatprep.subr.bf16.mxu0 0
        %2008 = vmatpush2.bf16.msra.mxu0 0
        %2009 = vmatprep.subr.bf16.mxu0 0
        %2010 = vmatpush2.bf16.msra.mxu0 0
        %2011 = vmatprep.subr.bf16.mxu0 0
        %2012 = vmatpush2.bf16.msra.mxu0 0
        %2013 = vmatprep.subr.bf16.mxu0 0
        %2014 = vmatpush2.bf16.msra.mxu0 0
        %2015 = vmatprep.subr.bf16.mxu0 0
        %2016 = vmatpush2.bf16.msra.mxu0 0
        %2017 = vmatprep.subr.bf16.mxu0 0
        %2018 = vmatpush2.bf16.msra.mxu0 0
        %2019 = vmatprep.subr.bf16.mxu0 0
        %2020 = vmatpush2.bf16.msra.mxu0 0
        %2021 = vmatprep.mubr.bf16.mxu0 0
        %2022 = vmatmul.mubr.bf16.gmra.mxu0 %v1917
        %v2023 = vpop.f32.mrf.mxu0
        %v2024 = vadd.f32 %v1939, %v2023
        %v2025 = vpop.f32.mrf.mxu0
        %v2026 = vpop.f32.mrf.mxu0
        %v2027 = vpop.f32.mrf.mxu0
        %2028 = vdwg.mxu0
        %2029 = vst [vmem:[%s607] sm:$0xff] %v2024
        %s2030 = smul.u32 %s45, 8
        %s2031 = scalar_lea.vmem %s529, %s2030 [#allocation7]
        %v2032 = vld [vmem:[%s2031] sm:$0xff]
        %v2033 = vpack.c.bf16 %v2032, %v2032
        %v2034 = vld [vmem:[#allocation18] sm:$0xf]
        %v2035 = vld [vmem:[#allocation18 + $0x4] sm:$0xf]
        %v2036 = vld [vmem:[#allocation18 + $0x8] sm:$0xf]
        %v2037 = vld [vmem:[#allocation18 + $0xc] sm:$0xf]
        %v2038 = vld [vmem:[#allocation18 + $0x10] sm:$0xf]
        %v2039 = vld [vmem:[#allocation18 + $0x14] sm:$0xf]
        %v2040 = vld [vmem:[#allocation18 + $0x18] sm:$0xf]
        %v2041 = vld [vmem:[#allocation18 + $0x1c] sm:$0xf]
        %v2042 = vld [vmem:[#allocation18 + $0x20] sm:$0xf]
        %v2043 = vld [vmem:[#allocation18 + $0x24] sm:$0xf]
        %v2044 = vld [vmem:[#allocation18 + $0x28] sm:$0xf]
        %v2045 = vld [vmem:[#allocation18 + $0x2c] sm:$0xf]
        %v2046 = vld [vmem:[#allocation18 + $0x30] sm:$0xf]
        %v2047 = vld [vmem:[#allocation18 + $0x34] sm:$0xf]
        %v2048 = vld [vmem:[#allocation18 + $0x38] sm:$0xf]
        %v2049 = vld [vmem:[#allocation18 + $0x3c] sm:$0xf]
        %v2066 = vunpack.c.l.b16 %v2034
        %v2067 = vunpack.c.l.b16 %v2035
        %v2068 = vunpack.c.l.b16 %v2036
        %v2069 = vunpack.c.l.b16 %v2037
        %v2070 = vunpack.c.l.b16 %v2038
        %v2071 = vunpack.c.l.b16 %v2039
        %v2072 = vunpack.c.l.b16 %v2040
        %v2073 = vunpack.c.l.b16 %v2041
        %v2074 = vunpack.c.l.b16 %v2042
        %v2075 = vunpack.c.l.b16 %v2043
        %v2076 = vunpack.c.l.b16 %v2044
        %v2077 = vunpack.c.l.b16 %v2045
        %v2078 = vunpack.c.l.b16 %v2046
        %v2079 = vunpack.c.l.b16 %v2047
        %v2080 = vunpack.c.l.b16 %v2048
        %v2081 = vunpack.c.l.b16 %v2049
        %v2082 = vpack.c.b16 %v2067, %v2066
        %v2083 = vpack.c.b16 %v2069, %v2068
        %v2084 = vpack.c.b16 %v2071, %v2070
        %v2085 = vpack.c.b16 %v2073, %v2072
        %v2086 = vpack.c.b16 %v2075, %v2074
        %v2087 = vpack.c.b16 %v2077, %v2076
        %v2088 = vpack.c.b16 %v2079, %v2078
        %v2089 = vpack.c.b16 %v2081, %v2080
        %2098 = vmatprep.subr.bf16.mxu0 0
        %2099 = vmatpush1.bf16.msra.mxu0 %v2089
        %2100 = vmatprep.subr.bf16.mxu0 0
        %2101 = vmatpush1.bf16.msra.mxu0 %v2088
        %2102 = vmatprep.subr.bf16.mxu0 0
        %2103 = vmatpush1.bf16.msra.mxu0 %v2087
        %2104 = vmatprep.subr.bf16.mxu0 0
        %2105 = vmatpush1.bf16.msra.mxu0 %v2086
        %2106 = vmatprep.subr.bf16.mxu0 0
        %2107 = vmatpush1.bf16.msra.mxu0 %v2085
        %2108 = vmatprep.subr.bf16.mxu0 0
        %2109 = vmatpush1.bf16.msra.mxu0 %v2084
        %2110 = vmatprep.subr.bf16.mxu0 0
        %2111 = vmatpush1.bf16.msra.mxu0 %v2083
        %2112 = vmatprep.subr.bf16.mxu0 0
        %2113 = vmatpush1.bf16.msra.mxu0 %v2082
        %2114 = vmatprep.subr.bf16.mxu0 0
        %2115 = vmatpush2.bf16.msra.mxu0 0
        %2116 = vmatprep.subr.bf16.mxu0 0
        %2117 = vmatpush2.bf16.msra.mxu0 0
        %2118 = vmatprep.subr.bf16.mxu0 0
        %2119 = vmatpush2.bf16.msra.mxu0 0
        %2120 = vmatprep.subr.bf16.mxu0 0
        %2121 = vmatpush2.bf16.msra.mxu0 0
        %2122 = vmatprep.subr.bf16.mxu0 0
        %2123 = vmatpush2.bf16.msra.mxu0 0
        %2124 = vmatprep.subr.bf16.mxu0 0
        %2125 = vmatpush2.bf16.msra.mxu0 0
        %2126 = vmatprep.subr.bf16.mxu0 0
        %2127 = vmatpush2.bf16.msra.mxu0 0
        %2128 = vmatprep.subr.bf16.mxu0 0
        %2129 = vmatpush2.bf16.msra.mxu0 0
        %2130 = vmatprep.mubr.bf16.mxu0 0
        %2131 = vmatmul.mubr.bf16.gmra.mxu0 %v2033
        %v2132 = vpop.f32.mrf.mxu0
        %v2133 = vadd.f32 0.0, %v2132
        %v2134 = vpop.f32.mrf.mxu0
        %v2135 = vpop.f32.mrf.mxu0
        %v2136 = vpop.f32.mrf.mxu0
        %2137 = vdwg.mxu0
        %v2138 = vpack.c.bf16 %v2133, %v2133
        %v2139 = vld [vmem:[#allocation4] sm:$0xf]
        %v2140 = vld [vmem:[#allocation4 + $0x4] sm:$0xf]
        %v2141 = vld [vmem:[#allocation4 + $0x8] sm:$0xf]
        %v2142 = vld [vmem:[#allocation4 + $0xc] sm:$0xf]
        %v2147 = vunpack.c.l.b16 %v2139
        %v2148 = vunpack.c.l.b16 %v2140
        %v2149 = vunpack.c.l.b16 %v2141
        %v2150 = vunpack.c.l.b16 %v2142
        %v2151 = vpack.c.b16 %v2148, %v2147
        %v2152 = vpack.c.b16 %v2150, %v2149
        %v2156 = vsel %vm1400, %v2138, 0
        %2158 = vmatprep.subr.bf16.mxu0 0
        %2159 = vmatpush1.bf16.msra.mxu0 0
        %2160 = vmatprep.subr.bf16.mxu0 0
        %2161 = vmatpush1.bf16.msra.mxu0 0
        %2162 = vmatprep.subr.bf16.mxu0 0
        %2163 = vmatpush1.bf16.msra.mxu0 0
        %2164 = vmatprep.subr.bf16.mxu0 0
        %2165 = vmatpush1.bf16.msra.mxu0 0
        %2166 = vmatprep.subr.bf16.mxu0 0
        %2167 = vmatpush1.bf16.msra.mxu0 0
        %2168 = vmatprep.subr.bf16.mxu0 0
        %2169 = vmatpush1.bf16.msra.mxu0 0
        %2170 = vmatprep.subr.bf16.mxu0 0
        %2171 = vmatpush1.bf16.msra.mxu0 %v2152
        %2172 = vmatprep.subr.bf16.mxu0 0
        %2173 = vmatpush1.bf16.msra.mxu0 %v2151
        %2174 = vmatprep.subr.bf16.mxu0 0
        %2175 = vmatpush2.bf16.msra.mxu0 0
        %2176 = vmatprep.subr.bf16.mxu0 0
        %2177 = vmatpush2.bf16.msra.mxu0 0
        %2178 = vmatprep.subr.bf16.mxu0 0
        %2179 = vmatpush2.bf16.msra.mxu0 0
        %2180 = vmatprep.subr.bf16.mxu0 0
        %2181 = vmatpush2.bf16.msra.mxu0 0
        %2182 = vmatprep.subr.bf16.mxu0 0
        %2183 = vmatpush2.bf16.msra.mxu0 0
        %2184 = vmatprep.subr.bf16.mxu0 0
        %2185 = vmatpush2.bf16.msra.mxu0 0
        %2186 = vmatprep.subr.bf16.mxu0 0
        %2187 = vmatpush2.bf16.msra.mxu0 0
        %2188 = vmatprep.subr.bf16.mxu0 0
        %2189 = vmatpush2.bf16.msra.mxu0 0
        %2190 = vmatprep.mubr.bf16.mxu0 0
        %2191 = vmatmul.mubr.bf16.gmra.mxu0 %v2156
        %v2192 = vpop.f32.mrf.mxu0
        %v2193 = vadd.f32 0.0, %v2192
        %v2194 = vpop.f32.mrf.mxu0
        %v2195 = vpop.f32.mrf.mxu0
        %v2196 = vpop.f32.mrf.mxu0
        %2197 = vdwg.mxu0
        %v2198 = vsel %vm1444, %v2193, -inf
        %2199 = vmax.xlane.f32.xlu0 %v2198
        %v2200 = vpop.xlane.xlu0 %2199
        %v2201 = vsub.f32 %v2193, %v2200
        %v2202 = vmul.f32 %v2201, 1.442695
        %v2203 = vpow.pop %v2202
        %v2204 = vsel %vm1444, %v2203, 0.0
        %2205 = vadd.xlane.f32.xlu0 %v2204
        %v2206 = vpop.xlane.xlu0 %2205
        %v2207 = vrcp.pop %v2206
        %v2208 = vmul.f32 %v2203, %v2207
        %v2209 = vpack.c.bf16 %v2208, %v2208
        %v2210 = vld [vmem:[#allocation5] sm:$0xf]
        %v2211 = vld [vmem:[#allocation5 + $0x4] sm:$0xf]
        %v2214 = vunpack.c.l.b16 %v2210
        %v2215 = vunpack.c.l.b16 %v2211
        %v2216 = vpack.c.b16 %v2215, %v2214
        %v2219 = vsel %vm1444, %v2209, 0
        %2221 = vmatprep.subr.bf16.mxu0 0
        %2222 = vmatpush1.bf16.msra.mxu0 0
        %2223 = vmatprep.subr.bf16.mxu0 0
        %2224 = vmatpush1.bf16.msra.mxu0 0
        %2225 = vmatprep.subr.bf16.mxu0 0
        %2226 = vmatpush1.bf16.msra.mxu0 0
        %2227 = vmatprep.subr.bf16.mxu0 0
        %2228 = vmatpush1.bf16.msra.mxu0 0
        %2229 = vmatprep.subr.bf16.mxu0 0
        %2230 = vmatpush1.bf16.msra.mxu0 0
        %2231 = vmatprep.subr.bf16.mxu0 0
        %2232 = vmatpush1.bf16.msra.mxu0 0
        %2233 = vmatprep.subr.bf16.mxu0 0
        %2234 = vmatpush1.bf16.msra.mxu0 0
        %2235 = vmatprep.subr.bf16.mxu0 0
        %2236 = vmatpush1.bf16.msra.mxu0 %v2216
        %2237 = vmatprep.subr.bf16.mxu0 0
        %2238 = vmatpush2.bf16.msra.mxu0 0
        %2239 = vmatprep.subr.bf16.mxu0 0
        %2240 = vmatpush2.bf16.msra.mxu0 0
        %2241 = vmatprep.subr.bf16.mxu0 0
        %2242 = vmatpush2.bf16.msra.mxu0 0
        %2243 = vmatprep.subr.bf16.mxu0 0
        %2244 = vmatpush2.bf16.msra.mxu0 0
        %2245 = vmatprep.subr.bf16.mxu0 0
        %2246 = vmatpush2.bf16.msra.mxu0 0
        %2247 = vmatprep.subr.bf16.mxu0 0
        %2248 = vmatpush2.bf16.msra.mxu0 0
        %2249 = vmatprep.subr.bf16.mxu0 0
        %2250 = vmatpush2.bf16.msra.mxu0 0
        %2251 = vmatprep.subr.bf16.mxu0 0
        %2252 = vmatpush2.bf16.msra.mxu0 0
        %2253 = vmatprep.mubr.bf16.mxu0 0
        %2254 = vmatmul.mubr.bf16.gmra.mxu0 %v2219
        %v2255 = vpop.f32.mrf.mxu0
        %v2256 = vadd.f32 0.0, %v2255
        %v2257 = vpop.f32.mrf.mxu0
        %v2258 = vpop.f32.mrf.mxu0
        %v2259 = vpop.f32.mrf.mxu0
        %2260 = vdwg.mxu0
        %v2261 = vpack.c.bf16 %v2256, %v2256
        %2262 = vst.msk [vmem:[#allocation6] sm:$0xf] %vm1509, %v2261
        %s2263 = scalar_lea.vmem [#allocation4], 16
        %v2264 = vld [vmem:[%s2263] sm:$0xf]
        %v2265 = vld [vmem:[%s2263 + $0x4] sm:$0xf]
        %v2266 = vld [vmem:[%s2263 + $0x8] sm:$0xf]
        %v2267 = vld [vmem:[%s2263 + $0xc] sm:$0xf]
        %2269 = vrot.lane.b32.xlu0 %v2138, 96
        %v2270 = vpop.permute.xlu0 %2269
        %v2275 = vunpack.c.l.b16 %v2264
        %v2276 = vunpack.c.l.b16 %v2265
        %v2277 = vunpack.c.l.b16 %v2266
        %v2278 = vunpack.c.l.b16 %v2267
        %v2279 = vpack.c.b16 %v2276, %v2275
        %v2280 = vpack.c.b16 %v2278, %v2277
        %v2284 = vsel %vm1400, %v2270, 0
        %2286 = vmatprep.subr.bf16.mxu0 0
        %2287 = vmatpush1.bf16.msra.mxu0 0
        %2288 = vmatprep.subr.bf16.mxu0 0
        %2289 = vmatpush1.bf16.msra.mxu0 0
        %2290 = vmatprep.subr.bf16.mxu0 0
        %2291 = vmatpush1.bf16.msra.mxu0 0
        %2292 = vmatprep.subr.bf16.mxu0 0
        %2293 = vmatpush1.bf16.msra.mxu0 0
        %2294 = vmatprep.subr.bf16.mxu0 0
        %2295 = vmatpush1.bf16.msra.mxu0 0
        %2296 = vmatprep.subr.bf16.mxu0 0
        %2297 = vmatpush1.bf16.msra.mxu0 0
        %2298 = vmatprep.subr.bf16.mxu0 0
        %2299 = vmatpush1.bf16.msra.mxu0 %v2280
        %2300 = vmatprep.subr.bf16.mxu0 0
        %2301 = vmatpush1.bf16.msra.mxu0 %v2279
        %2302 = vmatprep.subr.bf16.mxu0 0
        %2303 = vmatpush2.bf16.msra.mxu0 0
        %2304 = vmatprep.subr.bf16.mxu0 0
        %2305 = vmatpush2.bf16.msra.mxu0 0
        %2306 = vmatprep.subr.bf16.mxu0 0
        %2307 = vmatpush2.bf16.msra.mxu0 0
        %2308 = vmatprep.subr.bf16.mxu0 0
        %2309 = vmatpush2.bf16.msra.mxu0 0
        %2310 = vmatprep.subr.bf16.mxu0 0
        %2311 = vmatpush2.bf16.msra.mxu0 0
        %2312 = vmatprep.subr.bf16.mxu0 0
        %2313 = vmatpush2.bf16.msra.mxu0 0
        %2314 = vmatprep.subr.bf16.mxu0 0
        %2315 = vmatpush2.bf16.msra.mxu0 0
        %2316 = vmatprep.subr.bf16.mxu0 0
        %2317 = vmatpush2.bf16.msra.mxu0 0
        %2318 = vmatprep.mubr.bf16.mxu0 0
        %2319 = vmatmul.mubr.bf16.gmra.mxu0 %v2284
        %v2320 = vpop.f32.mrf.mxu0
        %v2321 = vadd.f32 0.0, %v2320
        %v2322 = vpop.f32.mrf.mxu0
        %v2323 = vpop.f32.mrf.mxu0
        %v2324 = vpop.f32.mrf.mxu0
        %2325 = vdwg.mxu0
        %v2326 = vsel %vm1444, %v2321, -inf
        %2327 = vmax.xlane.f32.xlu0 %v2326
        %v2328 = vpop.xlane.xlu0 %2327
        %v2329 = vsub.f32 %v2321, %v2328
        %v2330 = vmul.f32 %v2329, 1.442695
        %v2331 = vpow.pop %v2330
        %v2332 = vsel %vm1444, %v2331, 0.0
        %2333 = vadd.xlane.f32.xlu0 %v2332
        %v2334 = vpop.xlane.xlu0 %2333
        %v2335 = vrcp.pop %v2334
        %v2336 = vmul.f32 %v2331, %v2335
        %v2337 = vpack.c.bf16 %v2336, %v2336
        %s2338 = scalar_lea.vmem [#allocation5], 8
        %v2339 = vld [vmem:[%s2338] sm:$0xf]
        %v2340 = vld [vmem:[%s2338 + $0x4] sm:$0xf]
        %v2343 = vunpack.c.l.b16 %v2339
        %v2344 = vunpack.c.l.b16 %v2340
        %v2345 = vpack.c.b16 %v2344, %v2343
        %v2348 = vsel %vm1444, %v2337, 0
        %2350 = vmatprep.subr.bf16.mxu0 0
        %2351 = vmatpush1.bf16.msra.mxu0 0
        %2352 = vmatprep.subr.bf16.mxu0 0
        %2353 = vmatpush1.bf16.msra.mxu0 0
        %2354 = vmatprep.subr.bf16.mxu0 0
        %2355 = vmatpush1.bf16.msra.mxu0 0
        %2356 = vmatprep.subr.bf16.mxu0 0
        %2357 = vmatpush1.bf16.msra.mxu0 0
        %2358 = vmatprep.subr.bf16.mxu0 0
        %2359 = vmatpush1.bf16.msra.mxu0 0
        %2360 = vmatprep.subr.bf16.mxu0 0
        %2361 = vmatpush1.bf16.msra.mxu0 0
        %2362 = vmatprep.subr.bf16.mxu0 0
        %2363 = vmatpush1.bf16.msra.mxu0 0
        %2364 = vmatprep.subr.bf16.mxu0 0
        %2365 = vmatpush1.bf16.msra.mxu0 %v2345
        %2366 = vmatprep.subr.bf16.mxu0 0
        %2367 = vmatpush2.bf16.msra.mxu0 0
        %2368 = vmatprep.subr.bf16.mxu0 0
        %2369 = vmatpush2.bf16.msra.mxu0 0
        %2370 = vmatprep.subr.bf16.mxu0 0
        %2371 = vmatpush2.bf16.msra.mxu0 0
        %2372 = vmatprep.subr.bf16.mxu0 0
        %2373 = vmatpush2.bf16.msra.mxu0 0
        %2374 = vmatprep.subr.bf16.mxu0 0
        %2375 = vmatpush2.bf16.msra.mxu0 0
        %2376 = vmatprep.subr.bf16.mxu0 0
        %2377 = vmatpush2.bf16.msra.mxu0 0
        %2378 = vmatprep.subr.bf16.mxu0 0
        %2379 = vmatpush2.bf16.msra.mxu0 0
        %2380 = vmatprep.subr.bf16.mxu0 0
        %2381 = vmatpush2.bf16.msra.mxu0 0
        %2382 = vmatprep.mubr.bf16.mxu0 0
        %2383 = vmatmul.mubr.bf16.gmra.mxu0 %v2348
        %v2384 = vpop.f32.mrf.mxu0
        %v2385 = vadd.f32 0.0, %v2384
        %v2386 = vpop.f32.mrf.mxu0
        %v2387 = vpop.f32.mrf.mxu0
        %v2388 = vpop.f32.mrf.mxu0
        %2389 = vdwg.mxu0
        %v2390 = vpack.c.bf16 %v2385, %v2385
        %v2392 = vunpack.c.l.b16 %v2390
        %v2393 = vpack.c.b16 %v2392, %v2392
        %2394 = vrot.lane.b32.xlu0 %v2393, 32
        %v2395 = vpop.permute.xlu0 %2394
        %2397 = vst.msk [vmem:[#allocation6] sm:$0xf] %vm1645, %v2395
        %s2398 = scalar_lea.vmem [#allocation4], 32
        %v2399 = vld [vmem:[%s2398] sm:$0xf]
        %v2400 = vld [vmem:[%s2398 + $0x4] sm:$0xf]
        %v2401 = vld [vmem:[%s2398 + $0x8] sm:$0xf]
        %v2402 = vld [vmem:[%s2398 + $0xc] sm:$0xf]
        %2403 = vrot.lane.b32.xlu0 %v2138, 64
        %v2404 = vpop.permute.xlu0 %2403
        %v2409 = vunpack.c.l.b16 %v2399
        %v2410 = vunpack.c.l.b16 %v2400
        %v2411 = vunpack.c.l.b16 %v2401
        %v2412 = vunpack.c.l.b16 %v2402
        %v2413 = vpack.c.b16 %v2410, %v2409
        %v2414 = vpack.c.b16 %v2412, %v2411
        %v2418 = vsel %vm1400, %v2404, 0
        %2420 = vmatprep.subr.bf16.mxu0 0
        %2421 = vmatpush1.bf16.msra.mxu0 0
        %2422 = vmatprep.subr.bf16.mxu0 0
        %2423 = vmatpush1.bf16.msra.mxu0 0
        %2424 = vmatprep.subr.bf16.mxu0 0
        %2425 = vmatpush1.bf16.msra.mxu0 0
        %2426 = vmatprep.subr.bf16.mxu0 0
        %2427 = vmatpush1.bf16.msra.mxu0 0
        %2428 = vmatprep.subr.bf16.mxu0 0
        %2429 = vmatpush1.bf16.msra.mxu0 0
        %2430 = vmatprep.subr.bf16.mxu0 0
        %2431 = vmatpush1.bf16.msra.mxu0 0
        %2432 = vmatprep.subr.bf16.mxu0 0
        %2433 = vmatpush1.bf16.msra.mxu0 %v2414
        %2434 = vmatprep.subr.bf16.mxu0 0
        %2435 = vmatpush1.bf16.msra.mxu0 %v2413
        %2436 = vmatprep.subr.bf16.mxu0 0
        %2437 = vmatpush2.bf16.msra.mxu0 0
        %2438 = vmatprep.subr.bf16.mxu0 0
        %2439 = vmatpush2.bf16.msra.mxu0 0
        %2440 = vmatprep.subr.bf16.mxu0 0
        %2441 = vmatpush2.bf16.msra.mxu0 0
        %2442 = vmatprep.subr.bf16.mxu0 0
        %2443 = vmatpush2.bf16.msra.mxu0 0
        %2444 = vmatprep.subr.bf16.mxu0 0
        %2445 = vmatpush2.bf16.msra.mxu0 0
        %2446 = vmatprep.subr.bf16.mxu0 0
        %2447 = vmatpush2.bf16.msra.mxu0 0
        %2448 = vmatprep.subr.bf16.mxu0 0
        %2449 = vmatpush2.bf16.msra.mxu0 0
        %2450 = vmatprep.subr.bf16.mxu0 0
        %2451 = vmatpush2.bf16.msra.mxu0 0
        %2452 = vmatprep.mubr.bf16.mxu0 0
        %2453 = vmatmul.mubr.bf16.gmra.mxu0 %v2418
        %v2454 = vpop.f32.mrf.mxu0
        %v2455 = vadd.f32 0.0, %v2454
        %v2456 = vpop.f32.mrf.mxu0
        %v2457 = vpop.f32.mrf.mxu0
        %v2458 = vpop.f32.mrf.mxu0
        %2459 = vdwg.mxu0
        %v2460 = vsel %vm1444, %v2455, -inf
        %2461 = vmax.xlane.f32.xlu0 %v2460
        %v2462 = vpop.xlane.xlu0 %2461
        %v2463 = vsub.f32 %v2455, %v2462
        %v2464 = vmul.f32 %v2463, 1.442695
        %v2465 = vpow.pop %v2464
        %v2466 = vsel %vm1444, %v2465, 0.0
        %2467 = vadd.xlane.f32.xlu0 %v2466
        %v2468 = vpop.xlane.xlu0 %2467
        %v2469 = vrcp.pop %v2468
        %v2470 = vmul.f32 %v2465, %v2469
        %v2471 = vpack.c.bf16 %v2470, %v2470
        %s2472 = scalar_lea.vmem [#allocation5], 16
        %v2473 = vld [vmem:[%s2472] sm:$0xf]
        %v2474 = vld [vmem:[%s2472 + $0x4] sm:$0xf]
        %v2477 = vunpack.c.l.b16 %v2473
        %v2478 = vunpack.c.l.b16 %v2474
        %v2479 = vpack.c.b16 %v2478, %v2477
        %v2482 = vsel %vm1444, %v2471, 0
        %2484 = vmatprep.subr.bf16.mxu0 0
        %2485 = vmatpush1.bf16.msra.mxu0 0
        %2486 = vmatprep.subr.bf16.mxu0 0
        %2487 = vmatpush1.bf16.msra.mxu0 0
        %2488 = vmatprep.subr.bf16.mxu0 0
        %2489 = vmatpush1.bf16.msra.mxu0 0
        %2490 = vmatprep.subr.bf16.mxu0 0
        %2491 = vmatpush1.bf16.msra.mxu0 0
        %2492 = vmatprep.subr.bf16.mxu0 0
        %2493 = vmatpush1.bf16.msra.mxu0 0
        %2494 = vmatprep.subr.bf16.mxu0 0
        %2495 = vmatpush1.bf16.msra.mxu0 0
        %2496 = vmatprep.subr.bf16.mxu0 0
        %2497 = vmatpush1.bf16.msra.mxu0 0
        %2498 = vmatprep.subr.bf16.mxu0 0
        %2499 = vmatpush1.bf16.msra.mxu0 %v2479
        %2500 = vmatprep.subr.bf16.mxu0 0
        %2501 = vmatpush2.bf16.msra.mxu0 0
        %2502 = vmatprep.subr.bf16.mxu0 0
        %2503 = vmatpush2.bf16.msra.mxu0 0
        %2504 = vmatprep.subr.bf16.mxu0 0
        %2505 = vmatpush2.bf16.msra.mxu0 0
        %2506 = vmatprep.subr.bf16.mxu0 0
        %2507 = vmatpush2.bf16.msra.mxu0 0
        %2508 = vmatprep.subr.bf16.mxu0 0
        %2509 = vmatpush2.bf16.msra.mxu0 0
        %2510 = vmatprep.subr.bf16.mxu0 0
        %2511 = vmatpush2.bf16.msra.mxu0 0
        %2512 = vmatprep.subr.bf16.mxu0 0
        %2513 = vmatpush2.bf16.msra.mxu0 0
        %2514 = vmatprep.subr.bf16.mxu0 0
        %2515 = vmatpush2.bf16.msra.mxu0 0
        %2516 = vmatprep.mubr.bf16.mxu0 0
        %2517 = vmatmul.mubr.bf16.gmra.mxu0 %v2482
        %v2518 = vpop.f32.mrf.mxu0
        %v2519 = vadd.f32 0.0, %v2518
        %v2520 = vpop.f32.mrf.mxu0
        %v2521 = vpop.f32.mrf.mxu0
        %v2522 = vpop.f32.mrf.mxu0
        %2523 = vdwg.mxu0
        %v2524 = vpack.c.bf16 %v2519, %v2519
        %v2526 = vunpack.c.l.b16 %v2524
        %v2527 = vpack.c.b16 %v2526, %v2526
        %2528 = vrot.lane.b32.xlu0 %v2527, 64
        %v2529 = vpop.permute.xlu0 %2528
        %2531 = vst.msk [vmem:[#allocation6] sm:$0xf] %vm1780, %v2529
        %s2532 = scalar_lea.vmem [#allocation4], 48
        %v2533 = vld [vmem:[%s2532] sm:$0xf]
        %v2534 = vld [vmem:[%s2532 + $0x4] sm:$0xf]
        %v2535 = vld [vmem:[%s2532 + $0x8] sm:$0xf]
        %v2536 = vld [vmem:[%s2532 + $0xc] sm:$0xf]
        %2537 = vrot.lane.b32.xlu0 %v2138, 32
        %v2538 = vpop.permute.xlu0 %2537
        %v2543 = vunpack.c.l.b16 %v2533
        %v2544 = vunpack.c.l.b16 %v2534
        %v2545 = vunpack.c.l.b16 %v2535
        %v2546 = vunpack.c.l.b16 %v2536
        %v2547 = vpack.c.b16 %v2544, %v2543
        %v2548 = vpack.c.b16 %v2546, %v2545
        %v2552 = vsel %vm1400, %v2538, 0
        %2554 = vmatprep.subr.bf16.mxu0 0
        %2555 = vmatpush1.bf16.msra.mxu0 0
        %2556 = vmatprep.subr.bf16.mxu0 0
        %2557 = vmatpush1.bf16.msra.mxu0 0
        %2558 = vmatprep.subr.bf16.mxu0 0
        %2559 = vmatpush1.bf16.msra.mxu0 0
        %2560 = vmatprep.subr.bf16.mxu0 0
        %2561 = vmatpush1.bf16.msra.mxu0 0
        %2562 = vmatprep.subr.bf16.mxu0 0
        %2563 = vmatpush1.bf16.msra.mxu0 0
        %2564 = vmatprep.subr.bf16.mxu0 0
        %2565 = vmatpush1.bf16.msra.mxu0 0
        %2566 = vmatprep.subr.bf16.mxu0 0
        %2567 = vmatpush1.bf16.msra.mxu0 %v2548
        %2568 = vmatprep.subr.bf16.mxu0 0
        %2569 = vmatpush1.bf16.msra.mxu0 %v2547
        %2570 = vmatprep.subr.bf16.mxu0 0
        %2571 = vmatpush2.bf16.msra.mxu0 0
        %2572 = vmatprep.subr.bf16.mxu0 0
        %2573 = vmatpush2.bf16.msra.mxu0 0
        %2574 = vmatprep.subr.bf16.mxu0 0
        %2575 = vmatpush2.bf16.msra.mxu0 0
        %2576 = vmatprep.subr.bf16.mxu0 0
        %2577 = vmatpush2.bf16.msra.mxu0 0
        %2578 = vmatprep.subr.bf16.mxu0 0
        %2579 = vmatpush2.bf16.msra.mxu0 0
        %2580 = vmatprep.subr.bf16.mxu0 0
        %2581 = vmatpush2.bf16.msra.mxu0 0
        %2582 = vmatprep.subr.bf16.mxu0 0
        %2583 = vmatpush2.bf16.msra.mxu0 0
        %2584 = vmatprep.subr.bf16.mxu0 0
        %2585 = vmatpush2.bf16.msra.mxu0 0
        %2586 = vmatprep.mubr.bf16.mxu0 0
        %2587 = vmatmul.mubr.bf16.gmra.mxu0 %v2552
        %v2588 = vpop.f32.mrf.mxu0
        %v2589 = vadd.f32 0.0, %v2588
        %v2590 = vpop.f32.mrf.mxu0
        %v2591 = vpop.f32.mrf.mxu0
        %v2592 = vpop.f32.mrf.mxu0
        %2593 = vdwg.mxu0
        %v2594 = vsel %vm1444, %v2589, -inf
        %2595 = vmax.xlane.f32.xlu0 %v2594
        %v2596 = vpop.xlane.xlu0 %2595
        %v2597 = vsub.f32 %v2589, %v2596
        %v2598 = vmul.f32 %v2597, 1.442695
        %v2599 = vpow.pop %v2598
        %v2600 = vsel %vm1444, %v2599, 0.0
        %2601 = vadd.xlane.f32.xlu0 %v2600
        %v2602 = vpop.xlane.xlu0 %2601
        %v2603 = vrcp.pop %v2602
        %v2604 = vmul.f32 %v2599, %v2603
        %v2605 = vpack.c.bf16 %v2604, %v2604
        %s2606 = scalar_lea.vmem [#allocation5], 24
        %v2607 = vld [vmem:[%s2606] sm:$0xf]
        %v2608 = vld [vmem:[%s2606 + $0x4] sm:$0xf]
        %v2611 = vunpack.c.l.b16 %v2607
        %v2612 = vunpack.c.l.b16 %v2608
        %v2613 = vpack.c.b16 %v2612, %v2611
        %v2616 = vsel %vm1444, %v2605, 0
        %2618 = vmatprep.subr.bf16.mxu0 0
        %2619 = vmatpush1.bf16.msra.mxu0 0
        %2620 = vmatprep.subr.bf16.mxu0 0
        %2621 = vmatpush1.bf16.msra.mxu0 0
        %2622 = vmatprep.subr.bf16.mxu0 0
        %2623 = vmatpush1.bf16.msra.mxu0 0
        %2624 = vmatprep.subr.bf16.mxu0 0
        %2625 = vmatpush1.bf16.msra.mxu0 0
        %2626 = vmatprep.subr.bf16.mxu0 0
        %2627 = vmatpush1.bf16.msra.mxu0 0
        %2628 = vmatprep.subr.bf16.mxu0 0
        %2629 = vmatpush1.bf16.msra.mxu0 0
        %2630 = vmatprep.subr.bf16.mxu0 0
        %2631 = vmatpush1.bf16.msra.mxu0 0
        %2632 = vmatprep.subr.bf16.mxu0 0
        %2633 = vmatpush1.bf16.msra.mxu0 %v2613
        %2634 = vmatprep.subr.bf16.mxu0 0
        %2635 = vmatpush2.bf16.msra.mxu0 0
        %2636 = vmatprep.subr.bf16.mxu0 0
        %2637 = vmatpush2.bf16.msra.mxu0 0
        %2638 = vmatprep.subr.bf16.mxu0 0
        %2639 = vmatpush2.bf16.msra.mxu0 0
        %2640 = vmatprep.subr.bf16.mxu0 0
        %2641 = vmatpush2.bf16.msra.mxu0 0
        %2642 = vmatprep.subr.bf16.mxu0 0
        %2643 = vmatpush2.bf16.msra.mxu0 0
        %2644 = vmatprep.subr.bf16.mxu0 0
        %2645 = vmatpush2.bf16.msra.mxu0 0
        %2646 = vmatprep.subr.bf16.mxu0 0
        %2647 = vmatpush2.bf16.msra.mxu0 0
        %2648 = vmatprep.subr.bf16.mxu0 0
        %2649 = vmatpush2.bf16.msra.mxu0 0
        %2650 = vmatprep.mubr.bf16.mxu0 0
        %2651 = vmatmul.mubr.bf16.gmra.mxu0 %v2616
        %v2652 = vpop.f32.mrf.mxu0
        %v2653 = vadd.f32 0.0, %v2652
        %v2654 = vpop.f32.mrf.mxu0
        %v2655 = vpop.f32.mrf.mxu0
        %v2656 = vpop.f32.mrf.mxu0
        %2657 = vdwg.mxu0
        %v2658 = vpack.c.bf16 %v2653, %v2653
        %v2660 = vunpack.c.l.b16 %v2658
        %v2661 = vpack.c.b16 %v2660, %v2660
        %2662 = vrot.lane.b32.xlu0 %v2661, 96
        %v2663 = vpop.permute.xlu0 %2662
        %2665 = vst.msk [vmem:[#allocation6] sm:$0xf] %vm1915, %v2663
        %v2666 = vld [vmem:[#allocation6] sm:$0xf]
        %v2667 = vld [vmem:[#allocation19] sm:$0xf]
        %v2668 = vld [vmem:[#allocation19 + $0x4] sm:$0xf]
        %v2669 = vld [vmem:[#allocation19 + $0x8] sm:$0xf]
        %v2670 = vld [vmem:[#allocation19 + $0xc] sm:$0xf]
        %v2671 = vld [vmem:[#allocation19 + $0x10] sm:$0xf]
        %v2672 = vld [vmem:[#allocation19 + $0x14] sm:$0xf]
        %v2673 = vld [vmem:[#allocation19 + $0x18] sm:$0xf]
        %v2674 = vld [vmem:[#allocation19 + $0x1c] sm:$0xf]
        %v2675 = vld [vmem:[#allocation19 + $0x20] sm:$0xf]
        %v2676 = vld [vmem:[#allocation19 + $0x24] sm:$0xf]
        %v2677 = vld [vmem:[#allocation19 + $0x28] sm:$0xf]
        %v2678 = vld [vmem:[#allocation19 + $0x2c] sm:$0xf]
        %v2679 = vld [vmem:[#allocation19 + $0x30] sm:$0xf]
        %v2680 = vld [vmem:[#allocation19 + $0x34] sm:$0xf]
        %v2681 = vld [vmem:[#allocation19 + $0x38] sm:$0xf]
        %v2682 = vld [vmem:[#allocation19 + $0x3c] sm:$0xf]
        %v2683 = vld [vmem:[%s11] sm:$0x1]
        %v2685 = vlaneseq
        %v2686 = vshrl.u32 %v2685, 7
        %v2687 = vsub.s32 0, %v2686
        %v2688 = vrot.slane %v2683, %v2687
        %v2706 = vunpack.c.l.b16 %v2667
        %v2707 = vunpack.c.l.b16 %v2668
        %v2708 = vunpack.c.l.b16 %v2669
        %v2709 = vunpack.c.l.b16 %v2670
        %v2710 = vunpack.c.l.b16 %v2671
        %v2711 = vunpack.c.l.b16 %v2672
        %v2712 = vunpack.c.l.b16 %v2673
        %v2713 = vunpack.c.l.b16 %v2674
        %v2714 = vunpack.c.l.b16 %v2675
        %v2715 = vunpack.c.l.b16 %v2676
        %v2716 = vunpack.c.l.b16 %v2677
        %v2717 = vunpack.c.l.b16 %v2678
        %v2718 = vunpack.c.l.b16 %v2679
        %v2719 = vunpack.c.l.b16 %v2680
        %v2720 = vunpack.c.l.b16 %v2681
        %v2721 = vunpack.c.l.b16 %v2682
        %v2722 = vpack.c.b16 %v2707, %v2706
        %v2723 = vpack.c.b16 %v2709, %v2708
        %v2724 = vpack.c.b16 %v2711, %v2710
        %v2725 = vpack.c.b16 %v2713, %v2712
        %v2726 = vpack.c.b16 %v2715, %v2714
        %v2727 = vpack.c.b16 %v2717, %v2716
        %v2728 = vpack.c.b16 %v2719, %v2718
        %v2729 = vpack.c.b16 %v2721, %v2720
        %2738 = vmatprep.subr.bf16.mxu0 0
        %2739 = vmatpush1.bf16.msra.mxu0 %v2729
        %2740 = vmatprep.subr.bf16.mxu0 0
        %2741 = vmatpush1.bf16.msra.mxu0 %v2728
        %2742 = vmatprep.subr.bf16.mxu0 0
        %2743 = vmatpush1.bf16.msra.mxu0 %v2727
        %2744 = vmatprep.subr.bf16.mxu0 0
        %2745 = vmatpush1.bf16.msra.mxu0 %v2726
        %2746 = vmatprep.subr.bf16.mxu0 0
        %2747 = vmatpush1.bf16.msra.mxu0 %v2725
        %2748 = vmatprep.subr.bf16.mxu0 0
        %2749 = vmatpush1.bf16.msra.mxu0 %v2724
        %2750 = vmatprep.subr.bf16.mxu0 0
        %2751 = vmatpush1.bf16.msra.mxu0 %v2723
        %2752 = vmatprep.subr.bf16.mxu0 0
        %2753 = vmatpush1.bf16.msra.mxu0 %v2722
        %2754 = vmatprep.subr.bf16.mxu0 0
        %2755 = vmatpush2.bf16.msra.mxu0 0
        %2756 = vmatprep.subr.bf16.mxu0 0
        %2757 = vmatpush2.bf16.msra.mxu0 0
        %2758 = vmatprep.subr.bf16.mxu0 0
        %2759 = vmatpush2.bf16.msra.mxu0 0
        %2760 = vmatprep.subr.bf16.mxu0 0
        %2761 = vmatpush2.bf16.msra.mxu0 0
        %2762 = vmatprep.subr.bf16.mxu0 0
        %2763 = vmatpush2.bf16.msra.mxu0 0
        %2764 = vmatprep.subr.bf16.mxu0 0
        %2765 = vmatpush2.bf16.msra.mxu0 0
        %2766 = vmatprep.subr.bf16.mxu0 0
        %2767 = vmatpush2.bf16.msra.mxu0 0
        %2768 = vmatprep.subr.bf16.mxu0 0
        %2769 = vmatpush2.bf16.msra.mxu0 0
        %2770 = vmatprep.mubr.bf16.mxu0 0
        %2771 = vmatmul.mubr.bf16.gmra.mxu0 %v2666
        %v2772 = vpop.f32.mrf.mxu0
        %v2773 = vadd.f32 %v2688, %v2772
        %v2774 = vpop.f32.mrf.mxu0
        %v2775 = vpop.f32.mrf.mxu0
        %v2776 = vpop.f32.mrf.mxu0
        %2777 = vdwg.mxu0
        %2778 = vst [vmem:[%s614] sm:$0xff] %v2773
        %s2779 = sand.u32 %s326, 1
        %s2780 = scalar_lea.sflag [#allocation9], %s2779
        %s2781 = sand.u32 %s326, 1
        %s2782 = smul.addr %s2781, 8
        %s2783 = scalar_lea.vmem [#allocation21], %s2782
        %s2784 = sand.u32 %s354, 1
        %s2785 = scalar_lea.sflag [#allocation23], %s2784
        %s2786 = sand.u32 %s354, 1
        %s2787 = smul.addr %s2786, 8
        %s2788 = scalar_lea.vmem [#allocation22], %s2787
        // Predicated region
        $region105: #{tpu_custom_call.1} parent=67 // pred_check
          %p2789 = pneg %p336
        $region106: #{tpu_custom_call.1} parent=67 // pred_check_branch
          %2791 = sbr.rel (%p2789) target = $region108
        $region107: #{tpu_custom_call.1} parent=67 // pred_region
          %s2793 = ssub.s32 128, 128
          %2794 = vsyncadd %s2780, %s2793
          %s2795 = smul.addr %s44, 2
          %s2796 = sadd.s32 %s45, %s2795
          %s2797 = smul.addr %s2796, 128
          %s2798 = scalar_lea.hbm %s12, %s2797
          %s2800 = sshll.u32 %s2783, 4
          %s2801 = int_to_ptr.vmem [resolvable:$true] %s2800
          %2803 = dma.vmem_to_hbm [thread:$0]  %s2801, 128, %s2798, %s2780
        $region108: #{tpu_custom_call.1} parent=67 // pred_fallthru
          _
        // Predicated region
        $region109: #{tpu_custom_call.1} parent=67 // pred_check
          %p2804 = pneg %p364
        $region110: #{tpu_custom_call.1} parent=67 // pred_check_branch
          %2806 = sbr.rel (%p2804) target = $region112
        $region111: #{tpu_custom_call.1} parent=67 // pred_region
          %s2808 = ssub.s32 128, 128
          %2809 = vsyncadd %s2785, %s2808
          %s2810 = smul.addr %s44, 2
          %s2811 = sadd.s32 %s45, %s2810
          %s2812 = smul.addr %s2811, 128
          %s2813 = scalar_lea.hbm %s13, %s2812
          %s2815 = sshll.u32 %s2788, 4
          %s2816 = int_to_ptr.vmem [resolvable:$true] %s2815
          %2818 = dma.vmem_to_hbm [thread:$0]  %s2816, 128, %s2813, %s2785
        $region112: #{tpu_custom_call.1} parent=67 // pred_fallthru
          _
      $region68: #{tpu_custom_call.1} parent=5 // pred_fallthru
        _
      %p2819 = scmp.le.s32.totalorder 2, %s35
      // Predicated region
      $region113: #{tpu_custom_call.1} parent=5 // pred_check
        %p2820 = pneg %p2819
      $region114: #{tpu_custom_call.1} parent=5 // pred_check_branch
        %2822 = sbr.rel (%p2820) target = $region116
      $region115: #{tpu_custom_call.1} parent=5 // pred_region
        %s2823 = ssub.s32 %s35, 2
        // Predicated region
        $region117: #{tpu_custom_call.1} parent=115 // pred_check
          %p2824 = pneg %p342
        $region118: #{tpu_custom_call.1} parent=115 // pred_check_branch
          %2826 = sbr.rel (%p2824) target = $region120
        $region119: #{tpu_custom_call.1} parent=115 // pred_region
          %s2827 = sand.u32 %s327, 1
          %s2828 = scalar_lea.sflag [#allocation9], %s2827
          %s2829 = sand.u32 %s327, 1
          %s2830 = smul.addr %s2829, 8
          %s2831 = scalar_lea.vmem [#allocation21], %s2830
          %2832 = dma.done %s2828, 128
        $region120: #{tpu_custom_call.1} parent=115 // pred_fallthru
          _
        // Predicated region
        $region121: #{tpu_custom_call.1} parent=115 // pred_check
          %p2833 = pneg %p370
        $region122: #{tpu_custom_call.1} parent=115 // pred_check_branch
          %2835 = sbr.rel (%p2833) target = $region124
        $region123: #{tpu_custom_call.1} parent=115 // pred_region
          %s2836 = sand.u32 %s355, 1
          %s2837 = scalar_lea.sflag [#allocation23], %s2836
          %s2838 = sand.u32 %s355, 1
          %s2839 = smul.addr %s2838, 8
          %s2840 = scalar_lea.vmem [#allocation22], %s2839
          %2841 = dma.done %s2837, 128
        $region124: #{tpu_custom_call.1} parent=115 // pred_fallthru
          _
      $region116: #{tpu_custom_call.1} parent=5 // pred_fallthru
        _
    $region6: #{tpu_custom_call.1} parent=1 // loop_footer
      %s39 = sadd.s32 1, %s35
    $region7: #{tpu_custom_call.1} parent=1 // loop_footer_branch
      %34 = sbr.rel target = $region3
    $region8: #{tpu_custom_call.1} parent=1 // loop_exit
      _
    %2842 = vsyncpa [#allocation8], 1
    %s2843 = scalar_lea.sflag [#allocation8], 1
    %2844 = vsyncpa %s2843, 1
    %2845 = vsyncpa [#allocation11], 1
    %s2846 = scalar_lea.sflag [#allocation11], 1
    %2847 = vsyncpa %s2846, 1
    %2848 = vsyncpa [#allocation14], 1
    %2849 = vsyncpa [#allocation17], 1
    %2850 = vsyncpa [#allocation20], 1
    %2851 = vsyncpa [#allocation9], 1
    %s2852 = scalar_lea.sflag [#allocation9], 1
    %2853 = vsyncpa %s2852, 1
    %2854 = vsyncpa [#allocation23], 1
    %s2855 = scalar_lea.sflag [#allocation23], 1
    %2856 = vsyncpa %s2855, 1

</llo_original>
